<compile_context>
chip_gen: v7x
topology: tpu7x:2x2x1
jax: 0.10.0
libtpu: 0.0.40
codegen_flags: <defaults>
</compile_context>

<pallas_src>
import functools

import numpy as np
import jax
import jax.numpy as jnp
from jax.experimental import pallas as pl
from jax.experimental.pallas import tpu as pltpu


# ----------------------------------------------------------------------------
# small helpers (glue, plain JAX / numpy)
# ----------------------------------------------------------------------------
def gelu_tanh(x):
    # TODO(synk): PyTorch nn.GELU default is the exact erf form; the tanh
    # approximation is used for a Mosaic-safe elementwise lowering.
    return 0.5 * x * (1.0 + jnp.tanh(0.7978845608028654 * (x + 0.044715 * x * x * x)))


def layernorm_jnp(x, g, b, eps=1e-5):
    mu = jnp.mean(x, axis=-1, keepdims=True)
    var = jnp.mean((x - mu) ** 2, axis=-1, keepdims=True)
    return (x - mu) * jax.lax.rsqrt(var + eps) * g + b


def window_partition_jnp(x, ws):
    B, H, W, C = x.shape
    x = x.reshape(B, H // ws, ws, W // ws, ws, C)
    return x.transpose(0, 1, 3, 2, 4, 5).reshape(-1, ws, ws, C)


def window_reverse_jnp(windows, ws, H, W):
    B = windows.shape[0] // ((H // ws) * (W // ws))
    x = windows.reshape(B, H // ws, W // ws, ws, ws, -1)
    return x.transpose(0, 1, 3, 2, 4, 5).reshape(B, H, W, -1)


def relative_position_index_np(ws):
    coords = np.stack(np.meshgrid(np.arange(ws), np.arange(ws), indexing="ij"))
    cf = coords.reshape(2, -1)
    rel = (cf[:, :, None] - cf[:, None, :]).transpose(1, 2, 0).copy()
    rel[:, :, 0] += ws - 1
    rel[:, :, 1] += ws - 1
    rel[:, :, 0] *= 2 * ws - 1
    return rel.sum(-1)                      # (N, N) int


def create_attn_mask_np(H, W, ws, shift):
    # H, W assumed multiples of ws (no padding path).
    img_mask = np.zeros((1, H, W, 1), np.float32)
    slices = (slice(0, -ws), slice(-ws, -shift), slice(-shift, None))
    cnt = 0
    for h in slices:
        for w in slices:
            img_mask[:, h, w, :] = cnt
            cnt += 1
    mw = img_mask.reshape(1, H // ws, ws, W // ws, ws, 1)
    mw = mw.transpose(0, 1, 3, 2, 4, 5).reshape(-1, ws * ws)
    attn_mask = mw[:, None, :] - mw[:, :, None]
    return np.where(attn_mask != 0, -100.0, 0.0).astype(np.float32)   # (nW, N, N)


# ----------------------------------------------------------------------------
# strip-order (ws rows x W cols) constants: the kernel never permutes tokens;
# window structure is carried entirely by these precomputed tables.
# ----------------------------------------------------------------------------
def _strip_token_maps(ws, W):
    S = ws * W
    t = np.arange(S)
    r, col = t // W, t % W
    return col // ws, r * ws + (col % ws)   # window-column index, in-window index


def _build_strip_bias(rel_bias_hNN, ws, W, mask_nWNN, h_rows):
    """Combined (rel-pos bias + shift mask + block-diagonal -inf) logit bias in
    strip-token order.  Returns (len(h_rows), nH, S, S) f32."""
    nH = rel_bias_hNN.shape[0]
    S = ws * W
    Wws = W // ws
    w_of, j_of = _strip_token_maps(ws, W)
    out = np.full((len(h_rows), nH, S, S), -1e9, np.float32)
    for k, hr in enumerate(h_rows):
        for w in range(Wws):
            idx = np.where(w_of == w)[0]
            jj = j_of[idx]
            blk = rel_bias_hNN[:, jj[:, None], jj[None, :]].copy()
            if mask_nWNN is not None:
                blk = blk + mask_nWNN[hr * Wws + w][jj[:, None], jj[None, :]][None]
            out[k][:, idx[:, None], idx[None, :]] = blk
    return jnp.asarray(out)


def make_strip_constants(ws, W):
    S = ws * W
    Wws = W // ws
    N = ws * ws
    _, j_of = _strip_token_maps(ws, W)
    rsel = np.zeros((Wws, W), np.float32)            # selects row-0 token of each window
    rsel[np.arange(Wws), np.arange(Wws) * ws] = 1.0
    tcol = np.zeros((S, N), np.float32)              # collapses strip cols -> window cols
    tcol[np.arange(S), j_of] = 1.0
    return {"rsel": jnp.asarray(rsel), "tcol": jnp.asarray(tcol)}


# ----------------------------------------------------------------------------
# one-time parameter prep: fold q-scale into qkv weights, bf16 matmul weights,
# precompute the combined strip bias tables
# ----------------------------------------------------------------------------
def prepare_block_params(p, num_heads, ws, H, W, rel_idx, mask_np):
    C = p["w_qkv"].shape[0]
    N = ws * ws
    hd = C // num_heads
    scale = float(hd) ** -0.5
    col_scale = jnp.concatenate(
        [jnp.full((C,), scale, jnp.float32), jnp.ones((2 * C,), jnp.float32)])[None, :]
    q = dict(p)
    q["w_qkv_s"] = (p["w_qkv"] * col_scale).astype(jnp.bfloat16)   # scale folded into q cols
    q["b_qkv_s"] = p["b_qkv"] * col_scale
    q["w_proj_h"] = p["w_proj"].astype(jnp.bfloat16)
    q["w1_h"] = p["w1"].astype(jnp.bfloat16)
    q["w2_h"] = p["w2"].astype(jnp.bfloat16)
    rel = np.asarray(p["rel_table"])[np.asarray(rel_idx).reshape(-1)]
    rel = rel.reshape(N, N, num_heads).transpose(2, 0, 1).astype(np.float32)   # (nH,N,N)
    q["rel_bias"] = jnp.asarray(rel)[None]                                     # reference path
    nsr = H // ws
    q["bias_noshift"] = _build_strip_bias(rel, ws, W, None, [0])               # (1,nH,S,S)
    q["bias_shift"] = _build_strip_bias(rel, ws, W, mask_np, [0, nsr - 1])     # (2,nH,S,S)
    return q


# ----------------------------------------------------------------------------
# Pallas kernel: one full Swin block (LN1+attn+proj+res + LN2+MLP+res) on a
# group of Gb strips (Gb batch images, one window-row) per grid step
# ----------------------------------------------------------------------------
def _swin_block_kernel(x_ref, g1_ref, b1_ref, wqkv_ref, bqkv_ref, wproj_ref,
                       bproj_ref, bias_ref, rsel_ref, tcol_ref,
                       g2_ref, b2_ref, w1_ref, bm1_ref, w2_ref, bm2_ref,
                       out_ref, aval_ref, hout_ref, *, num_heads, ws, img_w):
    Gb, _, S, C = x_ref.shape
    hd = C // num_heads
    Wws = img_w // ws
    N = ws * ws
    M = Gb * S

    x = x_ref[...].reshape(M, C)                          # f32 shortcut rows

    # LayerNorm 1 (f32 statistics)
    mu = jnp.mean(x, axis=-1, keepdims=True)
    var = jnp.mean((x - mu) ** 2, axis=-1, keepdims=True)
    xn = (x - mu) * jax.lax.rsqrt(var + 1e-5) * g1_ref[...] + b1_ref[...]

    # fused qkv projection (bf16 MXU, f32 accumulate; q-scale folded into W)
    qkv = jnp.dot(xn.astype(jnp.bfloat16), wqkv_ref[...],
                  preferred_element_type=jnp.float32) + bqkv_ref[...]
    q_all = qkv[:, :C].reshape(Gb, S, C)
    k_all = qkv[:, C:2 * C].reshape(Gb, S, C)
    v_all = qkv[:, 2 * C:].reshape(Gb, S, C).astype(jnp.bfloat16)

    # block-diagonal multi-window attention over the whole strip (no in-kernel
    # window partition: bias carries rel-pos + shift mask + -1e9 cross-window).
    rows_acc = jnp.zeros((Gb, img_w, S), jnp.float32)
    for h in range(num_heads):
        q = q_all[:, :, h * hd:(h + 1) * hd].astype(jnp.bfloat16)
        k = k_all[:, :, h * hd:(h + 1) * hd].astype(jnp.bfloat16)
        v = v_all[:, :, h * hd:(h + 1) * hd]
        logits = jnp.einsum("bqd,bkd->bqk", q, k,
                            preferred_element_type=jnp.float32)        # (Gb,S,S)
        logits = logits + bias_ref[0, h]
        m = jnp.max(logits, axis=-1, keepdims=True)
        pe = jnp.exp(logits - m)
        attn = pe * pl.reciprocal(jnp.sum(pe, axis=-1, keepdims=True), approx=True)
        rows_acc = rows_acc + attn[:, :img_w, :]          # contains row-0 of each window
        # per-head AV result straight into its column slot (no lane concat)
        hout_ref[:, :, h * hd:(h + 1) * hd] = jnp.einsum(
            "bqk,bkd->bqd", attn.astype(jnp.bfloat16), v,
            preferred_element_type=jnp.float32)

    proj = jnp.dot(hout_ref[...].reshape(M, C).astype(jnp.bfloat16), wproj_ref[...],
                   preferred_element_type=jnp.float32) + bproj_ref[...]
    y = x + proj                                          # fused attention residual

    # fused MLP epilogue: LN2 + fc1 + GELU + fc2 + residual (token-wise, so it
    # commutes with the window/roll permutations done outside the kernel).
    mu2 = jnp.mean(y, axis=-1, keepdims=True)
    var2 = jnp.mean((y - mu2) ** 2, axis=-1, keepdims=True)
    yn = (y - mu2) * jax.lax.rsqrt(var2 + 1e-5) * g2_ref[...] + b2_ref[...]
    hmid = jnp.dot(yn.astype(jnp.bfloat16), w1_ref[...],
                   preferred_element_type=jnp.float32) + bm1_ref[...]
    hmid = gelu_tanh(hmid)
    y2 = jnp.dot(hmid.astype(jnp.bfloat16), w2_ref[...],
                 preferred_element_type=jnp.float32) + bm2_ref[...]
    out_ref[...] = (y + y2).reshape(Gb, 1, S, C)

    # attn_value = attn.mean(heads)[:, 0, :] per window (cross-window probs are
    # exactly 0 after the -1e9 bias, so the column-collapse matmul is exact).
    rsel = jnp.broadcast_to(rsel_ref[...][None], (Gb, Wws, img_w))
    rows_sel = jnp.einsum("bpw,bws->bps", rsel, rows_acc,
                          preferred_element_type=jnp.float32)
    tcol = jnp.broadcast_to(tcol_ref[...][None], (Gb, S, N))
    aval = jnp.einsum("bps,bsn->bpn", rows_sel, tcol,
                      preferred_element_type=jnp.float32) * (1.0 / num_heads)
    aval_ref[...] = aval.reshape(Gb, 1, Wws, N)


def _pick_batch_group(B, S, nsr, target_rows=256):
    """Batch images per grid step: target ~target_rows MXU rows but keep >=2
    total grid steps so megacore (v7x) can shard the grid."""
    best = 1
    for d in range(1, B + 1):
        if B % d:
            continue
        if d * S > max(target_rows, S):
            continue
        if nsr * (B // d) < 2 <= nsr * (B // best):
            continue
        best = d
    return best


def swin_block_pallas(x, H, W, p, aux, shift, ws, nH):
    B, L, C = x.shape
    S = ws * W
    nsr = H // ws
    Wws = W // ws
    N = ws * ws
    hidden = p["w1_h"].shape[1]

    # TODO(synk): the F.pad path for H/W not multiples of window_size is not
    # implemented; inputs are chosen so no padding is needed.
    xs = x.reshape(B, H, W, C)
    if shift > 0:
        xs = jnp.roll(xs, (-shift, -shift), (1, 2))
    x_strips = xs.reshape(B, nsr, S, C)          # pure reshape (same layout)

    Gb = _pick_batch_group(B, S, nsr)
    nbg = B // Gb
    grid = (nsr, nbg)

    bias = p["bias_shift"] if shift > 0 else p["bias_noshift"]
    nbias = bias.shape[0]
    if nbias == 1:
        bias_idx = lambda h, g: (0, 0, 0, 0)
    elif nsr == 1:
        bias_idx = lambda h, g: (nbias - 1, 0, 0, 0)
    else:
        bias_idx = lambda h, g: (h // (nsr - 1), 0, 0, 0)   # last window-row -> kind 1

    kernel = functools.partial(_swin_block_kernel, num_heads=nH, ws=ws, img_w=W)
    out_shape = (
        jax.ShapeDtypeStruct((B, nsr, S, C), jnp.float32),
        jax.ShapeDtypeStruct((B, nsr, Wws, N), jnp.float32),
    )
    in_specs = [
        pl.BlockSpec((Gb, 1, S, C), lambda h, g: (g, h, 0, 0)),     # x strips
        pl.BlockSpec((1, C), lambda h, g: (0, 0)),                  # ln1 gamma
        pl.BlockSpec((1, C), lambda h, g: (0, 0)),                  # ln1 beta
        pl.BlockSpec((C, 3 * C), lambda h, g: (0, 0)),              # w_qkv (bf16, scaled)
        pl.BlockSpec((1, 3 * C), lambda h, g: (0, 0)),              # b_qkv (f32, scaled)
        pl.BlockSpec((C, C), lambda h, g: (0, 0)),                  # w_proj (bf16)
        pl.BlockSpec((1, C), lambda h, g: (0, 0)),                  # b_proj
        pl.BlockSpec((1, nH, S, S), bias_idx),                      # combined strip bias
        pl.BlockSpec((Wws, W), lambda h, g: (0, 0)),                # row-0 selector
        pl.BlockSpec((S, N), lambda h, g: (0, 0)),                  # column collapse
        pl.BlockSpec((1, C), lambda h, g: (0, 0)),                  # ln2 gamma
        pl.BlockSpec((1, C), lambda h, g: (0, 0)),                  # ln2 beta
        pl.BlockSpec((C, hidden), lambda h, g: (0, 0)),             # w1 (bf16)
        pl.BlockSpec((1, hidden), lambda h, g: (0, 0)),             # b1
        pl.BlockSpec((hidden, C), lambda h, g: (0, 0)),             # w2 (bf16)
        pl.BlockSpec((1, C), lambda h, g: (0, 0)),                  # b2
    ]
    out_specs = (
        pl.BlockSpec((Gb, 1, S, C), lambda h, g: (g, h, 0, 0)),
        pl.BlockSpec((Gb, 1, Wws, N), lambda h, g: (g, h, 0, 0)),
    )
    out_strips, aval = pl.pallas_call(
        kernel,
        out_shape=out_shape,
        grid_spec=pltpu.PrefetchScalarGridSpec(
            num_scalar_prefetch=0, grid=grid,
            in_specs=in_specs, out_specs=out_specs,
            scratch_shapes=[pltpu.VMEM((Gb, S, C), jnp.float32)]),   # per-head AV slots
        compiler_params=pltpu.CompilerParams(
            dimension_semantics=("parallel", "parallel"),
            vmem_limit_bytes=48 * 1024 * 1024),
    )(x_strips, p["ln1_g"], p["ln1_b"], p["w_qkv_s"], p["b_qkv_s"],
      p["w_proj_h"], p["b_proj"], bias, aux["rsel"], aux["tcol"],
      p["ln2_g"], p["ln2_b"], p["w1_h"], p["b1"], p["w2_h"], p["b2"])

    ys = out_strips.reshape(B, H, W, C)
    if shift > 0:
        ys = jnp.roll(ys, (shift, shift), (1, 2))
    return ys.reshape(B, L, C), aval.reshape(B * nsr * Wws, N)


# ----------------------------------------------------------------------------
# plain-JAX reference (identical math incl. bf16 matmul casts) for checking
# ----------------------------------------------------------------------------
def window_attention_jnp(windows, p, num_heads, nW, mask=None):
    B_, N, C = windows.shape
    hd = C // num_heads
    xn = layernorm_jnp(windows, p["ln1_g"][0], p["ln1_b"][0])
    qkv = jnp.dot(xn.astype(jnp.bfloat16), p["w_qkv_s"],
                  preferred_element_type=jnp.float32) + p["b_qkv_s"][0]
    qkv = qkv.reshape(B_, N, 3, num_heads, hd).transpose(2, 0, 3, 1, 4)
    q = qkv[0].astype(jnp.bfloat16)     # scale already folded into w_qkv_s
    k = qkv[1].astype(jnp.bfloat16)
    v = qkv[2].astype(jnp.bfloat16)
    attn = jnp.einsum("bhqd,bhkd->bhqk", q, k, preferred_element_type=jnp.float32)
    attn = attn + p["rel_bias"]
    if mask is not None:
        attn = (attn.reshape(B_ // nW, nW, num_heads, N, N)
                + mask[None, :, None]).reshape(B_, num_heads, N, N)
    attn = jax.nn.softmax(attn, axis=-1)
    attn_value = attn.mean(axis=1)[:, 0, :]
    out = jnp.einsum("bhqk,bhkd->bhqd", attn.astype(jnp.bfloat16), v,
                     preferred_element_type=jnp.float32)
    out = out.transpose(0, 2, 1, 3).reshape(B_, N, C)
    out = jnp.dot(out.astype(jnp.bfloat16), p["w_proj_h"],
                  preferred_element_type=jnp.float32) + p["b_proj"][0]
    return windows + out, attn_value


def mlp_jnp(x_flat, p):
    xn = layernorm_jnp(x_flat, p["ln2_g"][0], p["ln2_b"][0])
    h = jnp.dot(xn.astype(jnp.bfloat16), p["w1_h"],
                preferred_element_type=jnp.float32) + p["b1"][0]
    h = gelu_tanh(h)
    y = jnp.dot(h.astype(jnp.bfloat16), p["w2_h"],
                preferred_element_type=jnp.float32) + p["b2"][0]
    return x_flat + y


def swin_block_ref(x, H, W, p, shift, ws, nH, mask_j):
    B, L, C = x.shape
    N = ws * ws
    nW = (H // ws) * (W // ws)
    xs = x.reshape(B, H, W, C)
    if shift > 0:
        xs = jnp.roll(xs, (-shift, -shift), (1, 2))
    windows = window_partition_jnp(xs, ws).reshape(-1, N, C)
    attn_out, attn_value = window_attention_jnp(
        windows, p, nH, nW, mask_j if shift > 0 else None)
    xs2 = window_reverse_jnp(attn_out.reshape(-1, ws, ws, C), ws, H, W)
    if shift > 0:
        xs2 = jnp.roll(xs2, (shift, shift), (1, 2))
    x2 = xs2.reshape(B, L, C)                 # drop_path = identity (prob 0 / eval)
    out = mlp_jnp(x2.reshape(B * L, C), p)
    return out.reshape(B, L, C), attn_value


# ----------------------------------------------------------------------------
# BasicLayer forward
# ----------------------------------------------------------------------------
def basic_layer_forward(x, H, W, blocks, ws, nH, use_pallas=True):
    shift = ws // 2
    rel_idx = relative_position_index_np(ws)
    mask_np = create_attn_mask_np(H, W, ws, shift)     # (nW, N, N)
    mask_j = jnp.asarray(mask_np)
    aux = make_strip_constants(ws, W)
    prepped = [prepare_block_params(p, nH, ws, H, W, rel_idx, mask_np) for p in blocks]
    attention = None
    for i, p in enumerate(prepped):
        ss = 0 if i % 2 == 0 else shift
        if use_pallas:
            x, attention = swin_block_pallas(x, H, W, p, aux, ss, ws, nH)
        else:
            x, attention = swin_block_ref(x, H, W, p, ss, ws, nH, mask_j)
    return x, H, W, attention    # downsample=None


# ----------------------------------------------------------------------------
# deterministic parameter init
# ----------------------------------------------------------------------------
def init_block_params(key, dim, num_heads, ws, mlp_ratio=4.0):
    hidden = int(dim * mlp_ratio)
    ks = jax.random.split(key, 10)
    n = lambda k, s, sc=0.02: sc * jax.random.normal(k, s, jnp.float32)
    return dict(
        ln1_g=jnp.ones((1, dim), jnp.float32), ln1_b=jnp.zeros((1, dim), jnp.float32),
        w_qkv=n(ks[0], (dim, 3 * dim)), b_qkv=n(ks[1], (1, 3 * dim)),
        w_proj=n(ks[2], (dim, dim)), b_proj=n(ks[3], (1, dim)),
        rel_table=n(ks[4], ((2 * ws - 1) ** 2, num_heads)),
        ln2_g=jnp.ones((1, dim), jnp.float32), ln2_b=jnp.zeros((1, dim), jnp.float32),
        w1=n(ks[5], (dim, hidden)), b1=n(ks[6], (1, hidden)),
        w2=n(ks[7], (hidden, dim)), b2=n(ks[8], (1, dim)),
    )


if __name__ == "__main__":
    B, H, W = 2, 8, 8
    dim, num_heads, window_size, depth = 32, 4, 4, 2

    key = jax.random.PRNGKey(0)
    kx, *kb = jax.random.split(key, depth + 1)
    x = jax.random.normal(kx, (B, H * W, dim), jnp.float32)
    blocks = [init_block_params(kb[i], dim, num_heads, window_size) for i in range(depth)]

    out_k, _, _, attn_k = basic_layer_forward(x, H, W, blocks, window_size, num_heads,
                                              use_pallas=True)
    out_r, _, _, attn_r = basic_layer_forward(x, H, W, blocks, window_size, num_heads,
                                              use_pallas=False)
    jax.block_until_ready(out_k)

    assert out_k.shape == (B, H * W, dim)
    assert attn_k.shape == (B * (H // window_size) * (W // window_size),
                            window_size * window_size)
    assert float(jnp.max(jnp.abs(out_k - out_r))) < 2e-3
    assert float(jnp.max(jnp.abs(attn_k - attn_r))) < 2e-3
    print("KERNEL_OK")
</pallas_src>

<mosaic_0001>
module attributes {stable_mosaic.version = 11 : i64} {
  func.func @_swin_block_kernel(%arg0: i32, %arg1: i32, %arg2: memref<2x1x32x32xf32, #tpu.memory_space<vmem>>, %arg3: memref<1x32xf32, #tpu.memory_space<vmem>>, %arg4: memref<1x32xf32, #tpu.memory_space<vmem>>, %arg5: memref<32x96xbf16, #tpu.memory_space<vmem>>, %arg6: memref<1x96xf32, #tpu.memory_space<vmem>>, %arg7: memref<32x32xbf16, #tpu.memory_space<vmem>>, %arg8: memref<1x32xf32, #tpu.memory_space<vmem>>, %arg9: memref<1x4x32x32xf32, #tpu.memory_space<vmem>>, %arg10: memref<2x8xf32, #tpu.memory_space<vmem>>, %arg11: memref<32x16xf32, #tpu.memory_space<vmem>>, %arg12: memref<1x32xf32, #tpu.memory_space<vmem>>, %arg13: memref<1x32xf32, #tpu.memory_space<vmem>>, %arg14: memref<32x128xbf16, #tpu.memory_space<vmem>>, %arg15: memref<1x128xf32, #tpu.memory_space<vmem>>, %arg16: memref<128x32xbf16, #tpu.memory_space<vmem>>, %arg17: memref<1x32xf32, #tpu.memory_space<vmem>>, %arg18: memref<2x1x32x32xf32, #tpu.memory_space<vmem>>, %arg19: memref<2x1x2x16xf32, #tpu.memory_space<vmem>>, %arg20: memref<2x32x32xf32, #tpu.memory_space<vmem>>) attributes {dimension_semantics = [#tpu.dimension_semantics<parallel>, #tpu.dimension_semantics<parallel>], iteration_bounds = array<i64: 2, 1>, scalar_prefetch = 0 : i64, scratch_operands = 1 : i64, tpu.core_type = #tpu.core_type<tc>, window_params = [{transform_indices = @transform_0, window_bounds = array<i64: 2, 1, 32, 32>}, {pipeline_mode = #tpu.pipeline_mode<synchronous>, transform_indices = @transform_1, window_bounds = array<i64: 1, 32>}, {pipeline_mode = #tpu.pipeline_mode<synchronous>, transform_indices = @transform_2, window_bounds = array<i64: 1, 32>}, {pipeline_mode = #tpu.pipeline_mode<synchronous>, transform_indices = @transform_3, window_bounds = array<i64: 32, 96>}, {pipeline_mode = #tpu.pipeline_mode<synchronous>, transform_indices = @transform_4, window_bounds = array<i64: 1, 96>}, {pipeline_mode = #tpu.pipeline_mode<synchronous>, transform_indices = @transform_5, window_bounds = array<i64: 32, 32>}, {pipeline_mode = #tpu.pipeline_mode<synchronous>, transform_indices = @transform_6, window_bounds = array<i64: 1, 32>}, {pipeline_mode = #tpu.pipeline_mode<synchronous>, transform_indices = @transform_7, window_bounds = array<i64: 1, 4, 32, 32>}, {pipeline_mode = #tpu.pipeline_mode<synchronous>, transform_indices = @transform_8, window_bounds = array<i64: 2, 8>}, {pipeline_mode = #tpu.pipeline_mode<synchronous>, transform_indices = @transform_9, window_bounds = array<i64: 32, 16>}, {pipeline_mode = #tpu.pipeline_mode<synchronous>, transform_indices = @transform_10, window_bounds = array<i64: 1, 32>}, {pipeline_mode = #tpu.pipeline_mode<synchronous>, transform_indices = @transform_11, window_bounds = array<i64: 1, 32>}, {pipeline_mode = #tpu.pipeline_mode<synchronous>, transform_indices = @transform_12, window_bounds = array<i64: 32, 128>}, {pipeline_mode = #tpu.pipeline_mode<synchronous>, transform_indices = @transform_13, window_bounds = array<i64: 1, 128>}, {pipeline_mode = #tpu.pipeline_mode<synchronous>, transform_indices = @transform_14, window_bounds = array<i64: 128, 32>}, {pipeline_mode = #tpu.pipeline_mode<synchronous>, transform_indices = @transform_15, window_bounds = array<i64: 1, 32>}, {transform_indices = @transform_16, window_bounds = array<i64: 2, 1, 32, 32>}, {transform_indices = @transform_17, window_bounds = array<i64: 2, 1, 2, 16>}]} {
    %c0 = arith.constant 0 : index
    %c0_0 = arith.constant 0 : index
    %c0_1 = arith.constant 0 : index
    %c0_2 = arith.constant 0 : index
    %0 = vector.load %arg2[%c0, %c0_0, %c0_1, %c0_2] : memref<2x1x32x32xf32, #tpu.memory_space<vmem>>, vector<2x1x32x32xf32>
    %1 = vector.shape_cast %0 : vector<2x1x32x32xf32> to vector<64x32xf32>
    %cst = arith.constant dense<0.000000e+00> : vector<64xf32>
    %2 = vector.multi_reduction <add>, %1, %cst [1] : vector<64x32xf32> to vector<64xf32>
    %3 = vector.shape_cast %2 : vector<64xf32> to vector<64x1xf32>
    %cst_3 = arith.constant 3.200000e+01 : f32
    %4 = vector.broadcast %cst_3 : f32 to vector<64x1xf32>
    %5 = arith.divf %3, %4 : vector<64x1xf32>
    %6 = vector.broadcast %5 : vector<64x1xf32> to vector<64x32xf32>
    %7 = arith.subf %1, %6 : vector<64x32xf32>
    %8 = arith.mulf %7, %7 : vector<64x32xf32>
    %cst_4 = arith.constant dense<0.000000e+00> : vector<64xf32>
    %9 = vector.multi_reduction <add>, %8, %cst_4 [1] : vector<64x32xf32> to vector<64xf32>
    %10 = vector.shape_cast %9 : vector<64xf32> to vector<64x1xf32>
    %cst_5 = arith.constant 3.200000e+01 : f32
    %11 = vector.broadcast %cst_5 : f32 to vector<64x1xf32>
    %12 = arith.divf %10, %11 : vector<64x1xf32>
    %13 = vector.broadcast %5 : vector<64x1xf32> to vector<64x32xf32>
    %14 = arith.subf %1, %13 : vector<64x32xf32>
    %cst_6 = arith.constant 9.99999974E-6 : f32
    %15 = vector.broadcast %cst_6 : f32 to vector<64x1xf32>
    %16 = arith.addf %12, %15 : vector<64x1xf32>
    %17 = math.rsqrt %16 : vector<64x1xf32>
    %18 = vector.broadcast %17 : vector<64x1xf32> to vector<64x32xf32>
    %19 = arith.mulf %14, %18 : vector<64x32xf32>
    %c0_7 = arith.constant 0 : index
    %c0_8 = arith.constant 0 : index
    %20 = vector.load %arg3[%c0_7, %c0_8] : memref<1x32xf32, #tpu.memory_space<vmem>>, vector<1x32xf32>
    %21 = vector.broadcast %20 : vector<1x32xf32> to vector<64x32xf32>
    %22 = arith.mulf %19, %21 : vector<64x32xf32>
    %c0_9 = arith.constant 0 : index
    %c0_10 = arith.constant 0 : index
    %23 = vector.load %arg4[%c0_9, %c0_10] : memref<1x32xf32, #tpu.memory_space<vmem>>, vector<1x32xf32>
    %24 = vector.broadcast %23 : vector<1x32xf32> to vector<64x32xf32>
    %25 = arith.addf %22, %24 : vector<64x32xf32>
    %26 = arith.truncf %25 : vector<64x32xf32> to vector<64x32xbf16>
    %c0_11 = arith.constant 0 : index
    %c0_12 = arith.constant 0 : index
    %27 = vector.load %arg5[%c0_11, %c0_12] : memref<32x96xbf16, #tpu.memory_space<vmem>>, vector<32x96xbf16>
    %cst_13 = arith.constant dense<0.000000e+00> : vector<64x96xf32>
    %28 = tpu.matmul %26, %27, %cst_13 {dimension_numbers = #tpu.dot_dimension_numbers<[1], [0], [0], [1], [0, 0, 1, 1], [], []>} : vector<64x32xbf16>, vector<32x96xbf16>, vector<64x96xf32> -> vector<64x96xf32>
    %c0_14 = arith.constant 0 : index
    %c0_15 = arith.constant 0 : index
    %29 = vector.load %arg6[%c0_14, %c0_15] : memref<1x96xf32, #tpu.memory_space<vmem>>, vector<1x96xf32>
    %30 = vector.broadcast %29 : vector<1x96xf32> to vector<64x96xf32>
    %31 = arith.addf %28, %30 : vector<64x96xf32>
    %32 = vector.extract_strided_slice %31 {offsets = [0, 0], sizes = [64, 32], strides = [1, 1]} : vector<64x96xf32> to vector<64x32xf32>
    %33 = vector.shape_cast %32 : vector<64x32xf32> to vector<2x32x32xf32>
    %34 = vector.extract_strided_slice %31 {offsets = [0, 32], sizes = [64, 32], strides = [1, 1]} : vector<64x96xf32> to vector<64x32xf32>
    %35 = vector.shape_cast %34 : vector<64x32xf32> to vector<2x32x32xf32>
    %36 = vector.extract_strided_slice %31 {offsets = [0, 64], sizes = [64, 32], strides = [1, 1]} : vector<64x96xf32> to vector<64x32xf32>
    %37 = vector.shape_cast %36 : vector<64x32xf32> to vector<2x32x32xf32>
    %38 = arith.truncf %37 : vector<2x32x32xf32> to vector<2x32x32xbf16>
    %cst_16 = arith.constant 0.000000e+00 : f32
    %39 = vector.broadcast %cst_16 : f32 to vector<2x8x32xf32>
    %40 = vector.extract_strided_slice %33 {offsets = [0, 0, 0], sizes = [2, 32, 8], strides = [1, 1, 1]} : vector<2x32x32xf32> to vector<2x32x8xf32>
    %41 = arith.truncf %40 : vector<2x32x8xf32> to vector<2x32x8xbf16>
    %42 = vector.extract_strided_slice %35 {offsets = [0, 0, 0], sizes = [2, 32, 8], strides = [1, 1, 1]} : vector<2x32x32xf32> to vector<2x32x8xf32>
    %43 = arith.truncf %42 : vector<2x32x8xf32> to vector<2x32x8xbf16>
    %44 = vector.extract_strided_slice %38 {offsets = [0, 0, 0], sizes = [2, 32, 8], strides = [1, 1, 1]} : vector<2x32x32xbf16> to vector<2x32x8xbf16>
    "tpu.trace_start"() <{level = 10 : i32, message = "bqd,bkd->bqk"}> : () -> ()
    %cst_17 = arith.constant dense<0.000000e+00> : vector<2x32x32xf32>
    %45 = tpu.matmul %41, %43, %cst_17 {dimension_numbers = #tpu.dot_dimension_numbers<[2], [2], [1], [1], [0, 0, 0, 1, 1, 1], [0], [0]>} : vector<2x32x8xbf16>, vector<2x32x8xbf16>, vector<2x32x32xf32> -> vector<2x32x32xf32>
    "tpu.trace_stop"() : () -> ()
    %c0_18 = arith.constant 0 : index
    %c0_19 = arith.constant 0 : index
    %c0_20 = arith.constant 0 : index
    %c0_21 = arith.constant 0 : index
    %46 = vector.load %arg9[%c0_18, %c0_19, %c0_20, %c0_21] : memref<1x4x32x32xf32, #tpu.memory_space<vmem>>, vector<1x1x32x32xf32>
    %47 = vector.shape_cast %46 : vector<1x1x32x32xf32> to vector<32x32xf32>
    %48 = vector.shape_cast %47 : vector<32x32xf32> to vector<1x32x32xf32>
    %49 = vector.broadcast %48 : vector<1x32x32xf32> to vector<2x32x32xf32>
    %50 = arith.addf %45, %49 : vector<2x32x32xf32>
    %cst_22 = arith.constant dense<0xFF800000> : vector<2x32xf32>
    %51 = vector.multi_reduction <maximumf>, %50, %cst_22 [2] : vector<2x32x32xf32> to vector<2x32xf32>
    %52 = vector.shape_cast %51 : vector<2x32xf32> to vector<2x32x1xf32>
    %53 = vector.broadcast %52 : vector<2x32x1xf32> to vector<2x32x32xf32>
    %54 = arith.subf %50, %53 : vector<2x32x32xf32>
    %55 = math.exp %54 : vector<2x32x32xf32>
    %cst_23 = arith.constant dense<0.000000e+00> : vector<2x32xf32>
    %56 = vector.multi_reduction <add>, %55, %cst_23 [2] : vector<2x32x32xf32> to vector<2x32xf32>
    %57 = vector.shape_cast %56 : vector<2x32xf32> to vector<2x32x1xf32>
    %58 = tpu.reciprocal %57 {approx = true} : vector<2x32x1xf32> -> vector<2x32x1xf32>
    %59 = vector.broadcast %58 : vector<2x32x1xf32> to vector<2x32x32xf32>
    %60 = arith.mulf %55, %59 : vector<2x32x32xf32>
    %61 = vector.extract_strided_slice %60 {offsets = [0, 0, 0], sizes = [2, 8, 32], strides = [1, 1, 1]} : vector<2x32x32xf32> to vector<2x8x32xf32>
    %62 = arith.addf %39, %61 : vector<2x8x32xf32>
    %63 = arith.truncf %60 : vector<2x32x32xf32> to vector<2x32x32xbf16>
    "tpu.trace_start"() <{level = 10 : i32, message = "bqk,bkd->bqd"}> : () -> ()
    %cst_24 = arith.constant dense<0.000000e+00> : vector<2x32x8xf32>
    %64 = tpu.matmul %63, %44, %cst_24 {dimension_numbers = #tpu.dot_dimension_numbers<[2], [1], [1], [2], [0, 0, 0, 1, 1, 2], [0], [0]>} : vector<2x32x32xbf16>, vector<2x32x8xbf16>, vector<2x32x8xf32> -> vector<2x32x8xf32>
    "tpu.trace_stop"() : () -> ()
    %c0_25 = arith.constant 0 : index
    %c0_26 = arith.constant 0 : index
    %c0_27 = arith.constant 0 : index
    %65 = vector.load %arg20[%c0_25, %c0_26, %c0_27] : memref<2x32x32xf32, #tpu.memory_space<vmem>>, vector<2x32x8xf32>
    tpu.vector_store %arg20[%c0_25, %c0_26, %c0_27], %64 {strides = array<i32>} : memref<2x32x32xf32, #tpu.memory_space<vmem>>, vector<2x32x8xf32>,
    %66 = vector.extract_strided_slice %33 {offsets = [0, 0, 8], sizes = [2, 32, 8], strides = [1, 1, 1]} : vector<2x32x32xf32> to vector<2x32x8xf32>
    %67 = arith.truncf %66 : vector<2x32x8xf32> to vector<2x32x8xbf16>
    %68 = vector.extract_strided_slice %35 {offsets = [0, 0, 8], sizes = [2, 32, 8], strides = [1, 1, 1]} : vector<2x32x32xf32> to vector<2x32x8xf32>
    %69 = arith.truncf %68 : vector<2x32x8xf32> to vector<2x32x8xbf16>
    %70 = vector.extract_strided_slice %38 {offsets = [0, 0, 8], sizes = [2, 32, 8], strides = [1, 1, 1]} : vector<2x32x32xbf16> to vector<2x32x8xbf16>
    "tpu.trace_start"() <{level = 10 : i32, message = "bqd,bkd->bqk"}> : () -> ()
    %cst_28 = arith.constant dense<0.000000e+00> : vector<2x32x32xf32>
    %71 = tpu.matmul %67, %69, %cst_28 {dimension_numbers = #tpu.dot_dimension_numbers<[2], [2], [1], [1], [0, 0, 0, 1, 1, 1], [0], [0]>} : vector<2x32x8xbf16>, vector<2x32x8xbf16>, vector<2x32x32xf32> -> vector<2x32x32xf32>
    "tpu.trace_stop"() : () -> ()
    %c0_29 = arith.constant 0 : index
    %c1 = arith.constant 1 : index
    %c0_30 = arith.constant 0 : index
    %c0_31 = arith.constant 0 : index
    %72 = vector.load %arg9[%c0_29, %c1, %c0_30, %c0_31] : memref<1x4x32x32xf32, #tpu.memory_space<vmem>>, vector<1x1x32x32xf32>
    %73 = vector.shape_cast %72 : vector<1x1x32x32xf32> to vector<32x32xf32>
    %74 = vector.shape_cast %73 : vector<32x32xf32> to vector<1x32x32xf32>
    %75 = vector.broadcast %74 : vector<1x32x32xf32> to vector<2x32x32xf32>
    %76 = arith.addf %71, %75 : vector<2x32x32xf32>
    %cst_32 = arith.constant dense<0xFF800000> : vector<2x32xf32>
    %77 = vector.multi_reduction <maximumf>, %76, %cst_32 [2] : vector<2x32x32xf32> to vector<2x32xf32>
    %78 = vector.shape_cast %77 : vector<2x32xf32> to vector<2x32x1xf32>
    %79 = vector.broadcast %78 : vector<2x32x1xf32> to vector<2x32x32xf32>
    %80 = arith.subf %76, %79 : vector<2x32x32xf32>
    %81 = math.exp %80 : vector<2x32x32xf32>
    %cst_33 = arith.constant dense<0.000000e+00> : vector<2x32xf32>
    %82 = vector.multi_reduction <add>, %81, %cst_33 [2] : vector<2x32x32xf32> to vector<2x32xf32>
    %83 = vector.shape_cast %82 : vector<2x32xf32> to vector<2x32x1xf32>
    %84 = tpu.reciprocal %83 {approx = true} : vector<2x32x1xf32> -> vector<2x32x1xf32>
    %85 = vector.broadcast %84 : vector<2x32x1xf32> to vector<2x32x32xf32>
    %86 = arith.mulf %81, %85 : vector<2x32x32xf32>
    %87 = vector.extract_strided_slice %86 {offsets = [0, 0, 0], sizes = [2, 8, 32], strides = [1, 1, 1]} : vector<2x32x32xf32> to vector<2x8x32xf32>
    %88 = arith.addf %62, %87 : vector<2x8x32xf32>
    %89 = arith.truncf %86 : vector<2x32x32xf32> to vector<2x32x32xbf16>
    "tpu.trace_start"() <{level = 10 : i32, message = "bqk,bkd->bqd"}> : () -> ()
    %cst_34 = arith.constant dense<0.000000e+00> : vector<2x32x8xf32>
    %90 = tpu.matmul %89, %70, %cst_34 {dimension_numbers = #tpu.dot_dimension_numbers<[2], [1], [1], [2], [0, 0, 0, 1, 1, 2], [0], [0]>} : vector<2x32x32xbf16>, vector<2x32x8xbf16>, vector<2x32x8xf32> -> vector<2x32x8xf32>
    "tpu.trace_stop"() : () -> ()
    %c0_35 = arith.constant 0 : index
    %c0_36 = arith.constant 0 : index
    %c8 = arith.constant 8 : index
    %91 = vector.load %arg20[%c0_35, %c0_36, %c8] : memref<2x32x32xf32, #tpu.memory_space<vmem>>, vector<2x32x8xf32>
    tpu.vector_store %arg20[%c0_35, %c0_36, %c8], %90 {strides = array<i32>} : memref<2x32x32xf32, #tpu.memory_space<vmem>>, vector<2x32x8xf32>,
    %92 = vector.extract_strided_slice %33 {offsets = [0, 0, 16], sizes = [2, 32, 8], strides = [1, 1, 1]} : vector<2x32x32xf32> to vector<2x32x8xf32>
    %93 = arith.truncf %92 : vector<2x32x8xf32> to vector<2x32x8xbf16>
    %94 = vector.extract_strided_slice %35 {offsets = [0, 0, 16], sizes = [2, 32, 8], strides = [1, 1, 1]} : vector<2x32x32xf32> to vector<2x32x8xf32>
    %95 = arith.truncf %94 : vector<2x32x8xf32> to vector<2x32x8xbf16>
    %96 = vector.extract_strided_slice %38 {offsets = [0, 0, 16], sizes = [2, 32, 8], strides = [1, 1, 1]} : vector<2x32x32xbf16> to vector<2x32x8xbf16>
    "tpu.trace_start"() <{level = 10 : i32, message = "bqd,bkd->bqk"}> : () -> ()
    %cst_37 = arith.constant dense<0.000000e+00> : vector<2x32x32xf32>
    %97 = tpu.matmul %93, %95, %cst_37 {dimension_numbers = #tpu.dot_dimension_numbers<[2], [2], [1], [1], [0, 0, 0, 1, 1, 1], [0], [0]>} : vector<2x32x8xbf16>, vector<2x32x8xbf16>, vector<2x32x32xf32> -> vector<2x32x32xf32>
    "tpu.trace_stop"() : () -> ()
    %c0_38 = arith.constant 0 : index
    %c2 = arith.constant 2 : index
    %c0_39 = arith.constant 0 : index
    %c0_40 = arith.constant 0 : index
    %98 = vector.load %arg9[%c0_38, %c2, %c0_39, %c0_40] : memref<1x4x32x32xf32, #tpu.memory_space<vmem>>, vector<1x1x32x32xf32>
    %99 = vector.shape_cast %98 : vector<1x1x32x32xf32> to vector<32x32xf32>
    %100 = vector.shape_cast %99 : vector<32x32xf32> to vector<1x32x32xf32>
    %101 = vector.broadcast %100 : vector<1x32x32xf32> to vector<2x32x32xf32>
    %102 = arith.addf %97, %101 : vector<2x32x32xf32>
    %cst_41 = arith.constant dense<0xFF800000> : vector<2x32xf32>
    %103 = vector.multi_reduction <maximumf>, %102, %cst_41 [2] : vector<2x32x32xf32> to vector<2x32xf32>
    %104 = vector.shape_cast %103 : vector<2x32xf32> to vector<2x32x1xf32>
    %105 = vector.broadcast %104 : vector<2x32x1xf32> to vector<2x32x32xf32>
    %106 = arith.subf %102, %105 : vector<2x32x32xf32>
    %107 = math.exp %106 : vector<2x32x32xf32>
    %cst_42 = arith.constant dense<0.000000e+00> : vector<2x32xf32>
    %108 = vector.multi_reduction <add>, %107, %cst_42 [2] : vector<2x32x32xf32> to vector<2x32xf32>
    %109 = vector.shape_cast %108 : vector<2x32xf32> to vector<2x32x1xf32>
    %110 = tpu.reciprocal %109 {approx = true} : vector<2x32x1xf32> -> vector<2x32x1xf32>
    %111 = vector.broadcast %110 : vector<2x32x1xf32> to vector<2x32x32xf32>
    %112 = arith.mulf %107, %111 : vector<2x32x32xf32>
    %113 = vector.extract_strided_slice %112 {offsets = [0, 0, 0], sizes = [2, 8, 32], strides = [1, 1, 1]} : vector<2x32x32xf32> to vector<2x8x32xf32>
    %114 = arith.addf %88, %113 : vector<2x8x32xf32>
    %115 = arith.truncf %112 : vector<2x32x32xf32> to vector<2x32x32xbf16>
    "tpu.trace_start"() <{level = 10 : i32, message = "bqk,bkd->bqd"}> : () -> ()
    %cst_43 = arith.constant dense<0.000000e+00> : vector<2x32x8xf32>
    %116 = tpu.matmul %115, %96, %cst_43 {dimension_numbers = #tpu.dot_dimension_numbers<[2], [1], [1], [2], [0, 0, 0, 1, 1, 2], [0], [0]>} : vector<2x32x32xbf16>, vector<2x32x8xbf16>, vector<2x32x8xf32> -> vector<2x32x8xf32>
    "tpu.trace_stop"() : () -> ()
    %c0_44 = arith.constant 0 : index
    %c0_45 = arith.constant 0 : index
    %c16 = arith.constant 16 : index
    %117 = vector.load %arg20[%c0_44, %c0_45, %c16] : memref<2x32x32xf32, #tpu.memory_space<vmem>>, vector<2x32x8xf32>
    tpu.vector_store %arg20[%c0_44, %c0_45, %c16], %116 {strides = array<i32>} : memref<2x32x32xf32, #tpu.memory_space<vmem>>, vector<2x32x8xf32>,
    %118 = vector.extract_strided_slice %33 {offsets = [0, 0, 24], sizes = [2, 32, 8], strides = [1, 1, 1]} : vector<2x32x32xf32> to vector<2x32x8xf32>
    %119 = arith.truncf %118 : vector<2x32x8xf32> to vector<2x32x8xbf16>
    %120 = vector.extract_strided_slice %35 {offsets = [0, 0, 24], sizes = [2, 32, 8], strides = [1, 1, 1]} : vector<2x32x32xf32> to vector<2x32x8xf32>
    %121 = arith.truncf %120 : vector<2x32x8xf32> to vector<2x32x8xbf16>
    %122 = vector.extract_strided_slice %38 {offsets = [0, 0, 24], sizes = [2, 32, 8], strides = [1, 1, 1]} : vector<2x32x32xbf16> to vector<2x32x8xbf16>
    "tpu.trace_start"() <{level = 10 : i32, message = "bqd,bkd->bqk"}> : () -> ()
    %cst_46 = arith.constant dense<0.000000e+00> : vector<2x32x32xf32>
    %123 = tpu.matmul %119, %121, %cst_46 {dimension_numbers = #tpu.dot_dimension_numbers<[2], [2], [1], [1], [0, 0, 0, 1, 1, 1], [0], [0]>} : vector<2x32x8xbf16>, vector<2x32x8xbf16>, vector<2x32x32xf32> -> vector<2x32x32xf32>
    "tpu.trace_stop"() : () -> ()
    %c0_47 = arith.constant 0 : index
    %c3 = arith.constant 3 : index
    %c0_48 = arith.constant 0 : index
    %c0_49 = arith.constant 0 : index
    %124 = vector.load %arg9[%c0_47, %c3, %c0_48, %c0_49] : memref<1x4x32x32xf32, #tpu.memory_space<vmem>>, vector<1x1x32x32xf32>
    %125 = vector.shape_cast %124 : vector<1x1x32x32xf32> to vector<32x32xf32>
    %126 = vector.shape_cast %125 : vector<32x32xf32> to vector<1x32x32xf32>
    %127 = vector.broadcast %126 : vector<1x32x32xf32> to vector<2x32x32xf32>
    %128 = arith.addf %123, %127 : vector<2x32x32xf32>
    %cst_50 = arith.constant dense<0xFF800000> : vector<2x32xf32>
    %129 = vector.multi_reduction <maximumf>, %128, %cst_50 [2] : vector<2x32x32xf32> to vector<2x32xf32>
    %130 = vector.shape_cast %129 : vector<2x32xf32> to vector<2x32x1xf32>
    %131 = vector.broadcast %130 : vector<2x32x1xf32> to vector<2x32x32xf32>
    %132 = arith.subf %128, %131 : vector<2x32x32xf32>
    %133 = math.exp %132 : vector<2x32x32xf32>
    %cst_51 = arith.constant dense<0.000000e+00> : vector<2x32xf32>
    %134 = vector.multi_reduction <add>, %133, %cst_51 [2] : vector<2x32x32xf32> to vector<2x32xf32>
    %135 = vector.shape_cast %134 : vector<2x32xf32> to vector<2x32x1xf32>
    %136 = tpu.reciprocal %135 {approx = true} : vector<2x32x1xf32> -> vector<2x32x1xf32>
    %137 = vector.broadcast %136 : vector<2x32x1xf32> to vector<2x32x32xf32>
    %138 = arith.mulf %133, %137 : vector<2x32x32xf32>
    %139 = vector.extract_strided_slice %138 {offsets = [0, 0, 0], sizes = [2, 8, 32], strides = [1, 1, 1]} : vector<2x32x32xf32> to vector<2x8x32xf32>
    %140 = arith.addf %114, %139 : vector<2x8x32xf32>
    %141 = arith.truncf %138 : vector<2x32x32xf32> to vector<2x32x32xbf16>
    "tpu.trace_start"() <{level = 10 : i32, message = "bqk,bkd->bqd"}> : () -> ()
    %cst_52 = arith.constant dense<0.000000e+00> : vector<2x32x8xf32>
    %142 = tpu.matmul %141, %122, %cst_52 {dimension_numbers = #tpu.dot_dimension_numbers<[2], [1], [1], [2], [0, 0, 0, 1, 1, 2], [0], [0]>} : vector<2x32x32xbf16>, vector<2x32x8xbf16>, vector<2x32x8xf32> -> vector<2x32x8xf32>
    "tpu.trace_stop"() : () -> ()
    %c0_53 = arith.constant 0 : index
    %c0_54 = arith.constant 0 : index
    %c24 = arith.constant 24 : index
    %143 = vector.load %arg20[%c0_53, %c0_54, %c24] : memref<2x32x32xf32, #tpu.memory_space<vmem>>, vector<2x32x8xf32>
    tpu.vector_store %arg20[%c0_53, %c0_54, %c24], %142 {strides = array<i32>} : memref<2x32x32xf32, #tpu.memory_space<vmem>>, vector<2x32x8xf32>,
    %c0_55 = arith.constant 0 : index
    %c0_56 = arith.constant 0 : index
    %c0_57 = arith.constant 0 : index
    %144 = vector.load %arg20[%c0_55, %c0_56, %c0_57] : memref<2x32x32xf32, #tpu.memory_space<vmem>>, vector<2x32x32xf32>
    %145 = vector.shape_cast %144 : vector<2x32x32xf32> to vector<64x32xf32>
    %146 = arith.truncf %145 : vector<64x32xf32> to vector<64x32xbf16>
    %c0_58 = arith.constant 0 : index
    %c0_59 = arith.constant 0 : index
    %147 = vector.load %arg7[%c0_58, %c0_59] : memref<32x32xbf16, #tpu.memory_space<vmem>>, vector<32x32xbf16>
    %cst_60 = arith.constant dense<0.000000e+00> : vector<64x32xf32>
    %148 = tpu.matmul %146, %147, %cst_60 {dimension_numbers = #tpu.dot_dimension_numbers<[1], [0], [0], [1], [0, 0, 1, 1], [], []>} : vector<64x32xbf16>, vector<32x32xbf16>, vector<64x32xf32> -> vector<64x32xf32>
    %c0_61 = arith.constant 0 : index
    %c0_62 = arith.constant 0 : index
    %149 = vector.load %arg8[%c0_61, %c0_62] : memref<1x32xf32, #tpu.memory_space<vmem>>, vector<1x32xf32>
    %150 = vector.broadcast %149 : vector<1x32xf32> to vector<64x32xf32>
    %151 = arith.addf %148, %150 : vector<64x32xf32>
    %152 = arith.addf %1, %151 : vector<64x32xf32>
    %cst_63 = arith.constant dense<0.000000e+00> : vector<64xf32>
    %153 = vector.multi_reduction <add>, %152, %cst_63 [1] : vector<64x32xf32> to vector<64xf32>
    %154 = vector.shape_cast %153 : vector<64xf32> to vector<64x1xf32>
    %cst_64 = arith.constant 3.200000e+01 : f32
    %155 = vector.broadcast %cst_64 : f32 to vector<64x1xf32>
    %156 = arith.divf %154, %155 : vector<64x1xf32>
    %157 = vector.broadcast %156 : vector<64x1xf32> to vector<64x32xf32>
    %158 = arith.subf %152, %157 : vector<64x32xf32>
    %159 = arith.mulf %158, %158 : vector<64x32xf32>
    %cst_65 = arith.constant dense<0.000000e+00> : vector<64xf32>
    %160 = vector.multi_reduction <add>, %159, %cst_65 [1] : vector<64x32xf32> to vector<64xf32>
    %161 = vector.shape_cast %160 : vector<64xf32> to vector<64x1xf32>
    %cst_66 = arith.constant 3.200000e+01 : f32
    %162 = vector.broadcast %cst_66 : f32 to vector<64x1xf32>
    %163 = arith.divf %161, %162 : vector<64x1xf32>
    %164 = vector.broadcast %156 : vector<64x1xf32> to vector<64x32xf32>
    %165 = arith.subf %152, %164 : vector<64x32xf32>
    %cst_67 = arith.constant 9.99999974E-6 : f32
    %166 = vector.broadcast %cst_67 : f32 to vector<64x1xf32>
    %167 = arith.addf %163, %166 : vector<64x1xf32>
    %168 = math.rsqrt %167 : vector<64x1xf32>
    %169 = vector.broadcast %168 : vector<64x1xf32> to vector<64x32xf32>
    %170 = arith.mulf %165, %169 : vector<64x32xf32>
    %c0_68 = arith.constant 0 : index
    %c0_69 = arith.constant 0 : index
    %171 = vector.load %arg12[%c0_68, %c0_69] : memref<1x32xf32, #tpu.memory_space<vmem>>, vector<1x32xf32>
    %172 = vector.broadcast %171 : vector<1x32xf32> to vector<64x32xf32>
    %173 = arith.mulf %170, %172 : vector<64x32xf32>
    %c0_70 = arith.constant 0 : index
    %c0_71 = arith.constant 0 : index
    %174 = vector.load %arg13[%c0_70, %c0_71] : memref<1x32xf32, #tpu.memory_space<vmem>>, vector<1x32xf32>
    %175 = vector.broadcast %174 : vector<1x32xf32> to vector<64x32xf32>
    %176 = arith.addf %173, %175 : vector<64x32xf32>
    %177 = arith.truncf %176 : vector<64x32xf32> to vector<64x32xbf16>
    %c0_72 = arith.constant 0 : index
    %c0_73 = arith.constant 0 : index
    %178 = vector.load %arg14[%c0_72, %c0_73] : memref<32x128xbf16, #tpu.memory_space<vmem>>, vector<32x128xbf16>
    %cst_74 = arith.constant dense<0.000000e+00> : vector<64x128xf32>
    %179 = tpu.matmul %177, %178, %cst_74 {dimension_numbers = #tpu.dot_dimension_numbers<[1], [0], [0], [1], [0, 0, 1, 1], [], []>} : vector<64x32xbf16>, vector<32x128xbf16>, vector<64x128xf32> -> vector<64x128xf32>
    %c0_75 = arith.constant 0 : index
    %c0_76 = arith.constant 0 : index
    %180 = vector.load %arg15[%c0_75, %c0_76] : memref<1x128xf32, #tpu.memory_space<vmem>>, vector<1x128xf32>
    %181 = vector.broadcast %180 : vector<1x128xf32> to vector<64x128xf32>
    %182 = arith.addf %179, %181 : vector<64x128xf32>
    %cst_77 = arith.constant 5.000000e-01 : f32
    %183 = vector.broadcast %cst_77 : f32 to vector<64x128xf32>
    %184 = arith.mulf %183, %182 : vector<64x128xf32>
    %cst_78 = arith.constant 4.471500e-02 : f32
    %185 = vector.broadcast %cst_78 : f32 to vector<64x128xf32>
    %186 = arith.mulf %185, %182 : vector<64x128xf32>
    %187 = arith.mulf %186, %182 : vector<64x128xf32>
    %188 = arith.mulf %187, %182 : vector<64x128xf32>
    %189 = arith.addf %182, %188 : vector<64x128xf32>
    %cst_79 = arith.constant 0.797884583 : f32
    %190 = vector.broadcast %cst_79 : f32 to vector<64x128xf32>
    %191 = arith.mulf %190, %189 : vector<64x128xf32>
    %192 = math.tanh %191 : vector<64x128xf32>
    %cst_80 = arith.constant 1.000000e+00 : f32
    %193 = vector.broadcast %cst_80 : f32 to vector<64x128xf32>
    %194 = arith.addf %193, %192 : vector<64x128xf32>
    %195 = arith.mulf %184, %194 : vector<64x128xf32>
    %196 = arith.truncf %195 : vector<64x128xf32> to vector<64x128xbf16>
    %c0_81 = arith.constant 0 : index
    %c0_82 = arith.constant 0 : index
    %197 = vector.load %arg16[%c0_81, %c0_82] : memref<128x32xbf16, #tpu.memory_space<vmem>>, vector<128x32xbf16>
    %cst_83 = arith.constant dense<0.000000e+00> : vector<64x32xf32>
    %198 = tpu.matmul %196, %197, %cst_83 {dimension_numbers = #tpu.dot_dimension_numbers<[1], [0], [0], [1], [0, 0, 1, 1], [], []>} : vector<64x128xbf16>, vector<128x32xbf16>, vector<64x32xf32> -> vector<64x32xf32>
    %c0_84 = arith.constant 0 : index
    %c0_85 = arith.constant 0 : index
    %199 = vector.load %arg17[%c0_84, %c0_85] : memref<1x32xf32, #tpu.memory_space<vmem>>, vector<1x32xf32>
    %200 = vector.broadcast %199 : vector<1x32xf32> to vector<64x32xf32>
    %201 = arith.addf %198, %200 : vector<64x32xf32>
    %202 = arith.addf %152, %201 : vector<64x32xf32>
    %203 = vector.shape_cast %202 : vector<64x32xf32> to vector<2x1x32x32xf32>
    %c0_86 = arith.constant 0 : index
    %c0_87 = arith.constant 0 : index
    %c0_88 = arith.constant 0 : index
    %c0_89 = arith.constant 0 : index
    %204 = vector.load %arg18[%c0_86, %c0_87, %c0_88, %c0_89] : memref<2x1x32x32xf32, #tpu.memory_space<vmem>>, vector<2x1x32x32xf32>
    tpu.vector_store %arg18[%c0_86, %c0_87, %c0_88, %c0_89], %203 {strides = array<i32>} : memref<2x1x32x32xf32, #tpu.memory_space<vmem>>, vector<2x1x32x32xf32>,
    %c0_90 = arith.constant 0 : index
    %c0_91 = arith.constant 0 : index
    %205 = vector.load %arg10[%c0_90, %c0_91] : memref<2x8xf32, #tpu.memory_space<vmem>>, vector<2x8xf32>
    %206 = vector.shape_cast %205 : vector<2x8xf32> to vector<1x2x8xf32>
    %207 = vector.shape_cast %206 : vector<1x2x8xf32> to vector<1x2x8xf32>
    %208 = vector.broadcast %207 : vector<1x2x8xf32> to vector<2x2x8xf32>
    "tpu.trace_start"() <{level = 10 : i32, message = "bpw,bws->bps"}> : () -> ()
    %cst_92 = arith.constant dense<0.000000e+00> : vector<2x2x32xf32>
    %209 = tpu.matmul %208, %140, %cst_92 {dimension_numbers = #tpu.dot_dimension_numbers<[2], [1], [1], [2], [0, 0, 0, 1, 1, 2], [0], [0]>} : vector<2x2x8xf32>, vector<2x8x32xf32>, vector<2x2x32xf32> -> vector<2x2x32xf32>
    "tpu.trace_stop"() : () -> ()
    %c0_93 = arith.constant 0 : index
    %c0_94 = arith.constant 0 : index
    %210 = vector.load %arg11[%c0_93, %c0_94] : memref<32x16xf32, #tpu.memory_space<vmem>>, vector<32x16xf32>
    %211 = vector.shape_cast %210 : vector<32x16xf32> to vector<1x32x16xf32>
    %212 = vector.shape_cast %211 : vector<1x32x16xf32> to vector<1x32x16xf32>
    %213 = vector.broadcast %212 : vector<1x32x16xf32> to vector<2x32x16xf32>
    "tpu.trace_start"() <{level = 10 : i32, message = "bps,bsn->bpn"}> : () -> ()
    %cst_95 = arith.constant dense<0.000000e+00> : vector<2x2x16xf32>
    %214 = tpu.matmul %209, %213, %cst_95 {dimension_numbers = #tpu.dot_dimension_numbers<[2], [1], [1], [2], [0, 0, 0, 1, 1, 2], [0], [0]>} : vector<2x2x32xf32>, vector<2x32x16xf32>, vector<2x2x16xf32> -> vector<2x2x16xf32>
    "tpu.trace_stop"() : () -> ()
    %cst_96 = arith.constant 2.500000e-01 : f32
    %215 = vector.broadcast %cst_96 : f32 to vector<2x2x16xf32>
    %216 = arith.mulf %214, %215 : vector<2x2x16xf32>
    %217 = vector.shape_cast %216 : vector<2x2x16xf32> to vector<2x1x2x16xf32>
    %c0_97 = arith.constant 0 : index
    %c0_98 = arith.constant 0 : index
    %c0_99 = arith.constant 0 : index
    %c0_100 = arith.constant 0 : index
    %218 = vector.load %arg19[%c0_97, %c0_98, %c0_99, %c0_100] : memref<2x1x2x16xf32, #tpu.memory_space<vmem>>, vector<2x1x2x16xf32>
    tpu.vector_store %arg19[%c0_97, %c0_98, %c0_99, %c0_100], %217 {strides = array<i32>} : memref<2x1x2x16xf32, #tpu.memory_space<vmem>>, vector<2x1x2x16xf32>,
    return
  }
  func.func @transform_0(%arg0: i32, %arg1: i32) -> (i32, i32, i32, i32) {
    %c0_i32 = arith.constant 0 : i32
    %c0_i32_0 = arith.constant 0 : i32
    %c0_i32_1 = arith.constant 0 : i32
    return %arg1, %arg0, %c0_i32, %c0_i32_0 : i32, i32, i32, i32
  }
  func.func @transform_1(%arg0: i32, %arg1: i32) -> (i32, i32) {
    %c0_i32 = arith.constant 0 : i32
    %c0_i32_0 = arith.constant 0 : i32
    %c0_i32_1 = arith.constant 0 : i32
    return %c0_i32, %c0_i32_0 : i32, i32
  }
  func.func @transform_2(%arg0: i32, %arg1: i32) -> (i32, i32) {
    %c0_i32 = arith.constant 0 : i32
    %c0_i32_0 = arith.constant 0 : i32
    %c0_i32_1 = arith.constant 0 : i32
    return %c0_i32, %c0_i32_0 : i32, i32
  }
  func.func @transform_3(%arg0: i32, %arg1: i32) -> (i32, i32) {
    %c0_i32 = arith.constant 0 : i32
    %c0_i32_0 = arith.constant 0 : i32
    %c0_i32_1 = arith.constant 0 : i32
    return %c0_i32, %c0_i32_0 : i32, i32
  }
  func.func @transform_4(%arg0: i32, %arg1: i32) -> (i32, i32) {
    %c0_i32 = arith.constant 0 : i32
    %c0_i32_0 = arith.constant 0 : i32
    %c0_i32_1 = arith.constant 0 : i32
    return %c0_i32, %c0_i32_0 : i32, i32
  }
  func.func @transform_5(%arg0: i32, %arg1: i32) -> (i32, i32) {
    %c0_i32 = arith.constant 0 : i32
    %c0_i32_0 = arith.constant 0 : i32
    %c0_i32_1 = arith.constant 0 : i32
    return %c0_i32, %c0_i32_0 : i32, i32
  }
  func.func @transform_6(%arg0: i32, %arg1: i32) -> (i32, i32) {
    %c0_i32 = arith.constant 0 : i32
    %c0_i32_0 = arith.constant 0 : i32
    %c0_i32_1 = arith.constant 0 : i32
    return %c0_i32, %c0_i32_0 : i32, i32
  }
  func.func @transform_7(%arg0: i32, %arg1: i32) -> (i32, i32, i32, i32) {
    %c0_i32 = arith.constant 0 : i32
    %c0_i32_0 = arith.constant 0 : i32
    %c0_i32_1 = arith.constant 0 : i32
    %c0_i32_2 = arith.constant 0 : i32
    %c0_i32_3 = arith.constant 0 : i32
    return %c0_i32, %c0_i32_0, %c0_i32_1, %c0_i32_2 : i32, i32, i32, i32
  }
  func.func @transform_8(%arg0: i32, %arg1: i32) -> (i32, i32) {
    %c0_i32 = arith.constant 0 : i32
    %c0_i32_0 = arith.constant 0 : i32
    %c0_i32_1 = arith.constant 0 : i32
    return %c0_i32, %c0_i32_0 : i32, i32
  }
  func.func @transform_9(%arg0: i32, %arg1: i32) -> (i32, i32) {
    %c0_i32 = arith.constant 0 : i32
    %c0_i32_0 = arith.constant 0 : i32
    %c0_i32_1 = arith.constant 0 : i32
    return %c0_i32, %c0_i32_0 : i32, i32
  }
  func.func @transform_10(%arg0: i32, %arg1: i32) -> (i32, i32) {
    %c0_i32 = arith.constant 0 : i32
    %c0_i32_0 = arith.constant 0 : i32
    %c0_i32_1 = arith.constant 0 : i32
    return %c0_i32, %c0_i32_0 : i32, i32
  }
  func.func @transform_11(%arg0: i32, %arg1: i32) -> (i32, i32) {
    %c0_i32 = arith.constant 0 : i32
    %c0_i32_0 = arith.constant 0 : i32
    %c0_i32_1 = arith.constant 0 : i32
    return %c0_i32, %c0_i32_0 : i32, i32
  }
  func.func @transform_12(%arg0: i32, %arg1: i32) -> (i32, i32) {
    %c0_i32 = arith.constant 0 : i32
    %c0_i32_0 = arith.constant 0 : i32
    %c0_i32_1 = arith.constant 0 : i32
    return %c0_i32, %c0_i32_0 : i32, i32
  }
  func.func @transform_13(%arg0: i32, %arg1: i32) -> (i32, i32) {
    %c0_i32 = arith.constant 0 : i32
    %c0_i32_0 = arith.constant 0 : i32
    %c0_i32_1 = arith.constant 0 : i32
    return %c0_i32, %c0_i32_0 : i32, i32
  }
  func.func @transform_14(%arg0: i32, %arg1: i32) -> (i32, i32) {
    %c0_i32 = arith.constant 0 : i32
    %c0_i32_0 = arith.constant 0 : i32
    %c0_i32_1 = arith.constant 0 : i32
    return %c0_i32, %c0_i32_0 : i32, i32
  }
  func.func @transform_15(%arg0: i32, %arg1: i32) -> (i32, i32) {
    %c0_i32 = arith.constant 0 : i32
    %c0_i32_0 = arith.constant 0 : i32
    %c0_i32_1 = arith.constant 0 : i32
    return %c0_i32, %c0_i32_0 : i32, i32
  }
  func.func @transform_16(%arg0: i32, %arg1: i32) -> (i32, i32, i32, i32) {
    %c0_i32 = arith.constant 0 : i32
    %c0_i32_0 = arith.constant 0 : i32
    %c0_i32_1 = arith.constant 0 : i32
    return %arg1, %arg0, %c0_i32, %c0_i32_0 : i32, i32, i32, i32
  }
  func.func @transform_17(%arg0: i32, %arg1: i32) -> (i32, i32, i32, i32) {
    %c0_i32 = arith.constant 0 : i32
    %c0_i32_0 = arith.constant 0 : i32
    %c0_i32_1 = arith.constant 0 : i32
    return %arg1, %arg0, %c0_i32, %c0_i32_0 : i32, i32, i32, i32
  }
}

</mosaic_0001>

<llo_original>
// kernel: tpu_custom_call.1
$region0: #{tpu_custom_call.1}
  #allocation0 [shape = 'u32[]', space=smem, size = 0x4, offset = 0x4, fixed_abs, tag = 'smem constant byte address 0x4 - core index']
  #allocation1 [shape = 'u32[144,128]{1,0:T(1,128)}', space=vmem, size = 0x12000, scoped, tag = 'internal scratch']
  #allocation2 [shape = 'f32[2,32,32]{2,1,0:T(8,128)}', space=vmem, size = 0x8000, scoped, tag = 'scratch operand']
  #allocation21 [shape = 's32[]', space=sflag, size = 0x4, offset = 0, fixed_abs, tag = 'sflag constant byte address 0x0 - dummy sync flag']
  %s0 = inlined_call_operand.vmem [shape: f32[2,2,32,32], index: 0, kind: input, shape index: {}]
  %s1 = inlined_call_operand.hbm [shape: f32[1,32], index: 1, kind: input, shape index: {}]
  %s2 = inlined_call_operand.hbm [shape: f32[1,32], index: 2, kind: input, shape index: {}]
  %s3 = inlined_call_operand.hbm [shape: bf16[32,96], index: 3, kind: input, shape index: {}]
  %s4 = inlined_call_operand.hbm [shape: f32[1,96], index: 4, kind: input, shape index: {}]
  %s5 = inlined_call_operand.hbm [shape: bf16[32,32], index: 5, kind: input, shape index: {}]
  %s6 = inlined_call_operand.hbm [shape: f32[1,32], index: 6, kind: input, shape index: {}]
  %s7 = inlined_call_operand.hbm [shape: f32[1,4,32,32], index: 7, kind: input, shape index: {}]
  %s8 = inlined_call_operand.vmem [shape: f32[2,8], index: 8, kind: input, shape index: {}]
  %s9 = inlined_call_operand.vmem [shape: f32[32,16], index: 9, kind: input, shape index: {}]
  %s10 = inlined_call_operand.vmem [shape: f32[1,32], index: 10, kind: input, shape index: {}]
  %s11 = inlined_call_operand.vmem [shape: f32[1,32], index: 11, kind: input, shape index: {}]
  %s12 = inlined_call_operand.hbm [shape: bf16[32,128], index: 12, kind: input, shape index: {}]
  %s13 = inlined_call_operand.vmem [shape: f32[1,128], index: 13, kind: input, shape index: {}]
  %s14 = inlined_call_operand.vmem [shape: bf16[128,32], index: 14, kind: input, shape index: {}]
  %s15 = inlined_call_operand.vmem [shape: f32[1,32], index: 15, kind: input, shape index: {}]
  %s16 = inlined_call_operand.hbm [shape: f32[2,2,32,32], index: 16, kind: output, shape index: {0}]
  %s17 = inlined_call_operand.hbm [shape: f32[2,2,2,16], index: 17, kind: output, shape index: {1}]
  %18 = xla_tuple %s16, %s17
  %s19 = sld [smem:[#allocation0]]
  $region175: #{tpu_custom_call.1} parent=0
    _
  %s21 = ssub.s32 1, %s19
  %s22 = scalar_select 0, %s21, %s19
  $region1: #{tpu_custom_call.1} parent=0
    #allocation3 [shape = 'u8[65536]{0}', space=vmem, size = 0x10000, scoped, tag = 'input window, operand 0']
    #allocation4 [shape = 'u8[512]{0}', space=vmem, size = 0x400, scoped, tag = 'input window, operand 1, single buffered']
    #allocation5 [shape = 's32[2]{0}', space=sflag, size = 0x8, scoped, tag = 'scoped memory for tpu_custom_call.1']
    #allocation6 [shape = 's32[2]{0}', space=sflag, size = 0x8, scoped, tag = 'scoped memory for tpu_custom_call.1']
    #allocation7 [shape = 'u8[512]{0}', space=vmem, size = 0x400, scoped, tag = 'input window, operand 2, single buffered']
    #allocation8 [shape = 's32[1]{0}', space=sflag, size = 0x4, scoped, tag = 'scoped memory for tpu_custom_call.1']
    #allocation9 [shape = 'u8[8192]{0}', space=vmem, size = 0x2000, scoped, tag = 'input window, operand 3, single buffered']
    #allocation10 [shape = 'u8[512]{0}', space=vmem, size = 0x400, scoped, tag = 'input window, operand 4, single buffered']
    #allocation11 [shape = 's32[1]{0}', space=sflag, size = 0x4, scoped, tag = 'scoped memory for tpu_custom_call.1']
    #allocation12 [shape = 'u8[8192]{0}', space=vmem, size = 0x2000, scoped, tag = 'input window, operand 5, single buffered']
    #allocation13 [shape = 'u8[512]{0}', space=vmem, size = 0x400, scoped, tag = 'input window, operand 6, single buffered']
    #allocation14 [shape = 's32[1]{0}', space=sflag, size = 0x4, scoped, tag = 'scoped memory for tpu_custom_call.1']
    #allocation15 [shape = 'u8[65536]{0}', space=vmem, size = 0x10000, scoped, tag = 'input window, operand 7, single buffered']
    #allocation16 [shape = 'u8[8192]{0}', space=vmem, size = 0x2000, scoped, tag = 'input window, operand 12, single buffered']
    #allocation17 [shape = 's32[1]{0}', space=sflag, size = 0x4, scoped, tag = 'scoped memory for tpu_custom_call.1']
    #allocation18 [shape = 'u8[65536]{0}', space=vmem, size = 0x10000, scoped, tag = 'output window, operand 0']
    #allocation19 [shape = 'u8[4096]{0}', space=vmem, size = 0x1000, scoped, tag = 'output window, operand 1']
    #allocation20 [shape = 's32[2]{0}', space=sflag, size = 0x8, scoped, tag = 'scoped memory for tpu_custom_call.1']
    %23 = vsyncpa [#allocation5], 0
    %24 = vsyncpa [#allocation8], 0
    %25 = vsyncpa [#allocation11], 0
    %26 = vsyncpa [#allocation14], 0
    %27 = vsyncpa [#allocation17], 0
    %28 = vsyncpa [#allocation6], 0
    %s29 = scalar_lea.sflag [#allocation6], 1
    %30 = vsyncpa %s29, 0
    %31 = vsyncpa [#allocation20], 0
    %s32 = scalar_lea.sflag [#allocation20], 1
    %33 = vsyncpa %s32, 0
    loop: start=0, step=1, limit=4
    $region2: #{tpu_custom_call.1} parent=1 // loop_pre_header
      _
    $region3: #{tpu_custom_call.1} parent=1 // loop_header
      %s35 = sphi 0, %s39
      %p36 = scmp.ge.s32.totalorder %s35, 4
      %s42 = sphi 0, %s54
      %s43 = sphi 0, %s50
      %s44 = sphi 0, %s42
      %s45 = sphi 0, %s43
      %s46 = sphi 0, %s44
      %s47 = sphi 0, %s45
      %s59 = sphi 0, %s61
      %s62 = sphi 0, %s59
      %s63 = sphi 0, %s62
      %s79 = sphi 0, %s63
      %s83 = sphi 0, %s83
      %s85 = sphi 0, %s83
      %s86 = sphi 0, %s85
      %s100 = sphi 0, %s86
      %s104 = sphi 0, %s104
      %s106 = sphi 0, %s104
      %s107 = sphi 0, %s106
      %s121 = sphi 0, %s107
      %s125 = sphi 0, %s125
      %s127 = sphi 0, %s125
      %s128 = sphi 0, %s127
      %s142 = sphi 0, %s128
      %s146 = sphi 0, %s146
      %s148 = sphi 0, %s146
      %s149 = sphi 0, %s148
      %s163 = sphi 0, %s149
      %s167 = sphi 0, %s167
      %s169 = sphi 0, %s167
      %s170 = sphi 0, %s169
      %s184 = sphi 0, %s170
      %s188 = sphi 0, %s188
      %s190 = sphi 0, %s188
      %s191 = sphi 0, %s190
      %s205 = sphi 0, %s191
      %s209 = sphi 0, %s209
      %s211 = sphi 0, %s209
      %s212 = sphi 0, %s211
      %s226 = sphi 0, %s212
      %s230 = sphi 0, %s230
      %s232 = sphi 0, %s230
      %s233 = sphi 0, %s232
      %s247 = sphi 0, %s233
      %s251 = sphi 0, %s251
      %s253 = sphi 0, %s251
      %s254 = sphi 0, %s253
      %s268 = sphi 0, %s254
      %s272 = sphi 0, %s272
      %s274 = sphi 0, %s272
      %s275 = sphi 0, %s274
      %s289 = sphi 0, %s275
      %s293 = sphi 0, %s293
      %s295 = sphi 0, %s293
      %s296 = sphi 0, %s295
      %s310 = sphi 0, %s296
      %s314 = sphi 0, %s314
      %s316 = sphi 0, %s314
      %s317 = sphi 0, %s316
      %s331 = sphi 0, %s317
      %s335 = sphi 0, %s335
      %s337 = sphi 0, %s335
      %s338 = sphi 0, %s337
      %s352 = sphi 0, %s338
      %s356 = sphi 0, %s356
      %s358 = sphi 0, %s356
      %s359 = sphi 0, %s358
      %s373 = sphi 0, %s359
      %s377 = sphi 0, %s377
      %s379 = sphi 0, %s377
      %s380 = sphi 0, %s379
      %s394 = sphi 0, %s380
      %s402 = sphi 0, %s404
      %s405 = sphi 0, %s402
      %s406 = sphi 0, %s405
      %s422 = sphi 0, %s406
      %s430 = sphi 0, %s432
      %s433 = sphi 0, %s430
      %s434 = sphi 0, %s433
      %s450 = sphi 0, %s434
    $region4: #{tpu_custom_call.1} parent=1 // loop_header_branch
      %38 = sbr.rel (%p36) target = $region8
    $region5: #{tpu_custom_call.1} parent=1 // loop_body
      %s40 = ssub.s32 %s35, 1
      %s41 = ssub.s32 %s35, 2
      %s48 = sadd.s32 1, %s43
      %p49 = scmp.ge.s32.totalorder %s48, 1
      %s50 = scalar_select %p49, 0, %s48
      %s51 = sadd.s32 1, %s42
      %s52 = scalar_select %p49, %s51, %s42
      %p53 = scmp.ge.s32.totalorder %s52, 2
      %s54 = scalar_select %p53, 0, %s52
      %s55 = ssub.s32 %s43, %s50
      %s56 = ssub.s32 %s42, %s54
      %s57 = sor.u32 %s55, %s56
      %p58 = scmp.eq.s32.totalorder %s57, 0
      %s60 = sadd.s32 %s59, 1
      %s61 = scalar_select %p58, %s59, %s60
      %p64 = pneg %p58
      %p65 = scmp.eq.s32.totalorder %s35, 1
      %p66 = por %p64, %p65
      %p67 = scmp.ne.s32.totalorder %s59, %s62
      %p68 = scmp.eq.s32.totalorder %s35, 0
      %p69 = por %p67, %p68
      %p70 = scmp.ne.s32.totalorder %s59, %s62
      %p71 = scmp.eq.s32.totalorder %s40, 1
      %p72 = por %p70, %p71
      %p73 = scmp.ne.s32.totalorder %s62, %s63
      %p74 = scmp.eq.s32.totalorder %s40, 0
      %p75 = por %p73, %p74
      %p76 = scmp.ne.s32.totalorder %s62, %s63
      %p77 = scmp.eq.s32.totalorder %s41, 1
      %p78 = por %p76, %p77
      %p80 = scmp.ne.s32.totalorder %s63, %s79
      %p81 = scmp.eq.s32.totalorder %s41, 0
      %p82 = por %p80, %p81
      %s84 = sadd.s32 %s83, 1
      %p87 = scmp.eq.s32.totalorder %s35, 1
      %p88 = scmp.ne.s32.totalorder %s83, %s85
      %p89 = scmp.eq.s32.totalorder %s35, 0
      %p90 = por %p88, %p89
      %p91 = scmp.ne.s32.totalorder %s83, %s85
      %p92 = scmp.eq.s32.totalorder %s40, 1
      %p93 = por %p91, %p92
      %p94 = scmp.ne.s32.totalorder %s85, %s86
      %p95 = scmp.eq.s32.totalorder %s40, 0
      %p96 = por %p94, %p95
      %p97 = scmp.ne.s32.totalorder %s85, %s86
      %p98 = scmp.eq.s32.totalorder %s41, 1
      %p99 = por %p97, %p98
      %p101 = scmp.ne.s32.totalorder %s86, %s100
      %p102 = scmp.eq.s32.totalorder %s41, 0
      %p103 = por %p101, %p102
      %s105 = sadd.s32 %s104, 1
      %p108 = scmp.eq.s32.totalorder %s35, 1
      %p109 = scmp.ne.s32.totalorder %s104, %s106
      %p110 = scmp.eq.s32.totalorder %s35, 0
      %p111 = por %p109, %p110
      %p112 = scmp.ne.s32.totalorder %s104, %s106
      %p113 = scmp.eq.s32.totalorder %s40, 1
      %p114 = por %p112, %p113
      %p115 = scmp.ne.s32.totalorder %s106, %s107
      %p116 = scmp.eq.s32.totalorder %s40, 0
      %p117 = por %p115, %p116
      %p118 = scmp.ne.s32.totalorder %s106, %s107
      %p119 = scmp.eq.s32.totalorder %s41, 1
      %p120 = por %p118, %p119
      %p122 = scmp.ne.s32.totalorder %s107, %s121
      %p123 = scmp.eq.s32.totalorder %s41, 0
      %p124 = por %p122, %p123
      %s126 = sadd.s32 %s125, 1
      %p129 = scmp.eq.s32.totalorder %s35, 1
      %p130 = scmp.ne.s32.totalorder %s125, %s127
      %p131 = scmp.eq.s32.totalorder %s35, 0
      %p132 = por %p130, %p131
      %p133 = scmp.ne.s32.totalorder %s125, %s127
      %p134 = scmp.eq.s32.totalorder %s40, 1
      %p135 = por %p133, %p134
      %p136 = scmp.ne.s32.totalorder %s127, %s128
      %p137 = scmp.eq.s32.totalorder %s40, 0
      %p138 = por %p136, %p137
      %p139 = scmp.ne.s32.totalorder %s127, %s128
      %p140 = scmp.eq.s32.totalorder %s41, 1
      %p141 = por %p139, %p140
      %p143 = scmp.ne.s32.totalorder %s128, %s142
      %p144 = scmp.eq.s32.totalorder %s41, 0
      %p145 = por %p143, %p144
      %s147 = sadd.s32 %s146, 1
      %p150 = scmp.eq.s32.totalorder %s35, 1
      %p151 = scmp.ne.s32.totalorder %s146, %s148
      %p152 = scmp.eq.s32.totalorder %s35, 0
      %p153 = por %p151, %p152
      %p154 = scmp.ne.s32.totalorder %s146, %s148
      %p155 = scmp.eq.s32.totalorder %s40, 1
      %p156 = por %p154, %p155
      %p157 = scmp.ne.s32.totalorder %s148, %s149
      %p158 = scmp.eq.s32.totalorder %s40, 0
      %p159 = por %p157, %p158
      %p160 = scmp.ne.s32.totalorder %s148, %s149
      %p161 = scmp.eq.s32.totalorder %s41, 1
      %p162 = por %p160, %p161
      %p164 = scmp.ne.s32.totalorder %s149, %s163
      %p165 = scmp.eq.s32.totalorder %s41, 0
      %p166 = por %p164, %p165
      %s168 = sadd.s32 %s167, 1
      %p171 = scmp.eq.s32.totalorder %s35, 1
      %p172 = scmp.ne.s32.totalorder %s167, %s169
      %p173 = scmp.eq.s32.totalorder %s35, 0
      %p174 = por %p172, %p173
      %p175 = scmp.ne.s32.totalorder %s167, %s169
      %p176 = scmp.eq.s32.totalorder %s40, 1
      %p177 = por %p175, %p176
      %p178 = scmp.ne.s32.totalorder %s169, %s170
      %p179 = scmp.eq.s32.totalorder %s40, 0
      %p180 = por %p178, %p179
      %p181 = scmp.ne.s32.totalorder %s169, %s170
      %p182 = scmp.eq.s32.totalorder %s41, 1
      %p183 = por %p181, %p182
      %p185 = scmp.ne.s32.totalorder %s170, %s184
      %p186 = scmp.eq.s32.totalorder %s41, 0
      %p187 = por %p185, %p186
      %s189 = sadd.s32 %s188, 1
      %p192 = scmp.eq.s32.totalorder %s35, 1
      %p193 = scmp.ne.s32.totalorder %s188, %s190
      %p194 = scmp.eq.s32.totalorder %s35, 0
      %p195 = por %p193, %p194
      %p196 = scmp.ne.s32.totalorder %s188, %s190
      %p197 = scmp.eq.s32.totalorder %s40, 1
      %p198 = por %p196, %p197
      %p199 = scmp.ne.s32.totalorder %s190, %s191
      %p200 = scmp.eq.s32.totalorder %s40, 0
      %p201 = por %p199, %p200
      %p202 = scmp.ne.s32.totalorder %s190, %s191
      %p203 = scmp.eq.s32.totalorder %s41, 1
      %p204 = por %p202, %p203
      %p206 = scmp.ne.s32.totalorder %s191, %s205
      %p207 = scmp.eq.s32.totalorder %s41, 0
      %p208 = por %p206, %p207
      %s210 = sadd.s32 %s209, 1
      %p213 = scmp.eq.s32.totalorder %s35, 1
      %p214 = scmp.ne.s32.totalorder %s209, %s211
      %p215 = scmp.eq.s32.totalorder %s35, 0
      %p216 = por %p214, %p215
      %p217 = scmp.ne.s32.totalorder %s209, %s211
      %p218 = scmp.eq.s32.totalorder %s40, 1
      %p219 = por %p217, %p218
      %p220 = scmp.ne.s32.totalorder %s211, %s212
      %p221 = scmp.eq.s32.totalorder %s40, 0
      %p222 = por %p220, %p221
      %p223 = scmp.ne.s32.totalorder %s211, %s212
      %p224 = scmp.eq.s32.totalorder %s41, 1
      %p225 = por %p223, %p224
      %p227 = scmp.ne.s32.totalorder %s212, %s226
      %p228 = scmp.eq.s32.totalorder %s41, 0
      %p229 = por %p227, %p228
      %s231 = sadd.s32 %s230, 1
      %p234 = scmp.eq.s32.totalorder %s35, 1
      %p235 = scmp.ne.s32.totalorder %s230, %s232
      %p236 = scmp.eq.s32.totalorder %s35, 0
      %p237 = por %p235, %p236
      %p238 = scmp.ne.s32.totalorder %s230, %s232
      %p239 = scmp.eq.s32.totalorder %s40, 1
      %p240 = por %p238, %p239
      %p241 = scmp.ne.s32.totalorder %s232, %s233
      %p242 = scmp.eq.s32.totalorder %s40, 0
      %p243 = por %p241, %p242
      %p244 = scmp.ne.s32.totalorder %s232, %s233
      %p245 = scmp.eq.s32.totalorder %s41, 1
      %p246 = por %p244, %p245
      %p248 = scmp.ne.s32.totalorder %s233, %s247
      %p249 = scmp.eq.s32.totalorder %s41, 0
      %p250 = por %p248, %p249
      %s252 = sadd.s32 %s251, 1
      %p255 = scmp.eq.s32.totalorder %s35, 1
      %p256 = scmp.ne.s32.totalorder %s251, %s253
      %p257 = scmp.eq.s32.totalorder %s35, 0
      %p258 = por %p256, %p257
      %p259 = scmp.ne.s32.totalorder %s251, %s253
      %p260 = scmp.eq.s32.totalorder %s40, 1
      %p261 = por %p259, %p260
      %p262 = scmp.ne.s32.totalorder %s253, %s254
      %p263 = scmp.eq.s32.totalorder %s40, 0
      %p264 = por %p262, %p263
      %p265 = scmp.ne.s32.totalorder %s253, %s254
      %p266 = scmp.eq.s32.totalorder %s41, 1
      %p267 = por %p265, %p266
      %p269 = scmp.ne.s32.totalorder %s254, %s268
      %p270 = scmp.eq.s32.totalorder %s41, 0
      %p271 = por %p269, %p270
      %s273 = sadd.s32 %s272, 1
      %p276 = scmp.eq.s32.totalorder %s35, 1
      %p277 = scmp.ne.s32.totalorder %s272, %s274
      %p278 = scmp.eq.s32.totalorder %s35, 0
      %p279 = por %p277, %p278
      %p280 = scmp.ne.s32.totalorder %s272, %s274
      %p281 = scmp.eq.s32.totalorder %s40, 1
      %p282 = por %p280, %p281
      %p283 = scmp.ne.s32.totalorder %s274, %s275
      %p284 = scmp.eq.s32.totalorder %s40, 0
      %p285 = por %p283, %p284
      %p286 = scmp.ne.s32.totalorder %s274, %s275
      %p287 = scmp.eq.s32.totalorder %s41, 1
      %p288 = por %p286, %p287
      %p290 = scmp.ne.s32.totalorder %s275, %s289
      %p291 = scmp.eq.s32.totalorder %s41, 0
      %p292 = por %p290, %p291
      %s294 = sadd.s32 %s293, 1
      %p297 = scmp.eq.s32.totalorder %s35, 1
      %p298 = scmp.ne.s32.totalorder %s293, %s295
      %p299 = scmp.eq.s32.totalorder %s35, 0
      %p300 = por %p298, %p299
      %p301 = scmp.ne.s32.totalorder %s293, %s295
      %p302 = scmp.eq.s32.totalorder %s40, 1
      %p303 = por %p301, %p302
      %p304 = scmp.ne.s32.totalorder %s295, %s296
      %p305 = scmp.eq.s32.totalorder %s40, 0
      %p306 = por %p304, %p305
      %p307 = scmp.ne.s32.totalorder %s295, %s296
      %p308 = scmp.eq.s32.totalorder %s41, 1
      %p309 = por %p307, %p308
      %p311 = scmp.ne.s32.totalorder %s296, %s310
      %p312 = scmp.eq.s32.totalorder %s41, 0
      %p313 = por %p311, %p312
      %s315 = sadd.s32 %s314, 1
      %p318 = scmp.eq.s32.totalorder %s35, 1
      %p319 = scmp.ne.s32.totalorder %s314, %s316
      %p320 = scmp.eq.s32.totalorder %s35, 0
      %p321 = por %p319, %p320
      %p322 = scmp.ne.s32.totalorder %s314, %s316
      %p323 = scmp.eq.s32.totalorder %s40, 1
      %p324 = por %p322, %p323
      %p325 = scmp.ne.s32.totalorder %s316, %s317
      %p326 = scmp.eq.s32.totalorder %s40, 0
      %p327 = por %p325, %p326
      %p328 = scmp.ne.s32.totalorder %s316, %s317
      %p329 = scmp.eq.s32.totalorder %s41, 1
      %p330 = por %p328, %p329
      %p332 = scmp.ne.s32.totalorder %s317, %s331
      %p333 = scmp.eq.s32.totalorder %s41, 0
      %p334 = por %p332, %p333
      %s336 = sadd.s32 %s335, 1
      %p339 = scmp.eq.s32.totalorder %s35, 1
      %p340 = scmp.ne.s32.totalorder %s335, %s337
      %p341 = scmp.eq.s32.totalorder %s35, 0
      %p342 = por %p340, %p341
      %p343 = scmp.ne.s32.totalorder %s335, %s337
      %p344 = scmp.eq.s32.totalorder %s40, 1
      %p345 = por %p343, %p344
      %p346 = scmp.ne.s32.totalorder %s337, %s338
      %p347 = scmp.eq.s32.totalorder %s40, 0
      %p348 = por %p346, %p347
      %p349 = scmp.ne.s32.totalorder %s337, %s338
      %p350 = scmp.eq.s32.totalorder %s41, 1
      %p351 = por %p349, %p350
      %p353 = scmp.ne.s32.totalorder %s338, %s352
      %p354 = scmp.eq.s32.totalorder %s41, 0
      %p355 = por %p353, %p354
      %s357 = sadd.s32 %s356, 1
      %p360 = scmp.eq.s32.totalorder %s35, 1
      %p361 = scmp.ne.s32.totalorder %s356, %s358
      %p362 = scmp.eq.s32.totalorder %s35, 0
      %p363 = por %p361, %p362
      %p364 = scmp.ne.s32.totalorder %s356, %s358
      %p365 = scmp.eq.s32.totalorder %s40, 1
      %p366 = por %p364, %p365
      %p367 = scmp.ne.s32.totalorder %s358, %s359
      %p368 = scmp.eq.s32.totalorder %s40, 0
      %p369 = por %p367, %p368
      %p370 = scmp.ne.s32.totalorder %s358, %s359
      %p371 = scmp.eq.s32.totalorder %s41, 1
      %p372 = por %p370, %p371
      %p374 = scmp.ne.s32.totalorder %s359, %s373
      %p375 = scmp.eq.s32.totalorder %s41, 0
      %p376 = por %p374, %p375
      %s378 = sadd.s32 %s377, 1
      %p381 = scmp.eq.s32.totalorder %s35, 1
      %p382 = scmp.ne.s32.totalorder %s377, %s379
      %p383 = scmp.eq.s32.totalorder %s35, 0
      %p384 = por %p382, %p383
      %p385 = scmp.ne.s32.totalorder %s377, %s379
      %p386 = scmp.eq.s32.totalorder %s40, 1
      %p387 = por %p385, %p386
      %p388 = scmp.ne.s32.totalorder %s379, %s380
      %p389 = scmp.eq.s32.totalorder %s40, 0
      %p390 = por %p388, %p389
      %p391 = scmp.ne.s32.totalorder %s379, %s380
      %p392 = scmp.eq.s32.totalorder %s41, 1
      %p393 = por %p391, %p392
      %p395 = scmp.ne.s32.totalorder %s380, %s394
      %p396 = scmp.eq.s32.totalorder %s41, 0
      %p397 = por %p395, %p396
      %s398 = ssub.s32 %s43, %s50
      %s399 = ssub.s32 %s42, %s54
      %s400 = sor.u32 %s398, %s399
      %p401 = scmp.eq.s32.totalorder %s400, 0
      %s403 = sadd.s32 %s402, 1
      %s404 = scalar_select %p401, %s402, %s403
      %p407 = pneg %p401
      %p408 = scmp.eq.s32.totalorder %s35, 1
      %p409 = por %p407, %p408
      %p410 = scmp.ne.s32.totalorder %s402, %s405
      %p411 = scmp.eq.s32.totalorder %s35, 0
      %p412 = por %p410, %p411
      %p413 = scmp.ne.s32.totalorder %s402, %s405
      %p414 = scmp.eq.s32.totalorder %s40, 1
      %p415 = por %p413, %p414
      %p416 = scmp.ne.s32.totalorder %s405, %s406
      %p417 = scmp.eq.s32.totalorder %s40, 0
      %p418 = por %p416, %p417
      %p419 = scmp.ne.s32.totalorder %s405, %s406
      %p420 = scmp.eq.s32.totalorder %s41, 1
      %p421 = por %p419, %p420
      %p423 = scmp.ne.s32.totalorder %s406, %s422
      %p424 = scmp.eq.s32.totalorder %s41, 0
      %p425 = por %p423, %p424
      %s426 = ssub.s32 %s43, %s50
      %s427 = ssub.s32 %s42, %s54
      %s428 = sor.u32 %s426, %s427
      %p429 = scmp.eq.s32.totalorder %s428, 0
      %s431 = sadd.s32 %s430, 1
      %s432 = scalar_select %p429, %s430, %s431
      %p435 = pneg %p429
      %p436 = scmp.eq.s32.totalorder %s35, 1
      %p437 = por %p435, %p436
      %p438 = scmp.ne.s32.totalorder %s430, %s433
      %p439 = scmp.eq.s32.totalorder %s35, 0
      %p440 = por %p438, %p439
      %p441 = scmp.ne.s32.totalorder %s430, %s433
      %p442 = scmp.eq.s32.totalorder %s40, 1
      %p443 = por %p441, %p442
      %p444 = scmp.ne.s32.totalorder %s433, %s434
      %p445 = scmp.eq.s32.totalorder %s40, 0
      %p446 = por %p444, %p445
      %p447 = scmp.ne.s32.totalorder %s433, %s434
      %p448 = scmp.eq.s32.totalorder %s41, 1
      %p449 = por %p447, %p448
      %p451 = scmp.ne.s32.totalorder %s434, %s450
      %p452 = scmp.eq.s32.totalorder %s41, 0
      %p453 = por %p451, %p452
      %p454 = scmp.le.s32.totalorder 1, %s35
      %p455 = scmp.lt.s32.totalorder %s35, 3
      %p456 = pnand %p454, %p455
      %p457 = pneg %p456
      // Predicated region
      $region9: #{tpu_custom_call.1} parent=5 // pred_check
        _
      $region10: #{tpu_custom_call.1} parent=5 // pred_check_branch
        %459 = sbr.rel (%p456) target = $region12
      $region11: #{tpu_custom_call.1} parent=5 // pred_region
        %s460 = ssub.s32 %s35, 1
        // Predicated region
        $region13: #{tpu_custom_call.1} parent=11 // pred_check
          %p461 = pneg %p96
        $region14: #{tpu_custom_call.1} parent=11 // pred_check_branch
          %463 = sbr.rel (%p461) target = $region16
        $region15: #{tpu_custom_call.1} parent=11 // pred_region
          %s465 = ssub.s32 16, 16
          %466 = vsyncadd [#allocation5], %s465
          %s468 = sshll.u32 [#allocation4], 4
          %s469 = int_to_ptr.vmem [resolvable:$true] %s468
          %471 = dma.hbm_to_vmem [thread:$0]  %s1, 16, %s469, [#allocation5]
        $region16: #{tpu_custom_call.1} parent=11 // pred_fallthru
          _
        // Predicated region
        $region17: #{tpu_custom_call.1} parent=11 // pred_check
          %p472 = pneg %p117
        $region18: #{tpu_custom_call.1} parent=11 // pred_check_branch
          %474 = sbr.rel (%p472) target = $region20
        $region19: #{tpu_custom_call.1} parent=11 // pred_region
          %s476 = ssub.s32 16, 16
          %477 = vsyncadd [#allocation8], %s476
          %s479 = sshll.u32 [#allocation7], 4
          %s480 = int_to_ptr.vmem [resolvable:$true] %s479
          %482 = dma.hbm_to_vmem [thread:$0]  %s2, 16, %s480, [#allocation8]
        $region20: #{tpu_custom_call.1} parent=11 // pred_fallthru
          _
        // Predicated region
        $region21: #{tpu_custom_call.1} parent=11 // pred_check
          %p483 = pneg %p138
        $region22: #{tpu_custom_call.1} parent=11 // pred_check_branch
          %485 = sbr.rel (%p483) target = $region24
        $region23: #{tpu_custom_call.1} parent=11 // pred_region
          %s487 = ssub.s32 256, 256
          %488 = vsyncadd [#allocation8], %s487
          %s489 = sshll.u32 [#allocation9], 4
          %s490 = int_to_ptr.vmem [resolvable:$true] %s489
          %495 = dma.hbm_to_vmem [thread:$0]  %s3, 256, %s490, [#allocation8], 64, 64, 4
        $region24: #{tpu_custom_call.1} parent=11 // pred_fallthru
          _
        // Predicated region
        $region25: #{tpu_custom_call.1} parent=11 // pred_check
          %p496 = pneg %p159
        $region26: #{tpu_custom_call.1} parent=11 // pred_check_branch
          %498 = sbr.rel (%p496) target = $region28
        $region27: #{tpu_custom_call.1} parent=11 // pred_region
          %s500 = ssub.s32 16, 16
          %501 = vsyncadd [#allocation11], %s500
          %s503 = sshll.u32 [#allocation10], 4
          %s504 = int_to_ptr.vmem [resolvable:$true] %s503
          %506 = dma.hbm_to_vmem [thread:$0]  %s4, 16, %s504, [#allocation11]
        $region28: #{tpu_custom_call.1} parent=11 // pred_fallthru
          _
        // Predicated region
        $region29: #{tpu_custom_call.1} parent=11 // pred_check
          %p507 = pneg %p180
        $region30: #{tpu_custom_call.1} parent=11 // pred_check_branch
          %509 = sbr.rel (%p507) target = $region32
        $region31: #{tpu_custom_call.1} parent=11 // pred_region
          %s511 = ssub.s32 256, 256
          %512 = vsyncadd [#allocation11], %s511
          %s513 = sshll.u32 [#allocation12], 4
          %s514 = int_to_ptr.vmem [resolvable:$true] %s513
          %519 = dma.hbm_to_vmem [thread:$0]  %s5, 256, %s514, [#allocation11], 64, 64, 4
        $region32: #{tpu_custom_call.1} parent=11 // pred_fallthru
          _
        // Predicated region
        $region33: #{tpu_custom_call.1} parent=11 // pred_check
          %p520 = pneg %p201
        $region34: #{tpu_custom_call.1} parent=11 // pred_check_branch
          %522 = sbr.rel (%p520) target = $region36
        $region35: #{tpu_custom_call.1} parent=11 // pred_region
          %s524 = ssub.s32 16, 16
          %525 = vsyncadd [#allocation14], %s524
          %s527 = sshll.u32 [#allocation13], 4
          %s528 = int_to_ptr.vmem [resolvable:$true] %s527
          %530 = dma.hbm_to_vmem [thread:$0]  %s6, 16, %s528, [#allocation14]
        $region36: #{tpu_custom_call.1} parent=11 // pred_fallthru
          _
        // Predicated region
        $region37: #{tpu_custom_call.1} parent=11 // pred_check
          %p531 = pneg %p222
        $region38: #{tpu_custom_call.1} parent=11 // pred_check_branch
          %533 = sbr.rel (%p531) target = $region40
        $region39: #{tpu_custom_call.1} parent=11 // pred_region
          %s535 = ssub.s32 2048, 2048
          %536 = vsyncadd [#allocation14], %s535
          %s537 = sshll.u32 [#allocation15], 4
          %s538 = int_to_ptr.vmem [resolvable:$true] %s537
          %543 = dma.hbm_to_vmem [thread:$0]  %s7, 2048, %s538, [#allocation14], 128, 128, 8
        $region40: #{tpu_custom_call.1} parent=11 // pred_fallthru
          _
        // Predicated region
        $region41: #{tpu_custom_call.1} parent=11 // pred_check
          %p544 = pneg %p243
        $region42: #{tpu_custom_call.1} parent=11 // pred_check_branch
          %546 = sbr.rel (%p544) target = $region44
        $region43: #{tpu_custom_call.1} parent=11 // pred_region
          _
        $region44: #{tpu_custom_call.1} parent=11 // pred_fallthru
          _
        // Predicated region
        $region45: #{tpu_custom_call.1} parent=11 // pred_check
          %p547 = pneg %p264
        $region46: #{tpu_custom_call.1} parent=11 // pred_check_branch
          %549 = sbr.rel (%p547) target = $region48
        $region47: #{tpu_custom_call.1} parent=11 // pred_region
          _
        $region48: #{tpu_custom_call.1} parent=11 // pred_fallthru
          _
        // Predicated region
        $region49: #{tpu_custom_call.1} parent=11 // pred_check
          %p550 = pneg %p285
        $region50: #{tpu_custom_call.1} parent=11 // pred_check_branch
          %552 = sbr.rel (%p550) target = $region52
        $region51: #{tpu_custom_call.1} parent=11 // pred_region
          _
        $region52: #{tpu_custom_call.1} parent=11 // pred_fallthru
          _
        // Predicated region
        $region53: #{tpu_custom_call.1} parent=11 // pred_check
          %p553 = pneg %p306
        $region54: #{tpu_custom_call.1} parent=11 // pred_check_branch
          %555 = sbr.rel (%p553) target = $region56
        $region55: #{tpu_custom_call.1} parent=11 // pred_region
          _
        $region56: #{tpu_custom_call.1} parent=11 // pred_fallthru
          _
        // Predicated region
        $region57: #{tpu_custom_call.1} parent=11 // pred_check
          %p556 = pneg %p327
        $region58: #{tpu_custom_call.1} parent=11 // pred_check_branch
          %558 = sbr.rel (%p556) target = $region60
        $region59: #{tpu_custom_call.1} parent=11 // pred_region
          %s560 = ssub.s32 256, 256
          %561 = vsyncadd [#allocation17], %s560
          %s562 = sshll.u32 [#allocation16], 4
          %s563 = int_to_ptr.vmem [resolvable:$true] %s562
          %568 = dma.hbm_to_vmem [thread:$0]  %s12, 256, %s563, [#allocation17], 64, 64, 4
        $region60: #{tpu_custom_call.1} parent=11 // pred_fallthru
          _
        // Predicated region
        $region61: #{tpu_custom_call.1} parent=11 // pred_check
          %p569 = pneg %p348
        $region62: #{tpu_custom_call.1} parent=11 // pred_check_branch
          %571 = sbr.rel (%p569) target = $region64
        $region63: #{tpu_custom_call.1} parent=11 // pred_region
          _
        $region64: #{tpu_custom_call.1} parent=11 // pred_fallthru
          _
        // Predicated region
        $region65: #{tpu_custom_call.1} parent=11 // pred_check
          %p572 = pneg %p369
        $region66: #{tpu_custom_call.1} parent=11 // pred_check_branch
          %574 = sbr.rel (%p572) target = $region68
        $region67: #{tpu_custom_call.1} parent=11 // pred_region
          _
        $region68: #{tpu_custom_call.1} parent=11 // pred_fallthru
          _
        // Predicated region
        $region69: #{tpu_custom_call.1} parent=11 // pred_check
          %p575 = pneg %p390
        $region70: #{tpu_custom_call.1} parent=11 // pred_check_branch
          %577 = sbr.rel (%p575) target = $region72
        $region71: #{tpu_custom_call.1} parent=11 // pred_region
          _
        $region72: #{tpu_custom_call.1} parent=11 // pred_fallthru
          _
      $region12: #{tpu_custom_call.1} parent=5 // pred_fallthru
        _
      %p578 = scmp.lt.s32.totalorder %s35, 2
      // Predicated region
      $region73: #{tpu_custom_call.1} parent=5 // pred_check
        %p579 = pneg %p578
      $region74: #{tpu_custom_call.1} parent=5 // pred_check_branch
        %581 = sbr.rel (%p579) target = $region76
      $region75: #{tpu_custom_call.1} parent=5 // pred_region
        // Predicated region
        $region77: #{tpu_custom_call.1} parent=75 // pred_check
          %p582 = pneg %p69
        $region78: #{tpu_custom_call.1} parent=75 // pred_check_branch
          %584 = sbr.rel (%p582) target = $region80
        $region79: #{tpu_custom_call.1} parent=75 // pred_region
          %s585 = sand.u32 %s59, 1
          %s586 = sand.u32 %s59, 1
          %s587 = smul.addr %s586, 64
          %s588 = scalar_lea.vmem [#allocation3], %s587
          %s589 = smul.u32 2, %s43
          %s590 = smul.addr %s42, 4
          %s591 = smul.addr %s589, 8
          %s592 = sadd.s32 %s590, %s591
          %s593 = smul.addr %s592, 8
          %s594 = scalar_lea.vmem %s0, %s593
          // Predicated region
          $region81: #{tpu_custom_call.1} parent=79 // pred_check
            _
          $region82: #{tpu_custom_call.1} parent=79 // pred_check_branch
            %596 = sbr.rel (0) target = $region84
          $region83: #{tpu_custom_call.1} parent=79 // pred_region
            // Predicated region
            $region85: #{tpu_custom_call.1} parent=83 // pred_check
              _
            $region86: #{tpu_custom_call.1} parent=83 // pred_check_branch
              %598 = sbr.rel (0) target = $region88
            $region87: #{tpu_custom_call.1} parent=83 // pred_region
              // Predicated region
              $region100: #{tpu_custom_call.1} parent=87 // pred_check
                _
              $region101: #{tpu_custom_call.1} parent=87 // pred_check_branch
                %627 = sbr.rel (0) target = $region103
              $region102: #{tpu_custom_call.1} parent=87 // pred_region
                loop: start=0, step=1, limit=1
                $region104: #{tpu_custom_call.1} parent=102 // loop_pre_header
                  _
                $region105: #{tpu_custom_call.1} parent=102 // loop_header
                  %s629 = sphi 0, %s633
                  %p630 = scmp.ge.s32.totalorder %s629, 1
                  %s634 = sphi %s594, %s594
                  %s635 = sphi %s588, %s588
                $region106: #{tpu_custom_call.1} parent=102 // loop_header_branch
                  %632 = sbr.rel (%p630) target = $region110
                $region107: #{tpu_custom_call.1} parent=102 // loop_body
                  %v636 = vld [vmem:[%s634] sm:$0xff]
                  %637 = vst [vmem:[%s635] sm:$0xff] %v636
                  %v638 = vld [vmem:[%s634 + $0x8] sm:$0xff]
                  %639 = vst [vmem:[%s635 + $0x8] sm:$0xff] %v638
                  %v640 = vld [vmem:[%s634 + $0x10] sm:$0xff]
                  %641 = vst [vmem:[%s635 + $0x10] sm:$0xff] %v640
                  %v642 = vld [vmem:[%s634 + $0x18] sm:$0xff]
                  %643 = vst [vmem:[%s635 + $0x18] sm:$0xff] %v642
                  %v644 = vld [vmem:[%s634 + $0x40] sm:$0xff]
                  %645 = vst [vmem:[%s635 + $0x20] sm:$0xff] %v644
                  %v646 = vld [vmem:[%s634 + $0x48] sm:$0xff]
                  %647 = vst [vmem:[%s635 + $0x28] sm:$0xff] %v646
                  %v648 = vld [vmem:[%s634 + $0x50] sm:$0xff]
                  %649 = vst [vmem:[%s635 + $0x30] sm:$0xff] %v648
                  %v650 = vld [vmem:[%s634 + $0x58] sm:$0xff]
                  %651 = vst [vmem:[%s635 + $0x38] sm:$0xff] %v650
                $region108: #{tpu_custom_call.1} parent=102 // loop_footer
                  %s633 = sadd.s32 1, %s629
                $region109: #{tpu_custom_call.1} parent=102 // loop_footer_branch
                  %628 = sbr.rel target = $region105
                $region110: #{tpu_custom_call.1} parent=102 // loop_exit
                  _
              $region103: #{tpu_custom_call.1} parent=87 // pred_fallthru
                _
              // Predicated region
              $region111: #{tpu_custom_call.1} parent=87 // pred_check
                _
              $region112: #{tpu_custom_call.1} parent=87 // pred_check_branch
                %653 = sbr.rel target = $region114
              $region113: #{tpu_custom_call.1} parent=87 // pred_region
                _
              $region114: #{tpu_custom_call.1} parent=87 // pred_fallthru
                _
            $region88: #{tpu_custom_call.1} parent=83 // pred_fallthru
              _
            // Predicated region
            $region89: #{tpu_custom_call.1} parent=83 // pred_check
              _
            $region90: #{tpu_custom_call.1} parent=83 // pred_check_branch
              %600 = sbr.rel target = $region92
            $region91: #{tpu_custom_call.1} parent=83 // pred_region
              loop: start=0, step=1, limit=1
              $region93: #{tpu_custom_call.1} parent=91 // loop_pre_header
                _
              $region94: #{tpu_custom_call.1} parent=91 // loop_header
                %s603 = sphi 0, %s607
                %p604 = scmp.ge.s32.totalorder %s603, 1
                %s608 = sphi %s594, %s594
                %s609 = sphi %s588, %s588
              $region95: #{tpu_custom_call.1} parent=91 // loop_header_branch
                %606 = sbr.rel (%p604) target = $region99
              $region96: #{tpu_custom_call.1} parent=91 // loop_body
                %v610 = vld [vmem:[%s608] sm:$0xff]
                %611 = vst [vmem:[%s609] sm:$0xff] %v610
                %v612 = vld [vmem:[%s608 + $0x8] sm:$0xff]
                %613 = vst [vmem:[%s609 + $0x8] sm:$0xff] %v612
                %v614 = vld [vmem:[%s608 + $0x10] sm:$0xff]
                %615 = vst [vmem:[%s609 + $0x10] sm:$0xff] %v614
                %v616 = vld [vmem:[%s608 + $0x18] sm:$0xff]
                %617 = vst [vmem:[%s609 + $0x18] sm:$0xff] %v616
                %v618 = vld [vmem:[%s608 + $0x40] sm:$0xff]
                %619 = vst [vmem:[%s609 + $0x20] sm:$0xff] %v618
                %v620 = vld [vmem:[%s608 + $0x48] sm:$0xff]
                %621 = vst [vmem:[%s609 + $0x28] sm:$0xff] %v620
                %v622 = vld [vmem:[%s608 + $0x50] sm:$0xff]
                %623 = vst [vmem:[%s609 + $0x30] sm:$0xff] %v622
                %v624 = vld [vmem:[%s608 + $0x58] sm:$0xff]
                %625 = vst [vmem:[%s609 + $0x38] sm:$0xff] %v624
              $region97: #{tpu_custom_call.1} parent=91 // loop_footer
                %s607 = sadd.s32 1, %s603
              $region98: #{tpu_custom_call.1} parent=91 // loop_footer_branch
                %602 = sbr.rel target = $region94
              $region99: #{tpu_custom_call.1} parent=91 // loop_exit
                _
            $region92: #{tpu_custom_call.1} parent=83 // pred_fallthru
              _
          $region84: #{tpu_custom_call.1} parent=79 // pred_fallthru
            _
          %654 = vnop
        $region80: #{tpu_custom_call.1} parent=75 // pred_fallthru
          _
      $region76: #{tpu_custom_call.1} parent=5 // pred_fallthru
        _
      %p655 = scmp.le.s32.totalorder 1, %s35
      %p656 = scmp.lt.s32.totalorder %s35, 3
      %p657 = pnand %p655, %p656
      %p658 = pneg %p657
      // Predicated region
      $region115: #{tpu_custom_call.1} parent=5 // pred_check
        _
      $region116: #{tpu_custom_call.1} parent=5 // pred_check_branch
        %660 = sbr.rel (%p657) target = $region118
      $region117: #{tpu_custom_call.1} parent=5 // pred_region
        %s661 = ssub.s32 %s35, 1
        %s662 = sand.u32 %s62, 1
        %s663 = sand.u32 %s62, 1
        %s664 = smul.addr %s663, 64
        %s665 = scalar_lea.vmem [#allocation3], %s664
        // Predicated region
        $region119: #{tpu_custom_call.1} parent=117 // pred_check
          %p666 = pneg %p75
        $region120: #{tpu_custom_call.1} parent=117 // pred_check_branch
          %668 = sbr.rel (%p666) target = $region122
        $region121: #{tpu_custom_call.1} parent=117 // pred_region
          _
        $region122: #{tpu_custom_call.1} parent=117 // pred_fallthru
          _
        // Predicated region
        $region123: #{tpu_custom_call.1} parent=117 // pred_check
          %p669 = pneg %p96
        $region124: #{tpu_custom_call.1} parent=117 // pred_check_branch
          %671 = sbr.rel (%p669) target = $region126
        $region125: #{tpu_custom_call.1} parent=117 // pred_region
          %672 = dma.done [#allocation5], 16
        $region126: #{tpu_custom_call.1} parent=117 // pred_fallthru
          _
        // Predicated region
        $region127: #{tpu_custom_call.1} parent=117 // pred_check
          %p673 = pneg %p117
        $region128: #{tpu_custom_call.1} parent=117 // pred_check_branch
          %675 = sbr.rel (%p673) target = $region130
        $region129: #{tpu_custom_call.1} parent=117 // pred_region
          %676 = dma.done [#allocation8], 16
        $region130: #{tpu_custom_call.1} parent=117 // pred_fallthru
          _
        // Predicated region
        $region131: #{tpu_custom_call.1} parent=117 // pred_check
          %p677 = pneg %p138
        $region132: #{tpu_custom_call.1} parent=117 // pred_check_branch
          %679 = sbr.rel (%p677) target = $region134
        $region133: #{tpu_custom_call.1} parent=117 // pred_region
          %680 = dma.done [#allocation8], 256
        $region134: #{tpu_custom_call.1} parent=117 // pred_fallthru
          _
        // Predicated region
        $region135: #{tpu_custom_call.1} parent=117 // pred_check
          %p681 = pneg %p159
        $region136: #{tpu_custom_call.1} parent=117 // pred_check_branch
          %683 = sbr.rel (%p681) target = $region138
        $region137: #{tpu_custom_call.1} parent=117 // pred_region
          %684 = dma.done [#allocation11], 16
        $region138: #{tpu_custom_call.1} parent=117 // pred_fallthru
          _
        // Predicated region
        $region139: #{tpu_custom_call.1} parent=117 // pred_check
          %p685 = pneg %p180
        $region140: #{tpu_custom_call.1} parent=117 // pred_check_branch
          %687 = sbr.rel (%p685) target = $region142
        $region141: #{tpu_custom_call.1} parent=117 // pred_region
          %688 = dma.done [#allocation11], 256
        $region142: #{tpu_custom_call.1} parent=117 // pred_fallthru
          _
        // Predicated region
        $region143: #{tpu_custom_call.1} parent=117 // pred_check
          %p689 = pneg %p201
        $region144: #{tpu_custom_call.1} parent=117 // pred_check_branch
          %691 = sbr.rel (%p689) target = $region146
        $region145: #{tpu_custom_call.1} parent=117 // pred_region
          %692 = dma.done [#allocation14], 16
        $region146: #{tpu_custom_call.1} parent=117 // pred_fallthru
          _
        // Predicated region
        $region147: #{tpu_custom_call.1} parent=117 // pred_check
          %p693 = pneg %p222
        $region148: #{tpu_custom_call.1} parent=117 // pred_check_branch
          %695 = sbr.rel (%p693) target = $region150
        $region149: #{tpu_custom_call.1} parent=117 // pred_region
          %696 = dma.done [#allocation14], 2048
        $region150: #{tpu_custom_call.1} parent=117 // pred_fallthru
          _
        // Predicated region
        $region151: #{tpu_custom_call.1} parent=117 // pred_check
          %p697 = pneg %p327
        $region152: #{tpu_custom_call.1} parent=117 // pred_check_branch
          %699 = sbr.rel (%p697) target = $region154
        $region153: #{tpu_custom_call.1} parent=117 // pred_region
          %700 = dma.done [#allocation17], 256
        $region154: #{tpu_custom_call.1} parent=117 // pred_fallthru
          _
        %s701 = sand.u32 %s62, 1
        %s702 = sand.u32 %s62, 1
        %s703 = smul.addr %s702, 64
        %s704 = scalar_lea.vmem [#allocation3], %s703
        %p705 = pneg %p75
        %p706 = pneg %p72
        %p707 = pneg %p96
        %p708 = pneg %p93
        %p709 = pneg %p117
        %p710 = pneg %p114
        %p711 = pneg %p138
        %p712 = pneg %p135
        %p713 = pneg %p159
        %p714 = pneg %p156
        %p715 = pneg %p180
        %p716 = pneg %p177
        %p717 = pneg %p201
        %p718 = pneg %p198
        %p719 = pneg %p222
        %p720 = pneg %p219
        %p721 = pneg %p243
        %p722 = pneg %p240
        %p723 = pneg %p264
        %p724 = pneg %p261
        %p725 = pneg %p285
        %p726 = pneg %p282
        %p727 = pneg %p306
        %p728 = pneg %p303
        %p729 = pneg %p327
        %p730 = pneg %p324
        %p731 = pneg %p348
        %p732 = pneg %p345
        %p733 = pneg %p369
        %p734 = pneg %p366
        %p735 = pneg %p390
        %p736 = pneg %p387
        %p737 = pneg %p418
        %p738 = pneg %p415
        %s739 = sand.u32 %s405, 1
        %s740 = scalar_lea.sflag [#allocation6], %s739
        %s741 = sand.u32 %s405, 1
        %s742 = smul.addr %s741, 64
        %s743 = scalar_lea.vmem [#allocation18], %s742
        %p744 = pneg %p446
        %p745 = pneg %p443
        %s746 = sand.u32 %s433, 1
        %s747 = scalar_lea.sflag [#allocation20], %s746
        %s748 = sand.u32 %s433, 1
        %s749 = smul.addr %s748, 4
        %s750 = scalar_lea.vmem [#allocation19], %s749
        %s751 = smul.u32 2, %s45
        %s752 = smul.u32 2, %s45
        %s753 = smul.u32 2, %s45
        %v755 = vld [vmem:[%s665] sm:$0xff]
        %v756 = vld [vmem:[%s665 + $0x8] sm:$0xff]
        %v757 = vld [vmem:[%s665 + $0x10] sm:$0xff]
        %v758 = vld [vmem:[%s665 + $0x18] sm:$0xff]
        %v759 = vld [vmem:[%s665 + $0x20] sm:$0xff]
        %v760 = vld [vmem:[%s665 + $0x28] sm:$0xff]
        %v761 = vld [vmem:[%s665 + $0x30] sm:$0xff]
        %v762 = vld [vmem:[%s665 + $0x38] sm:$0xff]
        %vm763 = vcmask 261120
        %v764 = vsel %vm763, %v755, 0.0
        %765 = vadd.xlane.f32.xlu0 %v764
        %v766 = vpop.xlane.xlu0 %765
        %v767 = vsel %vm763, %v756, 0.0
        %768 = vadd.xlane.f32.xlu0 %v767
        %v769 = vpop.xlane.xlu0 %768
        %v770 = vsel %vm763, %v757, 0.0
        %771 = vadd.xlane.f32.xlu0 %v770
        %v772 = vpop.xlane.xlu0 %771
        %v773 = vsel %vm763, %v758, 0.0
        %774 = vadd.xlane.f32.xlu0 %v773
        %v775 = vpop.xlane.xlu0 %774
        %v776 = vsel %vm763, %v759, 0.0
        %777 = vadd.xlane.f32.xlu0 %v776
        %v778 = vpop.xlane.xlu0 %777
        %v779 = vsel %vm763, %v760, 0.0
        %780 = vadd.xlane.f32.xlu0 %v779
        %v781 = vpop.xlane.xlu0 %780
        %v782 = vsel %vm763, %v761, 0.0
        %783 = vadd.xlane.f32.xlu0 %v782
        %v784 = vpop.xlane.xlu0 %783
        %v785 = vsel %vm763, %v762, 0.0
        %786 = vadd.xlane.f32.xlu0 %v785
        %v787 = vpop.xlane.xlu0 %786
        %v788 = vrcp.pop 32.0
        %v789 = vmul.f32 %v766, %v788
        %v790 = vmul.f32 %v769, %v788
        %v791 = vmul.f32 %v772, %v788
        %v792 = vmul.f32 %v775, %v788
        %v793 = vmul.f32 %v778, %v788
        %v794 = vmul.f32 %v781, %v788
        %v795 = vmul.f32 %v784, %v788
        %v796 = vmul.f32 %v787, %v788
        %v797 = vsub.f32 %v755, %v789
        %v798 = vsub.f32 %v756, %v790
        %v799 = vsub.f32 %v757, %v791
        %v800 = vsub.f32 %v758, %v792
        %v801 = vsub.f32 %v759, %v793
        %v802 = vsub.f32 %v760, %v794
        %v803 = vsub.f32 %v761, %v795
        %v804 = vsub.f32 %v762, %v796
        %v805 = vmul.f32 %v797, %v797
        %v806 = vmul.f32 %v798, %v798
        %v807 = vmul.f32 %v799, %v799
        %v808 = vmul.f32 %v800, %v800
        %v809 = vmul.f32 %v801, %v801
        %v810 = vmul.f32 %v802, %v802
        %v811 = vmul.f32 %v803, %v803
        %v812 = vmul.f32 %v804, %v804
        %v813 = vsel %vm763, %v805, 0.0
        %814 = vadd.xlane.f32.xlu0 %v813
        %v815 = vpop.xlane.xlu0 %814
        %v816 = vsel %vm763, %v806, 0.0
        %817 = vadd.xlane.f32.xlu0 %v816
        %v818 = vpop.xlane.xlu0 %817
        %v819 = vsel %vm763, %v807, 0.0
        %820 = vadd.xlane.f32.xlu0 %v819
        %v821 = vpop.xlane.xlu0 %820
        %v822 = vsel %vm763, %v808, 0.0
        %823 = vadd.xlane.f32.xlu0 %v822
        %v824 = vpop.xlane.xlu0 %823
        %v825 = vsel %vm763, %v809, 0.0
        %826 = vadd.xlane.f32.xlu0 %v825
        %v827 = vpop.xlane.xlu0 %826
        %v828 = vsel %vm763, %v810, 0.0
        %829 = vadd.xlane.f32.xlu0 %v828
        %v830 = vpop.xlane.xlu0 %829
        %v831 = vsel %vm763, %v811, 0.0
        %832 = vadd.xlane.f32.xlu0 %v831
        %v833 = vpop.xlane.xlu0 %832
        %v834 = vsel %vm763, %v812, 0.0
        %835 = vadd.xlane.f32.xlu0 %v834
        %v836 = vpop.xlane.xlu0 %835
        %v837 = vmul.f32 %v815, %v788
        %v838 = vmul.f32 %v818, %v788
        %v839 = vmul.f32 %v821, %v788
        %v840 = vmul.f32 %v824, %v788
        %v841 = vmul.f32 %v827, %v788
        %v842 = vmul.f32 %v830, %v788
        %v843 = vmul.f32 %v833, %v788
        %v844 = vmul.f32 %v836, %v788
        %v845 = vadd.f32 %v837, 1e-05
        %v846 = vadd.f32 %v838, 1e-05
        %v847 = vadd.f32 %v839, 1e-05
        %v848 = vadd.f32 %v840, 1e-05
        %v849 = vadd.f32 %v841, 1e-05
        %v850 = vadd.f32 %v842, 1e-05
        %v851 = vadd.f32 %v843, 1e-05
        %v852 = vadd.f32 %v844, 1e-05
        %v853 = vrsqrt.pop %v845
        %v854 = vrsqrt.pop %v846
        %v855 = vrsqrt.pop %v847
        %v856 = vrsqrt.pop %v848
        %v857 = vrsqrt.pop %v849
        %v858 = vrsqrt.pop %v850
        %v859 = vrsqrt.pop %v851
        %v860 = vrsqrt.pop %v852
        %v861 = vmul.f32 %v797, %v853
        %v862 = vmul.f32 %v798, %v854
        %v863 = vmul.f32 %v799, %v855
        %v864 = vmul.f32 %v800, %v856
        %v865 = vmul.f32 %v801, %v857
        %v866 = vmul.f32 %v802, %v858
        %v867 = vmul.f32 %v803, %v859
        %v868 = vmul.f32 %v804, %v860
        %v869 = vld [vmem:[#allocation4] sm:$0x1]
        %v871 = vlaneseq
        %v872 = vshrl.u32 %v871, 7
        %v873 = vsub.s32 0, %v872
        %v874 = vrot.slane %v869, %v873
        %v876 = vmul.f32 %v861, %v874
        %v877 = vmul.f32 %v862, %v874
        %v878 = vmul.f32 %v863, %v874
        %v879 = vmul.f32 %v864, %v874
        %v880 = vmul.f32 %v865, %v874
        %v881 = vmul.f32 %v866, %v874
        %v882 = vmul.f32 %v867, %v874
        %v883 = vmul.f32 %v868, %v874
        %v884 = vld [vmem:[#allocation7] sm:$0x1]
        %v886 = vlaneseq
        %v887 = vshrl.u32 %v886, 7
        %v888 = vsub.s32 0, %v887
        %v889 = vrot.slane %v884, %v888
        %v891 = vadd.f32 %v876, %v889
        %v892 = vadd.f32 %v877, %v889
        %v893 = vadd.f32 %v878, %v889
        %v894 = vadd.f32 %v879, %v889
        %v895 = vadd.f32 %v880, %v889
        %v896 = vadd.f32 %v881, %v889
        %v897 = vadd.f32 %v882, %v889
        %v898 = vadd.f32 %v883, %v889
        %v899 = vpack.c.bf16 %v892, %v891
        %v900 = vpack.c.bf16 %v894, %v893
        %v901 = vpack.c.bf16 %v896, %v895
        %v902 = vpack.c.bf16 %v898, %v897
        %v903 = vld [vmem:[#allocation9] sm:$0xf]
        %v904 = vld [vmem:[#allocation9 + $0x4] sm:$0xf]
        %v905 = vld [vmem:[#allocation9 + $0x8] sm:$0xf]
        %v906 = vld [vmem:[#allocation9 + $0xc] sm:$0xf]
        %v907 = vld [vmem:[#allocation10] sm:$0x1]
        %v909 = vlaneseq
        %v910 = vshrl.u32 %v909, 7
        %v911 = vsub.s32 0, %v910
        %v912 = vrot.slane %v907, %v911
        %v918 = vunpack.c.l.b16 %v903
        %v919 = vunpack.c.l.b16 %v904
        %v920 = vunpack.c.l.b16 %v905
        %v921 = vunpack.c.l.b16 %v906
        %v922 = vpack.c.b16 %v919, %v918
        %v923 = vpack.c.b16 %v921, %v920
        %v927 = vsel %vm763, %v899, 0
        %v930 = vsel %vm763, %v900, 0
        %v933 = vsel %vm763, %v901, 0
        %v936 = vsel %vm763, %v902, 0
        %938 = vmatprep.subr.bf16.mxu0 0
        %939 = vmatpush1.bf16.msra.mxu0 %v922
        %940 = vmatprep.subr.bf16.mxu0 0
        %941 = vmatpush1.bf16.msra.mxu0 %v923
        %942 = vmatprep.subr.bf16.mxu0 0
        %943 = vmatpush1.bf16.msra.mxu0 0
        %944 = vmatprep.subr.bf16.mxu0 0
        %945 = vmatpush1.bf16.msra.mxu0 0
        %946 = vmatprep.subr.bf16.mxu0 0
        %947 = vmatpush1.bf16.msra.mxu0 0
        %948 = vmatprep.subr.bf16.mxu0 0
        %949 = vmatpush1.bf16.msra.mxu0 0
        %950 = vmatprep.subr.bf16.mxu0 0
        %951 = vmatpush1.bf16.msra.mxu0 0
        %952 = vmatprep.subr.bf16.mxu0 0
        %953 = vmatpush1.bf16.msra.mxu0 0
        %954 = vmatprep.subr.bf16.mxu0 0
        %955 = vmatpush1.bf16.msra.mxu0 0
        %956 = vmatprep.subr.bf16.mxu0 0
        %957 = vmatpush1.bf16.msra.mxu0 0
        %958 = vmatprep.subr.bf16.mxu0 0
        %959 = vmatpush1.bf16.msra.mxu0 0
        %960 = vmatprep.subr.bf16.mxu0 0
        %961 = vmatpush1.bf16.msra.mxu0 0
        %962 = vmatprep.subr.bf16.mxu0 0
        %963 = vmatpush1.bf16.msra.mxu0 0
        %964 = vmatprep.subr.bf16.mxu0 0
        %965 = vmatpush1.bf16.msra.mxu0 0
        %966 = vmatprep.subr.bf16.mxu0 0
        %967 = vmatpush1.bf16.msra.mxu0 0
        %968 = vmatprep.subr.bf16.mxu0 0
        %969 = vmatpush1.bf16.msra.mxu0 0
        %970 = vmatprep.mubr.bf16.mxu0 0
        %971 = vmatmul.mubr.bf16.gmra.mrb[0].mxu0 %v927
        %v972 = vpop.f32.mrb[0].mxu0
        %v973 = vadd.f32 %v912, %v972
        %v974 = vpop.f32.mrb[0].mxu0
        %v975 = vpop.f32.mrb[0].mxu0
        %v976 = vadd.f32 %v912, %v975
        %v977 = vpop.f32.mrb[0].mxu0
        %978 = vmatprep.mubr.bf16.mxu0 0
        %979 = vmatmul.mubr.bf16.gmra.mrb[0].mxu0 %v930
        %v980 = vpop.f32.mrb[0].mxu0
        %v981 = vadd.f32 %v912, %v980
        %v982 = vpop.f32.mrb[0].mxu0
        %v983 = vpop.f32.mrb[0].mxu0
        %v984 = vadd.f32 %v912, %v983
        %v985 = vpop.f32.mrb[0].mxu0
        %986 = vmatprep.mubr.bf16.mxu0 0
        %987 = vmatmul.mubr.bf16.gmra.mrb[0].mxu0 %v933
        %v988 = vpop.f32.mrb[0].mxu0
        %v989 = vadd.f32 %v912, %v988
        %v990 = vpop.f32.mrb[0].mxu0
        %v991 = vpop.f32.mrb[0].mxu0
        %v992 = vadd.f32 %v912, %v991
        %v993 = vpop.f32.mrb[0].mxu0
        %994 = vmatprep.mubr.bf16.mxu0 0
        %995 = vmatmul.mubr.bf16.gmra.mrb[0].mxu0 %v936
        %v996 = vpop.f32.mrb[0].mxu0
        %v997 = vadd.f32 %v912, %v996
        %v998 = vpop.f32.mrb[0].mxu0
        %v999 = vpop.f32.mrb[0].mxu0
        %v1000 = vadd.f32 %v912, %v999
        %v1001 = vpop.f32.mrb[0].mxu0
        %1002 = vdwg.mxu0
        %v1003 = vpack.c.bf16 %v976, %v973
        %v1004 = vpack.c.bf16 %v984, %v981
        %v1005 = vpack.c.bf16 %v992, %v989
        %v1006 = vpack.c.bf16 %v1000, %v997
        %v1007 = vld [vmem:[#allocation15] sm:$0xff]
        %v1008 = vld [vmem:[#allocation15 + $0x8] sm:$0xff]
        %v1009 = vld [vmem:[#allocation15 + $0x10] sm:$0xff]
        %v1010 = vld [vmem:[#allocation15 + $0x18] sm:$0xff]
        %1013 = vrot.lane.b32.xlu0 %v1003, 96
        %v1014 = vpop.permute.xlu0 %1013
        %1015 = vrot.lane.b32.xlu0 %v1004, 96
        %v1016 = vpop.permute.xlu0 %1015
        %vm1017 = vcmask 64512
        %v1019 = vsel %vm1017, %v1003, 0
        %v1022 = vsel %vm1017, %v1004, 0
        %v1025 = vsel %vm1017, %v1014, 0
        %v1028 = vsel %vm1017, %v1016, 0
        %1030 = vmatprep.subr.bf16.mxu0 0
        %1031 = vmatpush1.bf16.xpose.msra.mxu0 %v1025
        %1032 = vmatprep.subr.bf16.mxu0 0
        %1033 = vmatpush1.bf16.xpose.msra.mxu0 %v1028
        %1034 = vmatprep.subr.bf16.mxu0 0
        %1035 = vmatpush1.bf16.xpose.msra.mxu0 0
        %1036 = vmatprep.subr.bf16.mxu0 0
        %1037 = vmatpush1.bf16.xpose.msra.mxu0 0
        %1038 = vmatprep.subr.bf16.mxu0 0
        %1039 = vmatpush1.bf16.xpose.msra.mxu0 0
        %1040 = vmatprep.subr.bf16.mxu0 0
        %1041 = vmatpush1.bf16.xpose.msra.mxu0 0
        %1042 = vmatprep.subr.bf16.mxu0 0
        %1043 = vmatpush1.bf16.xpose.msra.mxu0 0
        %1044 = vmatprep.subr.bf16.mxu0 0
        %1045 = vmatpush1.bf16.xpose.msra.mxu0 0
        %1046 = vmatprep.subr.bf16.mxu0 0
        %1047 = vmatpush1.bf16.xpose.msra.mxu0 0
        %1048 = vmatprep.subr.bf16.mxu0 0
        %1049 = vmatpush1.bf16.xpose.msra.mxu0 0
        %1050 = vmatprep.subr.bf16.mxu0 0
        %1051 = vmatpush1.bf16.xpose.msra.mxu0 0
        %1052 = vmatprep.subr.bf16.mxu0 0
        %1053 = vmatpush1.bf16.xpose.msra.mxu0 0
        %1054 = vmatprep.subr.bf16.mxu0 0
        %1055 = vmatpush1.bf16.xpose.msra.mxu0 0
        %1056 = vmatprep.subr.bf16.mxu0 0
        %1057 = vmatpush1.bf16.xpose.msra.mxu0 0
        %1058 = vmatprep.subr.bf16.mxu0 0
        %1059 = vmatpush1.bf16.xpose.msra.mxu0 0
        %1060 = vmatprep.subr.bf16.mxu0 0
        %1061 = vmatpush1.bf16.xpose.msra.mxu0 0
        %1062 = vmatprep.mubr.bf16.mxu0 0
        %1063 = vmatmul.mubr.bf16.gmra.mrb[0].mxu0 %v1019
        %v1064 = vpop.f32.mrb[0].mxu0
        %v1065 = vadd.f32 %v1007, %v1064
        %v1066 = vpop.f32.mrb[0].mxu0
        %v1067 = vpop.f32.mrb[0].mxu0
        %v1068 = vadd.f32 %v1008, %v1067
        %v1069 = vpop.f32.mrb[0].mxu0
        %1070 = vmatprep.mubr.bf16.mxu0 0
        %1071 = vmatmul.mubr.bf16.gmra.mrb[0].mxu0 %v1022
        %v1072 = vpop.f32.mrb[0].mxu0
        %v1073 = vadd.f32 %v1009, %v1072
        %v1074 = vpop.f32.mrb[0].mxu0
        %v1075 = vpop.f32.mrb[0].mxu0
        %v1076 = vadd.f32 %v1010, %v1075
        %v1077 = vpop.f32.mrb[0].mxu0
        %1078 = vdwg.mxu0
        %1081 = vrot.lane.b32.xlu0 %v1005, 96
        %v1082 = vpop.permute.xlu0 %1081
        %1083 = vrot.lane.b32.xlu0 %v1006, 96
        %v1084 = vpop.permute.xlu0 %1083
        %v1086 = vsel %vm1017, %v1005, 0
        %v1089 = vsel %vm1017, %v1006, 0
        %v1092 = vsel %vm1017, %v1082, 0
        %v1095 = vsel %vm1017, %v1084, 0
        %1097 = vmatprep.subr.bf16.mxu0 0
        %1098 = vmatpush1.bf16.xpose.msra.mxu0 %v1092
        %1099 = vmatprep.subr.bf16.mxu0 0
        %1100 = vmatpush1.bf16.xpose.msra.mxu0 %v1095
        %1101 = vmatprep.subr.bf16.mxu0 0
        %1102 = vmatpush1.bf16.xpose.msra.mxu0 0
        %1103 = vmatprep.subr.bf16.mxu0 0
        %1104 = vmatpush1.bf16.xpose.msra.mxu0 0
        %1105 = vmatprep.subr.bf16.mxu0 0
        %1106 = vmatpush1.bf16.xpose.msra.mxu0 0
        %1107 = vmatprep.subr.bf16.mxu0 0
        %1108 = vmatpush1.bf16.xpose.msra.mxu0 0
        %1109 = vmatprep.subr.bf16.mxu0 0
        %1110 = vmatpush1.bf16.xpose.msra.mxu0 0
        %1111 = vmatprep.subr.bf16.mxu0 0
        %1112 = vmatpush1.bf16.xpose.msra.mxu0 0
        %1113 = vmatprep.subr.bf16.mxu0 0
        %1114 = vmatpush1.bf16.xpose.msra.mxu0 0
        %1115 = vmatprep.subr.bf16.mxu0 0
        %1116 = vmatpush1.bf16.xpose.msra.mxu0 0
        %1117 = vmatprep.subr.bf16.mxu0 0
        %1118 = vmatpush1.bf16.xpose.msra.mxu0 0
        %1119 = vmatprep.subr.bf16.mxu0 0
        %1120 = vmatpush1.bf16.xpose.msra.mxu0 0
        %1121 = vmatprep.subr.bf16.mxu0 0
        %1122 = vmatpush1.bf16.xpose.msra.mxu0 0
        %1123 = vmatprep.subr.bf16.mxu0 0
        %1124 = vmatpush1.bf16.xpose.msra.mxu0 0
        %1125 = vmatprep.subr.bf16.mxu0 0
        %1126 = vmatpush1.bf16.xpose.msra.mxu0 0
        %1127 = vmatprep.subr.bf16.mxu0 0
        %1128 = vmatpush1.bf16.xpose.msra.mxu0 0
        %1129 = vmatprep.mubr.bf16.mxu0 0
        %1130 = vmatmul.mubr.bf16.gmra.mrb[0].mxu0 %v1086
        %v1131 = vpop.f32.mrb[0].mxu0
        %v1132 = vadd.f32 %v1007, %v1131
        %v1133 = vpop.f32.mrb[0].mxu0
        %v1134 = vpop.f32.mrb[0].mxu0
        %v1135 = vadd.f32 %v1008, %v1134
        %v1136 = vpop.f32.mrb[0].mxu0
        %1137 = vmatprep.mubr.bf16.mxu0 0
        %1138 = vmatmul.mubr.bf16.gmra.mrb[0].mxu0 %v1089
        %v1139 = vpop.f32.mrb[0].mxu0
        %v1140 = vadd.f32 %v1009, %v1139
        %v1141 = vpop.f32.mrb[0].mxu0
        %v1142 = vpop.f32.mrb[0].mxu0
        %v1143 = vadd.f32 %v1010, %v1142
        %v1144 = vpop.f32.mrb[0].mxu0
        %1145 = vdwg.mxu0
        %v1146 = vsel %vm763, %v1065, -inf
        %1147 = vmax.xlane.f32.xlu0 %v1146
        %v1148 = vpop.xlane.xlu0 %1147
        %v1149 = vsel %vm763, %v1068, -inf
        %1150 = vmax.xlane.f32.xlu0 %v1149
        %v1151 = vpop.xlane.xlu0 %1150
        %v1152 = vsel %vm763, %v1073, -inf
        %1153 = vmax.xlane.f32.xlu0 %v1152
        %v1154 = vpop.xlane.xlu0 %1153
        %v1155 = vsel %vm763, %v1076, -inf
        %1156 = vmax.xlane.f32.xlu0 %v1155
        %v1157 = vpop.xlane.xlu0 %1156
        %v1158 = vsel %vm763, %v1132, -inf
        %1159 = vmax.xlane.f32.xlu0 %v1158
        %v1160 = vpop.xlane.xlu0 %1159
        %v1161 = vsel %vm763, %v1135, -inf
        %1162 = vmax.xlane.f32.xlu0 %v1161
        %v1163 = vpop.xlane.xlu0 %1162
        %v1164 = vsel %vm763, %v1140, -inf
        %1165 = vmax.xlane.f32.xlu0 %v1164
        %v1166 = vpop.xlane.xlu0 %1165
        %v1167 = vsel %vm763, %v1143, -inf
        %1168 = vmax.xlane.f32.xlu0 %v1167
        %v1169 = vpop.xlane.xlu0 %1168
        %v1170 = vsub.f32 %v1065, %v1148
        %v1171 = vsub.f32 %v1068, %v1151
        %v1172 = vsub.f32 %v1073, %v1154
        %v1173 = vsub.f32 %v1076, %v1157
        %v1174 = vsub.f32 %v1132, %v1160
        %v1175 = vsub.f32 %v1135, %v1163
        %v1176 = vsub.f32 %v1140, %v1166
        %v1177 = vsub.f32 %v1143, %v1169
        %v1178 = vmul.f32 %v1170, 1.442695
        %v1179 = vpow.pop %v1178
        %v1180 = vmul.f32 %v1171, 1.442695
        %v1181 = vpow.pop %v1180
        %v1182 = vmul.f32 %v1172, 1.442695
        %v1183 = vpow.pop %v1182
        %v1184 = vmul.f32 %v1173, 1.442695
        %v1185 = vpow.pop %v1184
        %v1186 = vmul.f32 %v1174, 1.442695
        %v1187 = vpow.pop %v1186
        %v1188 = vmul.f32 %v1175, 1.442695
        %v1189 = vpow.pop %v1188
        %v1190 = vmul.f32 %v1176, 1.442695
        %v1191 = vpow.pop %v1190
        %v1192 = vmul.f32 %v1177, 1.442695
        %v1193 = vpow.pop %v1192
        %v1194 = vsel %vm763, %v1179, 0.0
        %1195 = vadd.xlane.f32.xlu0 %v1194
        %v1196 = vpop.xlane.xlu0 %1195
        %v1197 = vsel %vm763, %v1181, 0.0
        %1198 = vadd.xlane.f32.xlu0 %v1197
        %v1199 = vpop.xlane.xlu0 %1198
        %v1200 = vsel %vm763, %v1183, 0.0
        %1201 = vadd.xlane.f32.xlu0 %v1200
        %v1202 = vpop.xlane.xlu0 %1201
        %v1203 = vsel %vm763, %v1185, 0.0
        %1204 = vadd.xlane.f32.xlu0 %v1203
        %v1205 = vpop.xlane.xlu0 %1204
        %v1206 = vsel %vm763, %v1187, 0.0
        %1207 = vadd.xlane.f32.xlu0 %v1206
        %v1208 = vpop.xlane.xlu0 %1207
        %v1209 = vsel %vm763, %v1189, 0.0
        %1210 = vadd.xlane.f32.xlu0 %v1209
        %v1211 = vpop.xlane.xlu0 %1210
        %v1212 = vsel %vm763, %v1191, 0.0
        %1213 = vadd.xlane.f32.xlu0 %v1212
        %v1214 = vpop.xlane.xlu0 %1213
        %v1215 = vsel %vm763, %v1193, 0.0
        %1216 = vadd.xlane.f32.xlu0 %v1215
        %v1217 = vpop.xlane.xlu0 %1216
        %v1218 = vrcp.pop %v1196
        %v1219 = vrcp.pop %v1199
        %v1220 = vrcp.pop %v1202
        %v1221 = vrcp.pop %v1205
        %v1222 = vrcp.pop %v1208
        %v1223 = vrcp.pop %v1211
        %v1224 = vrcp.pop %v1214
        %v1225 = vrcp.pop %v1217
        %v1226 = vmul.f32 %v1179, %v1218
        %v1227 = vmul.f32 %v1181, %v1219
        %v1228 = vmul.f32 %v1183, %v1220
        %v1229 = vmul.f32 %v1185, %v1221
        %v1230 = vmul.f32 %v1187, %v1222
        %v1231 = vmul.f32 %v1189, %v1223
        %v1232 = vmul.f32 %v1191, %v1224
        %v1233 = vmul.f32 %v1193, %v1225
        %v1234 = vadd.f32 %v1226, 0.0
        %v1235 = vadd.f32 %v1230, 0.0
        %v1236 = vpack.c.bf16 %v1227, %v1226
        %v1237 = vpack.c.bf16 %v1229, %v1228
        %v1238 = vpack.c.bf16 %v1231, %v1230
        %v1239 = vpack.c.bf16 %v1233, %v1232
        %1240 = vrot.lane.b32.xlu0 %v1003, 64
        %v1241 = vpop.permute.xlu0 %1240
        %1242 = vrot.lane.b32.xlu0 %v1004, 64
        %v1243 = vpop.permute.xlu0 %1242
        %v1247 = vsel %vm763, %v1236, 0
        %v1250 = vsel %vm763, %v1237, 0
        %1252 = vmatprep.subr.bf16.mxu0 0
        %1253 = vmatpush1.bf16.msra.mxu0 %v1241
        %1254 = vmatprep.subr.bf16.mxu0 0
        %1255 = vmatpush1.bf16.msra.mxu0 %v1243
        %1256 = vmatprep.subr.bf16.mxu0 0
        %1257 = vmatpush1.bf16.msra.mxu0 0
        %1258 = vmatprep.subr.bf16.mxu0 0
        %1259 = vmatpush1.bf16.msra.mxu0 0
        %1260 = vmatprep.subr.bf16.mxu0 0
        %1261 = vmatpush1.bf16.msra.mxu0 0
        %1262 = vmatprep.subr.bf16.mxu0 0
        %1263 = vmatpush1.bf16.msra.mxu0 0
        %1264 = vmatprep.subr.bf16.mxu0 0
        %1265 = vmatpush1.bf16.msra.mxu0 0
        %1266 = vmatprep.subr.bf16.mxu0 0
        %1267 = vmatpush1.bf16.msra.mxu0 0
        %1268 = vmatprep.subr.bf16.mxu0 0
        %1269 = vmatpush1.bf16.msra.mxu0 0
        %1270 = vmatprep.subr.bf16.mxu0 0
        %1271 = vmatpush1.bf16.msra.mxu0 0
        %1272 = vmatprep.subr.bf16.mxu0 0
        %1273 = vmatpush1.bf16.msra.mxu0 0
        %1274 = vmatprep.subr.bf16.mxu0 0
        %1275 = vmatpush1.bf16.msra.mxu0 0
        %1276 = vmatprep.subr.bf16.mxu0 0
        %1277 = vmatpush1.bf16.msra.mxu0 0
        %1278 = vmatprep.subr.bf16.mxu0 0
        %1279 = vmatpush1.bf16.msra.mxu0 0
        %1280 = vmatprep.subr.bf16.mxu0 0
        %1281 = vmatpush1.bf16.msra.mxu0 0
        %1282 = vmatprep.subr.bf16.mxu0 0
        %1283 = vmatpush1.bf16.msra.mxu0 0
        %1284 = vmatprep.mubr.bf16.mxu0 0
        %1285 = vmatmul.mubr.bf16.gmra.mrb[0].mxu0 %v1247
        %v1286 = vpop.f32.mrb[0].mxu0
        %v1287 = vadd.f32 0.0, %v1286
        %v1288 = vpop.f32.mrb[0].mxu0
        %v1289 = vpop.f32.mrb[0].mxu0
        %v1290 = vadd.f32 0.0, %v1289
        %v1291 = vpop.f32.mrb[0].mxu0
        %1292 = vmatprep.mubr.bf16.mxu0 0
        %1293 = vmatmul.mubr.bf16.gmra.mrb[0].mxu0 %v1250
        %v1294 = vpop.f32.mrb[0].mxu0
        %v1295 = vadd.f32 0.0, %v1294
        %v1296 = vpop.f32.mrb[0].mxu0
        %v1297 = vpop.f32.mrb[0].mxu0
        %v1298 = vadd.f32 0.0, %v1297
        %v1299 = vpop.f32.mrb[0].mxu0
        %1300 = vdwg.mxu0
        %1301 = vrot.lane.b32.xlu0 %v1005, 64
        %v1302 = vpop.permute.xlu0 %1301
        %1303 = vrot.lane.b32.xlu0 %v1006, 64
        %v1304 = vpop.permute.xlu0 %1303
        %v1308 = vsel %vm763, %v1238, 0
        %v1311 = vsel %vm763, %v1239, 0
        %1313 = vmatprep.subr.bf16.mxu0 0
        %1314 = vmatpush1.bf16.msra.mxu0 %v1302
        %1315 = vmatprep.subr.bf16.mxu0 0
        %1316 = vmatpush1.bf16.msra.mxu0 %v1304
        %1317 = vmatprep.subr.bf16.mxu0 0
        %1318 = vmatpush1.bf16.msra.mxu0 0
        %1319 = vmatprep.subr.bf16.mxu0 0
        %1320 = vmatpush1.bf16.msra.mxu0 0
        %1321 = vmatprep.subr.bf16.mxu0 0
        %1322 = vmatpush1.bf16.msra.mxu0 0
        %1323 = vmatprep.subr.bf16.mxu0 0
        %1324 = vmatpush1.bf16.msra.mxu0 0
        %1325 = vmatprep.subr.bf16.mxu0 0
        %1326 = vmatpush1.bf16.msra.mxu0 0
        %1327 = vmatprep.subr.bf16.mxu0 0
        %1328 = vmatpush1.bf16.msra.mxu0 0
        %1329 = vmatprep.subr.bf16.mxu0 0
        %1330 = vmatpush1.bf16.msra.mxu0 0
        %1331 = vmatprep.subr.bf16.mxu0 0
        %1332 = vmatpush1.bf16.msra.mxu0 0
        %1333 = vmatprep.subr.bf16.mxu0 0
        %1334 = vmatpush1.bf16.msra.mxu0 0
        %1335 = vmatprep.subr.bf16.mxu0 0
        %1336 = vmatpush1.bf16.msra.mxu0 0
        %1337 = vmatprep.subr.bf16.mxu0 0
        %1338 = vmatpush1.bf16.msra.mxu0 0
        %1339 = vmatprep.subr.bf16.mxu0 0
        %1340 = vmatpush1.bf16.msra.mxu0 0
        %1341 = vmatprep.subr.bf16.mxu0 0
        %1342 = vmatpush1.bf16.msra.mxu0 0
        %1343 = vmatprep.subr.bf16.mxu0 0
        %1344 = vmatpush1.bf16.msra.mxu0 0
        %1345 = vmatprep.mubr.bf16.mxu0 0
        %1346 = vmatmul.mubr.bf16.gmra.mrb[0].mxu0 %v1308
        %v1347 = vpop.f32.mrb[0].mxu0
        %v1348 = vadd.f32 0.0, %v1347
        %v1349 = vpop.f32.mrb[0].mxu0
        %v1350 = vpop.f32.mrb[0].mxu0
        %v1351 = vadd.f32 0.0, %v1350
        %v1352 = vpop.f32.mrb[0].mxu0
        %1353 = vmatprep.mubr.bf16.mxu0 0
        %1354 = vmatmul.mubr.bf16.gmra.mrb[0].mxu0 %v1311
        %v1355 = vpop.f32.mrb[0].mxu0
        %v1356 = vadd.f32 0.0, %v1355
        %v1357 = vpop.f32.mrb[0].mxu0
        %v1358 = vpop.f32.mrb[0].mxu0
        %v1359 = vadd.f32 0.0, %v1358
        %v1360 = vpop.f32.mrb[0].mxu0
        %1361 = vdwg.mxu0
        %1362 = vst.msk [vmem:[#allocation2] sm:$0xff] %vm1017, %v1287
        %1363 = vst.msk [vmem:[#allocation2 + $0x8] sm:$0xff] %vm1017, %v1290
        %1364 = vst.msk [vmem:[#allocation2 + $0x10] sm:$0xff] %vm1017, %v1295
        %1365 = vst.msk [vmem:[#allocation2 + $0x18] sm:$0xff] %vm1017, %v1298
        %1366 = vst.msk [vmem:[#allocation2 + $0x20] sm:$0xff] %vm1017, %v1348
        %1367 = vst.msk [vmem:[#allocation2 + $0x28] sm:$0xff] %vm1017, %v1351
        %1368 = vst.msk [vmem:[#allocation2 + $0x30] sm:$0xff] %vm1017, %v1356
        %1369 = vst.msk [vmem:[#allocation2 + $0x38] sm:$0xff] %vm1017, %v1359
        %s1370 = scalar_lea.vmem [#allocation15], 32
        %v1371 = vld [vmem:[%s1370] sm:$0xff]
        %v1372 = vld [vmem:[%s1370 + $0x8] sm:$0xff]
        %v1373 = vld [vmem:[%s1370 + $0x10] sm:$0xff]
        %v1374 = vld [vmem:[%s1370 + $0x18] sm:$0xff]
        %1375 = vrot.lane.b32.xlu0 %v1003, 120
        %v1376 = vpop.permute.xlu0 %1375
        %1377 = vrot.lane.b32.xlu0 %v1004, 120
        %v1378 = vpop.permute.xlu0 %1377
        %1379 = vrot.lane.b32.xlu0 %v1003, 88
        %v1380 = vpop.permute.xlu0 %1379
        %1381 = vrot.lane.b32.xlu0 %v1004, 88
        %v1382 = vpop.permute.xlu0 %1381
        %v1384 = vsel %vm1017, %v1376, 0
        %v1387 = vsel %vm1017, %v1378, 0
        %v1390 = vsel %vm1017, %v1380, 0
        %v1393 = vsel %vm1017, %v1382, 0
        %1395 = vmatprep.subr.bf16.mxu0 0
        %1396 = vmatpush1.bf16.xpose.msra.mxu0 %v1390
        %1397 = vmatprep.subr.bf16.mxu0 0
        %1398 = vmatpush1.bf16.xpose.msra.mxu0 %v1393
        %1399 = vmatprep.subr.bf16.mxu0 0
        %1400 = vmatpush1.bf16.xpose.msra.mxu0 0
        %1401 = vmatprep.subr.bf16.mxu0 0
        %1402 = vmatpush1.bf16.xpose.msra.mxu0 0
        %1403 = vmatprep.subr.bf16.mxu0 0
        %1404 = vmatpush1.bf16.xpose.msra.mxu0 0
        %1405 = vmatprep.subr.bf16.mxu0 0
        %1406 = vmatpush1.bf16.xpose.msra.mxu0 0
        %1407 = vmatprep.subr.bf16.mxu0 0
        %1408 = vmatpush1.bf16.xpose.msra.mxu0 0
        %1409 = vmatprep.subr.bf16.mxu0 0
        %1410 = vmatpush1.bf16.xpose.msra.mxu0 0
        %1411 = vmatprep.subr.bf16.mxu0 0
        %1412 = vmatpush1.bf16.xpose.msra.mxu0 0
        %1413 = vmatprep.subr.bf16.mxu0 0
        %1414 = vmatpush1.bf16.xpose.msra.mxu0 0
        %1415 = vmatprep.subr.bf16.mxu0 0
        %1416 = vmatpush1.bf16.xpose.msra.mxu0 0
        %1417 = vmatprep.subr.bf16.mxu0 0
        %1418 = vmatpush1.bf16.xpose.msra.mxu0 0
        %1419 = vmatprep.subr.bf16.mxu0 0
        %1420 = vmatpush1.bf16.xpose.msra.mxu0 0
        %1421 = vmatprep.subr.bf16.mxu0 0
        %1422 = vmatpush1.bf16.xpose.msra.mxu0 0
        %1423 = vmatprep.subr.bf16.mxu0 0
        %1424 = vmatpush1.bf16.xpose.msra.mxu0 0
        %1425 = vmatprep.subr.bf16.mxu0 0
        %1426 = vmatpush1.bf16.xpose.msra.mxu0 0
        %1427 = vmatprep.mubr.bf16.mxu0 0
        %1428 = vmatmul.mubr.bf16.gmra.mrb[0].mxu0 %v1384
        %v1429 = vpop.f32.mrb[0].mxu0
        %v1430 = vadd.f32 %v1371, %v1429
        %v1431 = vpop.f32.mrb[0].mxu0
        %v1432 = vpop.f32.mrb[0].mxu0
        %v1433 = vadd.f32 %v1372, %v1432
        %v1434 = vpop.f32.mrb[0].mxu0
        %1435 = vmatprep.mubr.bf16.mxu0 0
        %1436 = vmatmul.mubr.bf16.gmra.mrb[0].mxu0 %v1387
        %v1437 = vpop.f32.mrb[0].mxu0
        %v1438 = vadd.f32 %v1373, %v1437
        %v1439 = vpop.f32.mrb[0].mxu0
        %v1440 = vpop.f32.mrb[0].mxu0
        %v1441 = vadd.f32 %v1374, %v1440
        %v1442 = vpop.f32.mrb[0].mxu0
        %1443 = vdwg.mxu0
        %1444 = vrot.lane.b32.xlu0 %v1005, 120
        %v1445 = vpop.permute.xlu0 %1444
        %1446 = vrot.lane.b32.xlu0 %v1006, 120
        %v1447 = vpop.permute.xlu0 %1446
        %1448 = vrot.lane.b32.xlu0 %v1005, 88
        %v1449 = vpop.permute.xlu0 %1448
        %1450 = vrot.lane.b32.xlu0 %v1006, 88
        %v1451 = vpop.permute.xlu0 %1450
        %v1453 = vsel %vm1017, %v1445, 0
        %v1456 = vsel %vm1017, %v1447, 0
        %v1459 = vsel %vm1017, %v1449, 0
        %v1462 = vsel %vm1017, %v1451, 0
        %1464 = vmatprep.subr.bf16.mxu0 0
        %1465 = vmatpush1.bf16.xpose.msra.mxu0 %v1459
        %1466 = vmatprep.subr.bf16.mxu0 0
        %1467 = vmatpush1.bf16.xpose.msra.mxu0 %v1462
        %1468 = vmatprep.subr.bf16.mxu0 0
        %1469 = vmatpush1.bf16.xpose.msra.mxu0 0
        %1470 = vmatprep.subr.bf16.mxu0 0
        %1471 = vmatpush1.bf16.xpose.msra.mxu0 0
        %1472 = vmatprep.subr.bf16.mxu0 0
        %1473 = vmatpush1.bf16.xpose.msra.mxu0 0
        %1474 = vmatprep.subr.bf16.mxu0 0
        %1475 = vmatpush1.bf16.xpose.msra.mxu0 0
        %1476 = vmatprep.subr.bf16.mxu0 0
        %1477 = vmatpush1.bf16.xpose.msra.mxu0 0
        %1478 = vmatprep.subr.bf16.mxu0 0
        %1479 = vmatpush1.bf16.xpose.msra.mxu0 0
        %1480 = vmatprep.subr.bf16.mxu0 0
        %1481 = vmatpush1.bf16.xpose.msra.mxu0 0
        %1482 = vmatprep.subr.bf16.mxu0 0
        %1483 = vmatpush1.bf16.xpose.msra.mxu0 0
        %1484 = vmatprep.subr.bf16.mxu0 0
        %1485 = vmatpush1.bf16.xpose.msra.mxu0 0
        %1486 = vmatprep.subr.bf16.mxu0 0
        %1487 = vmatpush1.bf16.xpose.msra.mxu0 0
        %1488 = vmatprep.subr.bf16.mxu0 0
        %1489 = vmatpush1.bf16.xpose.msra.mxu0 0
        %1490 = vmatprep.subr.bf16.mxu0 0
        %1491 = vmatpush1.bf16.xpose.msra.mxu0 0
        %1492 = vmatprep.subr.bf16.mxu0 0
        %1493 = vmatpush1.bf16.xpose.msra.mxu0 0
        %1494 = vmatprep.subr.bf16.mxu0 0
        %1495 = vmatpush1.bf16.xpose.msra.mxu0 0
        %1496 = vmatprep.mubr.bf16.mxu0 0
        %1497 = vmatmul.mubr.bf16.gmra.mrb[0].mxu0 %v1453
        %v1498 = vpop.f32.mrb[0].mxu0
        %v1499 = vadd.f32 %v1371, %v1498
        %v1500 = vpop.f32.mrb[0].mxu0
        %v1501 = vpop.f32.mrb[0].mxu0
        %v1502 = vadd.f32 %v1372, %v1501
        %v1503 = vpop.f32.mrb[0].mxu0
        %1504 = vmatprep.mubr.bf16.mxu0 0
        %1505 = vmatmul.mubr.bf16.gmra.mrb[0].mxu0 %v1456
        %v1506 = vpop.f32.mrb[0].mxu0
        %v1507 = vadd.f32 %v1373, %v1506
        %v1508 = vpop.f32.mrb[0].mxu0
        %v1509 = vpop.f32.mrb[0].mxu0
        %v1510 = vadd.f32 %v1374, %v1509
        %v1511 = vpop.f32.mrb[0].mxu0
        %1512 = vdwg.mxu0
        %v1513 = vsel %vm763, %v1430, -inf
        %1514 = vmax.xlane.f32.xlu0 %v1513
        %v1515 = vpop.xlane.xlu0 %1514
        %v1516 = vsel %vm763, %v1433, -inf
        %1517 = vmax.xlane.f32.xlu0 %v1516
        %v1518 = vpop.xlane.xlu0 %1517
        %v1519 = vsel %vm763, %v1438, -inf
        %1520 = vmax.xlane.f32.xlu0 %v1519
        %v1521 = vpop.xlane.xlu0 %1520
        %v1522 = vsel %vm763, %v1441, -inf
        %1523 = vmax.xlane.f32.xlu0 %v1522
        %v1524 = vpop.xlane.xlu0 %1523
        %v1525 = vsel %vm763, %v1499, -inf
        %1526 = vmax.xlane.f32.xlu0 %v1525
        %v1527 = vpop.xlane.xlu0 %1526
        %v1528 = vsel %vm763, %v1502, -inf
        %1529 = vmax.xlane.f32.xlu0 %v1528
        %v1530 = vpop.xlane.xlu0 %1529
        %v1531 = vsel %vm763, %v1507, -inf
        %1532 = vmax.xlane.f32.xlu0 %v1531
        %v1533 = vpop.xlane.xlu0 %1532
        %v1534 = vsel %vm763, %v1510, -inf
        %1535 = vmax.xlane.f32.xlu0 %v1534
        %v1536 = vpop.xlane.xlu0 %1535
        %v1537 = vsub.f32 %v1430, %v1515
        %v1538 = vsub.f32 %v1433, %v1518
        %v1539 = vsub.f32 %v1438, %v1521
        %v1540 = vsub.f32 %v1441, %v1524
        %v1541 = vsub.f32 %v1499, %v1527
        %v1542 = vsub.f32 %v1502, %v1530
        %v1543 = vsub.f32 %v1507, %v1533
        %v1544 = vsub.f32 %v1510, %v1536
        %v1545 = vmul.f32 %v1537, 1.442695
        %v1546 = vpow.pop %v1545
        %v1547 = vmul.f32 %v1538, 1.442695
        %v1548 = vpow.pop %v1547
        %v1549 = vmul.f32 %v1539, 1.442695
        %v1550 = vpow.pop %v1549
        %v1551 = vmul.f32 %v1540, 1.442695
        %v1552 = vpow.pop %v1551
        %v1553 = vmul.f32 %v1541, 1.442695
        %v1554 = vpow.pop %v1553
        %v1555 = vmul.f32 %v1542, 1.442695
        %v1556 = vpow.pop %v1555
        %v1557 = vmul.f32 %v1543, 1.442695
        %v1558 = vpow.pop %v1557
        %v1559 = vmul.f32 %v1544, 1.442695
        %v1560 = vpow.pop %v1559
        %v1561 = vsel %vm763, %v1546, 0.0
        %1562 = vadd.xlane.f32.xlu0 %v1561
        %v1563 = vpop.xlane.xlu0 %1562
        %v1564 = vsel %vm763, %v1548, 0.0
        %1565 = vadd.xlane.f32.xlu0 %v1564
        %v1566 = vpop.xlane.xlu0 %1565
        %v1567 = vsel %vm763, %v1550, 0.0
        %1568 = vadd.xlane.f32.xlu0 %v1567
        %v1569 = vpop.xlane.xlu0 %1568
        %v1570 = vsel %vm763, %v1552, 0.0
        %1571 = vadd.xlane.f32.xlu0 %v1570
        %v1572 = vpop.xlane.xlu0 %1571
        %v1573 = vsel %vm763, %v1554, 0.0
        %1574 = vadd.xlane.f32.xlu0 %v1573
        %v1575 = vpop.xlane.xlu0 %1574
        %v1576 = vsel %vm763, %v1556, 0.0
        %1577 = vadd.xlane.f32.xlu0 %v1576
        %v1578 = vpop.xlane.xlu0 %1577
        %v1579 = vsel %vm763, %v1558, 0.0
        %1580 = vadd.xlane.f32.xlu0 %v1579
        %v1581 = vpop.xlane.xlu0 %1580
        %v1582 = vsel %vm763, %v1560, 0.0
        %1583 = vadd.xlane.f32.xlu0 %v1582
        %v1584 = vpop.xlane.xlu0 %1583
        %v1585 = vrcp.pop %v1563
        %v1586 = vrcp.pop %v1566
        %v1587 = vrcp.pop %v1569
        %v1588 = vrcp.pop %v1572
        %v1589 = vrcp.pop %v1575
        %v1590 = vrcp.pop %v1578
        %v1591 = vrcp.pop %v1581
        %v1592 = vrcp.pop %v1584
        %v1593 = vmul.f32 %v1546, %v1585
        %v1594 = vmul.f32 %v1548, %v1586
        %v1595 = vmul.f32 %v1550, %v1587
        %v1596 = vmul.f32 %v1552, %v1588
        %v1597 = vmul.f32 %v1554, %v1589
        %v1598 = vmul.f32 %v1556, %v1590
        %v1599 = vmul.f32 %v1558, %v1591
        %v1600 = vmul.f32 %v1560, %v1592
        %v1601 = vadd.f32 %v1234, %v1593
        %v1602 = vadd.f32 %v1235, %v1597
        %v1603 = vpack.c.bf16 %v1594, %v1593
        %v1604 = vpack.c.bf16 %v1596, %v1595
        %v1605 = vpack.c.bf16 %v1598, %v1597
        %v1606 = vpack.c.bf16 %v1600, %v1599
        %1607 = vrot.lane.b32.xlu0 %v1003, 56
        %v1608 = vpop.permute.xlu0 %1607
        %1609 = vrot.lane.b32.xlu0 %v1004, 56
        %v1610 = vpop.permute.xlu0 %1609
        %v1614 = vsel %vm763, %v1603, 0
        %v1617 = vsel %vm763, %v1604, 0
        %1619 = vmatprep.subr.bf16.mxu0 0
        %1620 = vmatpush1.bf16.msra.mxu0 %v1608
        %1621 = vmatprep.subr.bf16.mxu0 0
        %1622 = vmatpush1.bf16.msra.mxu0 %v1610
        %1623 = vmatprep.subr.bf16.mxu0 0
        %1624 = vmatpush1.bf16.msra.mxu0 0
        %1625 = vmatprep.subr.bf16.mxu0 0
        %1626 = vmatpush1.bf16.msra.mxu0 0
        %1627 = vmatprep.subr.bf16.mxu0 0
        %1628 = vmatpush1.bf16.msra.mxu0 0
        %1629 = vmatprep.subr.bf16.mxu0 0
        %1630 = vmatpush1.bf16.msra.mxu0 0
        %1631 = vmatprep.subr.bf16.mxu0 0
        %1632 = vmatpush1.bf16.msra.mxu0 0
        %1633 = vmatprep.subr.bf16.mxu0 0
        %1634 = vmatpush1.bf16.msra.mxu0 0
        %1635 = vmatprep.subr.bf16.mxu0 0
        %1636 = vmatpush1.bf16.msra.mxu0 0
        %1637 = vmatprep.subr.bf16.mxu0 0
        %1638 = vmatpush1.bf16.msra.mxu0 0
        %1639 = vmatprep.subr.bf16.mxu0 0
        %1640 = vmatpush1.bf16.msra.mxu0 0
        %1641 = vmatprep.subr.bf16.mxu0 0
        %1642 = vmatpush1.bf16.msra.mxu0 0
        %1643 = vmatprep.subr.bf16.mxu0 0
        %1644 = vmatpush1.bf16.msra.mxu0 0
        %1645 = vmatprep.subr.bf16.mxu0 0
        %1646 = vmatpush1.bf16.msra.mxu0 0
        %1647 = vmatprep.subr.bf16.mxu0 0
        %1648 = vmatpush1.bf16.msra.mxu0 0
        %1649 = vmatprep.subr.bf16.mxu0 0
        %1650 = vmatpush1.bf16.msra.mxu0 0
        %1651 = vmatprep.mubr.bf16.mxu0 0
        %1652 = vmatmul.mubr.bf16.gmra.mrb[0].mxu0 %v1614
        %v1653 = vpop.f32.mrb[0].mxu0
        %v1654 = vadd.f32 0.0, %v1653
        %v1655 = vpop.f32.mrb[0].mxu0
        %v1656 = vpop.f32.mrb[0].mxu0
        %v1657 = vadd.f32 0.0, %v1656
        %v1658 = vpop.f32.mrb[0].mxu0
        %1659 = vmatprep.mubr.bf16.mxu0 0
        %1660 = vmatmul.mubr.bf16.gmra.mrb[0].mxu0 %v1617
        %v1661 = vpop.f32.mrb[0].mxu0
        %v1662 = vadd.f32 0.0, %v1661
        %v1663 = vpop.f32.mrb[0].mxu0
        %v1664 = vpop.f32.mrb[0].mxu0
        %v1665 = vadd.f32 0.0, %v1664
        %v1666 = vpop.f32.mrb[0].mxu0
        %1667 = vdwg.mxu0
        %1668 = vrot.lane.b32.xlu0 %v1005, 56
        %v1669 = vpop.permute.xlu0 %1668
        %1670 = vrot.lane.b32.xlu0 %v1006, 56
        %v1671 = vpop.permute.xlu0 %1670
        %v1675 = vsel %vm763, %v1605, 0
        %v1678 = vsel %vm763, %v1606, 0
        %1680 = vmatprep.subr.bf16.mxu0 0
        %1681 = vmatpush1.bf16.msra.mxu0 %v1669
        %1682 = vmatprep.subr.bf16.mxu0 0
        %1683 = vmatpush1.bf16.msra.mxu0 %v1671
        %1684 = vmatprep.subr.bf16.mxu0 0
        %1685 = vmatpush1.bf16.msra.mxu0 0
        %1686 = vmatprep.subr.bf16.mxu0 0
        %1687 = vmatpush1.bf16.msra.mxu0 0
        %1688 = vmatprep.subr.bf16.mxu0 0
        %1689 = vmatpush1.bf16.msra.mxu0 0
        %1690 = vmatprep.subr.bf16.mxu0 0
        %1691 = vmatpush1.bf16.msra.mxu0 0
        %1692 = vmatprep.subr.bf16.mxu0 0
        %1693 = vmatpush1.bf16.msra.mxu0 0
        %1694 = vmatprep.subr.bf16.mxu0 0
        %1695 = vmatpush1.bf16.msra.mxu0 0
        %1696 = vmatprep.subr.bf16.mxu0 0
        %1697 = vmatpush1.bf16.msra.mxu0 0
        %1698 = vmatprep.subr.bf16.mxu0 0
        %1699 = vmatpush1.bf16.msra.mxu0 0
        %1700 = vmatprep.subr.bf16.mxu0 0
        %1701 = vmatpush1.bf16.msra.mxu0 0
        %1702 = vmatprep.subr.bf16.mxu0 0
        %1703 = vmatpush1.bf16.msra.mxu0 0
        %1704 = vmatprep.subr.bf16.mxu0 0
        %1705 = vmatpush1.bf16.msra.mxu0 0
        %1706 = vmatprep.subr.bf16.mxu0 0
        %1707 = vmatpush1.bf16.msra.mxu0 0
        %1708 = vmatprep.subr.bf16.mxu0 0
        %1709 = vmatpush1.bf16.msra.mxu0 0
        %1710 = vmatprep.subr.bf16.mxu0 0
        %1711 = vmatpush1.bf16.msra.mxu0 0
        %1712 = vmatprep.mubr.bf16.mxu0 0
        %1713 = vmatmul.mubr.bf16.gmra.mrb[0].mxu0 %v1675
        %v1714 = vpop.f32.mrb[0].mxu0
        %v1715 = vadd.f32 0.0, %v1714
        %v1716 = vpop.f32.mrb[0].mxu0
        %v1717 = vpop.f32.mrb[0].mxu0
        %v1718 = vadd.f32 0.0, %v1717
        %v1719 = vpop.f32.mrb[0].mxu0
        %1720 = vmatprep.mubr.bf16.mxu0 0
        %1721 = vmatmul.mubr.bf16.gmra.mrb[0].mxu0 %v1678
        %v1722 = vpop.f32.mrb[0].mxu0
        %v1723 = vadd.f32 0.0, %v1722
        %v1724 = vpop.f32.mrb[0].mxu0
        %v1725 = vpop.f32.mrb[0].mxu0
        %v1726 = vadd.f32 0.0, %v1725
        %v1727 = vpop.f32.mrb[0].mxu0
        %1728 = vdwg.mxu0
        %1737 = vrot.lane.b32.xlu0 %v1654, 8
        %v1738 = vpop.permute.xlu0 %1737
        %1739 = vrot.lane.b32.xlu0 %v1657, 8
        %v1740 = vpop.permute.xlu0 %1739
        %1741 = vrot.lane.b32.xlu0 %v1662, 8
        %v1742 = vpop.permute.xlu0 %1741
        %1743 = vrot.lane.b32.xlu0 %v1665, 8
        %v1744 = vpop.permute.xlu0 %1743
        %1745 = vrot.lane.b32.xlu0 %v1715, 8
        %v1746 = vpop.permute.xlu0 %1745
        %1747 = vrot.lane.b32.xlu0 %v1718, 8
        %v1748 = vpop.permute.xlu0 %1747
        %1749 = vrot.lane.b32.xlu0 %v1723, 8
        %v1750 = vpop.permute.xlu0 %1749
        %1751 = vrot.lane.b32.xlu0 %v1726, 8
        %v1752 = vpop.permute.xlu0 %1751
        %vm1761 = vcmask 130112
        %1762 = vst.msk [vmem:[#allocation2] sm:$0xff] %vm1761, %v1738
        %1763 = vst.msk [vmem:[#allocation2 + $0x8] sm:$0xff] %vm1761, %v1740
        %1764 = vst.msk [vmem:[#allocation2 + $0x10] sm:$0xff] %vm1761, %v1742
        %1765 = vst.msk [vmem:[#allocation2 + $0x18] sm:$0xff] %vm1761, %v1744
        %1766 = vst.msk [vmem:[#allocation2 + $0x20] sm:$0xff] %vm1761, %v1746
        %1767 = vst.msk [vmem:[#allocation2 + $0x28] sm:$0xff] %vm1761, %v1748
        %1768 = vst.msk [vmem:[#allocation2 + $0x30] sm:$0xff] %vm1761, %v1750
        %1769 = vst.msk [vmem:[#allocation2 + $0x38] sm:$0xff] %vm1761, %v1752
        %s1770 = scalar_lea.vmem [#allocation15], 64
        %v1771 = vld [vmem:[%s1770] sm:$0xff]
        %v1772 = vld [vmem:[%s1770 + $0x8] sm:$0xff]
        %v1773 = vld [vmem:[%s1770 + $0x10] sm:$0xff]
        %v1774 = vld [vmem:[%s1770 + $0x18] sm:$0xff]
        %1775 = vrot.lane.b32.xlu0 %v1003, 112
        %v1776 = vpop.permute.xlu0 %1775
        %1777 = vrot.lane.b32.xlu0 %v1004, 112
        %v1778 = vpop.permute.xlu0 %1777
        %1779 = vrot.lane.b32.xlu0 %v1003, 80
        %v1780 = vpop.permute.xlu0 %1779
        %1781 = vrot.lane.b32.xlu0 %v1004, 80
        %v1782 = vpop.permute.xlu0 %1781
        %v1784 = vsel %vm1017, %v1776, 0
        %v1787 = vsel %vm1017, %v1778, 0
        %v1790 = vsel %vm1017, %v1780, 0
        %v1793 = vsel %vm1017, %v1782, 0
        %1795 = vmatprep.subr.bf16.mxu0 0
        %1796 = vmatpush1.bf16.xpose.msra.mxu0 %v1790
        %1797 = vmatprep.subr.bf16.mxu0 0
        %1798 = vmatpush1.bf16.xpose.msra.mxu0 %v1793
        %1799 = vmatprep.subr.bf16.mxu0 0
        %1800 = vmatpush1.bf16.xpose.msra.mxu0 0
        %1801 = vmatprep.subr.bf16.mxu0 0
        %1802 = vmatpush1.bf16.xpose.msra.mxu0 0
        %1803 = vmatprep.subr.bf16.mxu0 0
        %1804 = vmatpush1.bf16.xpose.msra.mxu0 0
        %1805 = vmatprep.subr.bf16.mxu0 0
        %1806 = vmatpush1.bf16.xpose.msra.mxu0 0
        %1807 = vmatprep.subr.bf16.mxu0 0
        %1808 = vmatpush1.bf16.xpose.msra.mxu0 0
        %1809 = vmatprep.subr.bf16.mxu0 0
        %1810 = vmatpush1.bf16.xpose.msra.mxu0 0
        %1811 = vmatprep.subr.bf16.mxu0 0
        %1812 = vmatpush1.bf16.xpose.msra.mxu0 0
        %1813 = vmatprep.subr.bf16.mxu0 0
        %1814 = vmatpush1.bf16.xpose.msra.mxu0 0
        %1815 = vmatprep.subr.bf16.mxu0 0
        %1816 = vmatpush1.bf16.xpose.msra.mxu0 0
        %1817 = vmatprep.subr.bf16.mxu0 0
        %1818 = vmatpush1.bf16.xpose.msra.mxu0 0
        %1819 = vmatprep.subr.bf16.mxu0 0
        %1820 = vmatpush1.bf16.xpose.msra.mxu0 0
        %1821 = vmatprep.subr.bf16.mxu0 0
        %1822 = vmatpush1.bf16.xpose.msra.mxu0 0
        %1823 = vmatprep.subr.bf16.mxu0 0
        %1824 = vmatpush1.bf16.xpose.msra.mxu0 0
        %1825 = vmatprep.subr.bf16.mxu0 0
        %1826 = vmatpush1.bf16.xpose.msra.mxu0 0
        %1827 = vmatprep.mubr.bf16.mxu0 0
        %1828 = vmatmul.mubr.bf16.gmra.mrb[0].mxu0 %v1784
        %v1829 = vpop.f32.mrb[0].mxu0
        %v1830 = vadd.f32 %v1771, %v1829
        %v1831 = vpop.f32.mrb[0].mxu0
        %v1832 = vpop.f32.mrb[0].mxu0
        %v1833 = vadd.f32 %v1772, %v1832
        %v1834 = vpop.f32.mrb[0].mxu0
        %1835 = vmatprep.mubr.bf16.mxu0 0
        %1836 = vmatmul.mubr.bf16.gmra.mrb[0].mxu0 %v1787
        %v1837 = vpop.f32.mrb[0].mxu0
        %v1838 = vadd.f32 %v1773, %v1837
        %v1839 = vpop.f32.mrb[0].mxu0
        %v1840 = vpop.f32.mrb[0].mxu0
        %v1841 = vadd.f32 %v1774, %v1840
        %v1842 = vpop.f32.mrb[0].mxu0
        %1843 = vdwg.mxu0
        %1844 = vrot.lane.b32.xlu0 %v1005, 112
        %v1845 = vpop.permute.xlu0 %1844
        %1846 = vrot.lane.b32.xlu0 %v1006, 112
        %v1847 = vpop.permute.xlu0 %1846
        %1848 = vrot.lane.b32.xlu0 %v1005, 80
        %v1849 = vpop.permute.xlu0 %1848
        %1850 = vrot.lane.b32.xlu0 %v1006, 80
        %v1851 = vpop.permute.xlu0 %1850
        %v1853 = vsel %vm1017, %v1845, 0
        %v1856 = vsel %vm1017, %v1847, 0
        %v1859 = vsel %vm1017, %v1849, 0
        %v1862 = vsel %vm1017, %v1851, 0
        %1864 = vmatprep.subr.bf16.mxu0 0
        %1865 = vmatpush1.bf16.xpose.msra.mxu0 %v1859
        %1866 = vmatprep.subr.bf16.mxu0 0
        %1867 = vmatpush1.bf16.xpose.msra.mxu0 %v1862
        %1868 = vmatprep.subr.bf16.mxu0 0
        %1869 = vmatpush1.bf16.xpose.msra.mxu0 0
        %1870 = vmatprep.subr.bf16.mxu0 0
        %1871 = vmatpush1.bf16.xpose.msra.mxu0 0
        %1872 = vmatprep.subr.bf16.mxu0 0
        %1873 = vmatpush1.bf16.xpose.msra.mxu0 0
        %1874 = vmatprep.subr.bf16.mxu0 0
        %1875 = vmatpush1.bf16.xpose.msra.mxu0 0
        %1876 = vmatprep.subr.bf16.mxu0 0
        %1877 = vmatpush1.bf16.xpose.msra.mxu0 0
        %1878 = vmatprep.subr.bf16.mxu0 0
        %1879 = vmatpush1.bf16.xpose.msra.mxu0 0
        %1880 = vmatprep.subr.bf16.mxu0 0
        %1881 = vmatpush1.bf16.xpose.msra.mxu0 0
        %1882 = vmatprep.subr.bf16.mxu0 0
        %1883 = vmatpush1.bf16.xpose.msra.mxu0 0
        %1884 = vmatprep.subr.bf16.mxu0 0
        %1885 = vmatpush1.bf16.xpose.msra.mxu0 0
        %1886 = vmatprep.subr.bf16.mxu0 0
        %1887 = vmatpush1.bf16.xpose.msra.mxu0 0
        %1888 = vmatprep.subr.bf16.mxu0 0
        %1889 = vmatpush1.bf16.xpose.msra.mxu0 0
        %1890 = vmatprep.subr.bf16.mxu0 0
        %1891 = vmatpush1.bf16.xpose.msra.mxu0 0
        %1892 = vmatprep.subr.bf16.mxu0 0
        %1893 = vmatpush1.bf16.xpose.msra.mxu0 0
        %1894 = vmatprep.subr.bf16.mxu0 0
        %1895 = vmatpush1.bf16.xpose.msra.mxu0 0
        %1896 = vmatprep.mubr.bf16.mxu0 0
        %1897 = vmatmul.mubr.bf16.gmra.mrb[0].mxu0 %v1853
        %v1898 = vpop.f32.mrb[0].mxu0
        %v1899 = vadd.f32 %v1771, %v1898
        %v1900 = vpop.f32.mrb[0].mxu0
        %v1901 = vpop.f32.mrb[0].mxu0
        %v1902 = vadd.f32 %v1772, %v1901
        %v1903 = vpop.f32.mrb[0].mxu0
        %1904 = vmatprep.mubr.bf16.mxu0 0
        %1905 = vmatmul.mubr.bf16.gmra.mrb[0].mxu0 %v1856
        %v1906 = vpop.f32.mrb[0].mxu0
        %v1907 = vadd.f32 %v1773, %v1906
        %v1908 = vpop.f32.mrb[0].mxu0
        %v1909 = vpop.f32.mrb[0].mxu0
        %v1910 = vadd.f32 %v1774, %v1909
        %v1911 = vpop.f32.mrb[0].mxu0
        %1912 = vdwg.mxu0
        %v1913 = vsel %vm763, %v1830, -inf
        %1914 = vmax.xlane.f32.xlu0 %v1913
        %v1915 = vpop.xlane.xlu0 %1914
        %v1916 = vsel %vm763, %v1833, -inf
        %1917 = vmax.xlane.f32.xlu0 %v1916
        %v1918 = vpop.xlane.xlu0 %1917
        %v1919 = vsel %vm763, %v1838, -inf
        %1920 = vmax.xlane.f32.xlu0 %v1919
        %v1921 = vpop.xlane.xlu0 %1920
        %v1922 = vsel %vm763, %v1841, -inf
        %1923 = vmax.xlane.f32.xlu0 %v1922
        %v1924 = vpop.xlane.xlu0 %1923
        %v1925 = vsel %vm763, %v1899, -inf
        %1926 = vmax.xlane.f32.xlu0 %v1925
        %v1927 = vpop.xlane.xlu0 %1926
        %v1928 = vsel %vm763, %v1902, -inf
        %1929 = vmax.xlane.f32.xlu0 %v1928
        %v1930 = vpop.xlane.xlu0 %1929
        %v1931 = vsel %vm763, %v1907, -inf
        %1932 = vmax.xlane.f32.xlu0 %v1931
        %v1933 = vpop.xlane.xlu0 %1932
        %v1934 = vsel %vm763, %v1910, -inf
        %1935 = vmax.xlane.f32.xlu0 %v1934
        %v1936 = vpop.xlane.xlu0 %1935
        %v1937 = vsub.f32 %v1830, %v1915
        %v1938 = vsub.f32 %v1833, %v1918
        %v1939 = vsub.f32 %v1838, %v1921
        %v1940 = vsub.f32 %v1841, %v1924
        %v1941 = vsub.f32 %v1899, %v1927
        %v1942 = vsub.f32 %v1902, %v1930
        %v1943 = vsub.f32 %v1907, %v1933
        %v1944 = vsub.f32 %v1910, %v1936
        %v1945 = vmul.f32 %v1937, 1.442695
        %v1946 = vpow.pop %v1945
        %v1947 = vmul.f32 %v1938, 1.442695
        %v1948 = vpow.pop %v1947
        %v1949 = vmul.f32 %v1939, 1.442695
        %v1950 = vpow.pop %v1949
        %v1951 = vmul.f32 %v1940, 1.442695
        %v1952 = vpow.pop %v1951
        %v1953 = vmul.f32 %v1941, 1.442695
        %v1954 = vpow.pop %v1953
        %v1955 = vmul.f32 %v1942, 1.442695
        %v1956 = vpow.pop %v1955
        %v1957 = vmul.f32 %v1943, 1.442695
        %v1958 = vpow.pop %v1957
        %v1959 = vmul.f32 %v1944, 1.442695
        %v1960 = vpow.pop %v1959
        %v1961 = vsel %vm763, %v1946, 0.0
        %1962 = vadd.xlane.f32.xlu0 %v1961
        %v1963 = vpop.xlane.xlu0 %1962
        %v1964 = vsel %vm763, %v1948, 0.0
        %1965 = vadd.xlane.f32.xlu0 %v1964
        %v1966 = vpop.xlane.xlu0 %1965
        %v1967 = vsel %vm763, %v1950, 0.0
        %1968 = vadd.xlane.f32.xlu0 %v1967
        %v1969 = vpop.xlane.xlu0 %1968
        %v1970 = vsel %vm763, %v1952, 0.0
        %1971 = vadd.xlane.f32.xlu0 %v1970
        %v1972 = vpop.xlane.xlu0 %1971
        %v1973 = vsel %vm763, %v1954, 0.0
        %1974 = vadd.xlane.f32.xlu0 %v1973
        %v1975 = vpop.xlane.xlu0 %1974
        %v1976 = vsel %vm763, %v1956, 0.0
        %1977 = vadd.xlane.f32.xlu0 %v1976
        %v1978 = vpop.xlane.xlu0 %1977
        %v1979 = vsel %vm763, %v1958, 0.0
        %1980 = vadd.xlane.f32.xlu0 %v1979
        %v1981 = vpop.xlane.xlu0 %1980
        %v1982 = vsel %vm763, %v1960, 0.0
        %1983 = vadd.xlane.f32.xlu0 %v1982
        %v1984 = vpop.xlane.xlu0 %1983
        %v1985 = vrcp.pop %v1963
        %v1986 = vrcp.pop %v1966
        %v1987 = vrcp.pop %v1969
        %v1988 = vrcp.pop %v1972
        %v1989 = vrcp.pop %v1975
        %v1990 = vrcp.pop %v1978
        %v1991 = vrcp.pop %v1981
        %v1992 = vrcp.pop %v1984
        %v1993 = vmul.f32 %v1946, %v1985
        %v1994 = vmul.f32 %v1948, %v1986
        %v1995 = vmul.f32 %v1950, %v1987
        %v1996 = vmul.f32 %v1952, %v1988
        %v1997 = vmul.f32 %v1954, %v1989
        %v1998 = vmul.f32 %v1956, %v1990
        %v1999 = vmul.f32 %v1958, %v1991
        %v2000 = vmul.f32 %v1960, %v1992
        %v2001 = vadd.f32 %v1601, %v1993
        %v2002 = vadd.f32 %v1602, %v1997
        %v2003 = vpack.c.bf16 %v1994, %v1993
        %v2004 = vpack.c.bf16 %v1996, %v1995
        %v2005 = vpack.c.bf16 %v1998, %v1997
        %v2006 = vpack.c.bf16 %v2000, %v1999
        %2007 = vrot.lane.b32.xlu0 %v1003, 48
        %v2008 = vpop.permute.xlu0 %2007
        %2009 = vrot.lane.b32.xlu0 %v1004, 48
        %v2010 = vpop.permute.xlu0 %2009
        %v2014 = vsel %vm763, %v2003, 0
        %v2017 = vsel %vm763, %v2004, 0
        %2019 = vmatprep.subr.bf16.mxu0 0
        %2020 = vmatpush1.bf16.msra.mxu0 %v2008
        %2021 = vmatprep.subr.bf16.mxu0 0
        %2022 = vmatpush1.bf16.msra.mxu0 %v2010
        %2023 = vmatprep.subr.bf16.mxu0 0
        %2024 = vmatpush1.bf16.msra.mxu0 0
        %2025 = vmatprep.subr.bf16.mxu0 0
        %2026 = vmatpush1.bf16.msra.mxu0 0
        %2027 = vmatprep.subr.bf16.mxu0 0
        %2028 = vmatpush1.bf16.msra.mxu0 0
        %2029 = vmatprep.subr.bf16.mxu0 0
        %2030 = vmatpush1.bf16.msra.mxu0 0
        %2031 = vmatprep.subr.bf16.mxu0 0
        %2032 = vmatpush1.bf16.msra.mxu0 0
        %2033 = vmatprep.subr.bf16.mxu0 0
        %2034 = vmatpush1.bf16.msra.mxu0 0
        %2035 = vmatprep.subr.bf16.mxu0 0
        %2036 = vmatpush1.bf16.msra.mxu0 0
        %2037 = vmatprep.subr.bf16.mxu0 0
        %2038 = vmatpush1.bf16.msra.mxu0 0
        %2039 = vmatprep.subr.bf16.mxu0 0
        %2040 = vmatpush1.bf16.msra.mxu0 0
        %2041 = vmatprep.subr.bf16.mxu0 0
        %2042 = vmatpush1.bf16.msra.mxu0 0
        %2043 = vmatprep.subr.bf16.mxu0 0
        %2044 = vmatpush1.bf16.msra.mxu0 0
        %2045 = vmatprep.subr.bf16.mxu0 0
        %2046 = vmatpush1.bf16.msra.mxu0 0
        %2047 = vmatprep.subr.bf16.mxu0 0
        %2048 = vmatpush1.bf16.msra.mxu0 0
        %2049 = vmatprep.subr.bf16.mxu0 0
        %2050 = vmatpush1.bf16.msra.mxu0 0
        %2051 = vmatprep.mubr.bf16.mxu0 0
        %2052 = vmatmul.mubr.bf16.gmra.mrb[0].mxu0 %v2014
        %v2053 = vpop.f32.mrb[0].mxu0
        %v2054 = vadd.f32 0.0, %v2053
        %v2055 = vpop.f32.mrb[0].mxu0
        %v2056 = vpop.f32.mrb[0].mxu0
        %v2057 = vadd.f32 0.0, %v2056
        %v2058 = vpop.f32.mrb[0].mxu0
        %2059 = vmatprep.mubr.bf16.mxu0 0
        %2060 = vmatmul.mubr.bf16.gmra.mrb[0].mxu0 %v2017
        %v2061 = vpop.f32.mrb[0].mxu0
        %v2062 = vadd.f32 0.0, %v2061
        %v2063 = vpop.f32.mrb[0].mxu0
        %v2064 = vpop.f32.mrb[0].mxu0
        %v2065 = vadd.f32 0.0, %v2064
        %v2066 = vpop.f32.mrb[0].mxu0
        %2067 = vdwg.mxu0
        %2068 = vrot.lane.b32.xlu0 %v1005, 48
        %v2069 = vpop.permute.xlu0 %2068
        %2070 = vrot.lane.b32.xlu0 %v1006, 48
        %v2071 = vpop.permute.xlu0 %2070
        %v2075 = vsel %vm763, %v2005, 0
        %v2078 = vsel %vm763, %v2006, 0
        %2080 = vmatprep.subr.bf16.mxu0 0
        %2081 = vmatpush1.bf16.msra.mxu0 %v2069
        %2082 = vmatprep.subr.bf16.mxu0 0
        %2083 = vmatpush1.bf16.msra.mxu0 %v2071
        %2084 = vmatprep.subr.bf16.mxu0 0
        %2085 = vmatpush1.bf16.msra.mxu0 0
        %2086 = vmatprep.subr.bf16.mxu0 0
        %2087 = vmatpush1.bf16.msra.mxu0 0
        %2088 = vmatprep.subr.bf16.mxu0 0
        %2089 = vmatpush1.bf16.msra.mxu0 0
        %2090 = vmatprep.subr.bf16.mxu0 0
        %2091 = vmatpush1.bf16.msra.mxu0 0
        %2092 = vmatprep.subr.bf16.mxu0 0
        %2093 = vmatpush1.bf16.msra.mxu0 0
        %2094 = vmatprep.subr.bf16.mxu0 0
        %2095 = vmatpush1.bf16.msra.mxu0 0
        %2096 = vmatprep.subr.bf16.mxu0 0
        %2097 = vmatpush1.bf16.msra.mxu0 0
        %2098 = vmatprep.subr.bf16.mxu0 0
        %2099 = vmatpush1.bf16.msra.mxu0 0
        %2100 = vmatprep.subr.bf16.mxu0 0
        %2101 = vmatpush1.bf16.msra.mxu0 0
        %2102 = vmatprep.subr.bf16.mxu0 0
        %2103 = vmatpush1.bf16.msra.mxu0 0
        %2104 = vmatprep.subr.bf16.mxu0 0
        %2105 = vmatpush1.bf16.msra.mxu0 0
        %2106 = vmatprep.subr.bf16.mxu0 0
        %2107 = vmatpush1.bf16.msra.mxu0 0
        %2108 = vmatprep.subr.bf16.mxu0 0
        %2109 = vmatpush1.bf16.msra.mxu0 0
        %2110 = vmatprep.subr.bf16.mxu0 0
        %2111 = vmatpush1.bf16.msra.mxu0 0
        %2112 = vmatprep.mubr.bf16.mxu0 0
        %2113 = vmatmul.mubr.bf16.gmra.mrb[0].mxu0 %v2075
        %v2114 = vpop.f32.mrb[0].mxu0
        %v2115 = vadd.f32 0.0, %v2114
        %v2116 = vpop.f32.mrb[0].mxu0
        %v2117 = vpop.f32.mrb[0].mxu0
        %v2118 = vadd.f32 0.0, %v2117
        %v2119 = vpop.f32.mrb[0].mxu0
        %2120 = vmatprep.mubr.bf16.mxu0 0
        %2121 = vmatmul.mubr.bf16.gmra.mrb[0].mxu0 %v2078
        %v2122 = vpop.f32.mrb[0].mxu0
        %v2123 = vadd.f32 0.0, %v2122
        %v2124 = vpop.f32.mrb[0].mxu0
        %v2125 = vpop.f32.mrb[0].mxu0
        %v2126 = vadd.f32 0.0, %v2125
        %v2127 = vpop.f32.mrb[0].mxu0
        %2128 = vdwg.mxu0
        %2137 = vrot.lane.b32.xlu0 %v2054, 16
        %v2138 = vpop.permute.xlu0 %2137
        %2139 = vrot.lane.b32.xlu0 %v2057, 16
        %v2140 = vpop.permute.xlu0 %2139
        %2141 = vrot.lane.b32.xlu0 %v2062, 16
        %v2142 = vpop.permute.xlu0 %2141
        %2143 = vrot.lane.b32.xlu0 %v2065, 16
        %v2144 = vpop.permute.xlu0 %2143
        %2145 = vrot.lane.b32.xlu0 %v2115, 16
        %v2146 = vpop.permute.xlu0 %2145
        %2147 = vrot.lane.b32.xlu0 %v2118, 16
        %v2148 = vpop.permute.xlu0 %2147
        %2149 = vrot.lane.b32.xlu0 %v2123, 16
        %v2150 = vpop.permute.xlu0 %2149
        %2151 = vrot.lane.b32.xlu0 %v2126, 16
        %v2152 = vpop.permute.xlu0 %2151
        %vm2161 = vcmask 195712
        %2162 = vst.msk [vmem:[#allocation2] sm:$0xff] %vm2161, %v2138
        %2163 = vst.msk [vmem:[#allocation2 + $0x8] sm:$0xff] %vm2161, %v2140
        %2164 = vst.msk [vmem:[#allocation2 + $0x10] sm:$0xff] %vm2161, %v2142
        %2165 = vst.msk [vmem:[#allocation2 + $0x18] sm:$0xff] %vm2161, %v2144
        %2166 = vst.msk [vmem:[#allocation2 + $0x20] sm:$0xff] %vm2161, %v2146
        %2167 = vst.msk [vmem:[#allocation2 + $0x28] sm:$0xff] %vm2161, %v2148
        %2168 = vst.msk [vmem:[#allocation2 + $0x30] sm:$0xff] %vm2161, %v2150
        %2169 = vst.msk [vmem:[#allocation2 + $0x38] sm:$0xff] %vm2161, %v2152
        %s2170 = scalar_lea.vmem [#allocation15], 96
        %v2171 = vld [vmem:[%s2170] sm:$0xff]
        %v2172 = vld [vmem:[%s2170 + $0x8] sm:$0xff]
        %v2173 = vld [vmem:[%s2170 + $0x10] sm:$0xff]
        %v2174 = vld [vmem:[%s2170 + $0x18] sm:$0xff]
        %2175 = vrot.lane.b32.xlu0 %v1003, 104
        %v2176 = vpop.permute.xlu0 %2175
        %2177 = vrot.lane.b32.xlu0 %v1004, 104
        %v2178 = vpop.permute.xlu0 %2177
        %2179 = vrot.lane.b32.xlu0 %v1003, 72
        %v2180 = vpop.permute.xlu0 %2179
        %2181 = vrot.lane.b32.xlu0 %v1004, 72
        %v2182 = vpop.permute.xlu0 %2181
        %v2184 = vsel %vm1017, %v2176, 0
        %v2187 = vsel %vm1017, %v2178, 0
        %v2190 = vsel %vm1017, %v2180, 0
        %v2193 = vsel %vm1017, %v2182, 0
        %2195 = vmatprep.subr.bf16.mxu0 0
        %2196 = vmatpush1.bf16.xpose.msra.mxu0 %v2190
        %2197 = vmatprep.subr.bf16.mxu0 0
        %2198 = vmatpush1.bf16.xpose.msra.mxu0 %v2193
        %2199 = vmatprep.subr.bf16.mxu0 0
        %2200 = vmatpush1.bf16.xpose.msra.mxu0 0
        %2201 = vmatprep.subr.bf16.mxu0 0
        %2202 = vmatpush1.bf16.xpose.msra.mxu0 0
        %2203 = vmatprep.subr.bf16.mxu0 0
        %2204 = vmatpush1.bf16.xpose.msra.mxu0 0
        %2205 = vmatprep.subr.bf16.mxu0 0
        %2206 = vmatpush1.bf16.xpose.msra.mxu0 0
        %2207 = vmatprep.subr.bf16.mxu0 0
        %2208 = vmatpush1.bf16.xpose.msra.mxu0 0
        %2209 = vmatprep.subr.bf16.mxu0 0
        %2210 = vmatpush1.bf16.xpose.msra.mxu0 0
        %2211 = vmatprep.subr.bf16.mxu0 0
        %2212 = vmatpush1.bf16.xpose.msra.mxu0 0
        %2213 = vmatprep.subr.bf16.mxu0 0
        %2214 = vmatpush1.bf16.xpose.msra.mxu0 0
        %2215 = vmatprep.subr.bf16.mxu0 0
        %2216 = vmatpush1.bf16.xpose.msra.mxu0 0
        %2217 = vmatprep.subr.bf16.mxu0 0
        %2218 = vmatpush1.bf16.xpose.msra.mxu0 0
        %2219 = vmatprep.subr.bf16.mxu0 0
        %2220 = vmatpush1.bf16.xpose.msra.mxu0 0
        %2221 = vmatprep.subr.bf16.mxu0 0
        %2222 = vmatpush1.bf16.xpose.msra.mxu0 0
        %2223 = vmatprep.subr.bf16.mxu0 0
        %2224 = vmatpush1.bf16.xpose.msra.mxu0 0
        %2225 = vmatprep.subr.bf16.mxu0 0
        %2226 = vmatpush1.bf16.xpose.msra.mxu0 0
        %2227 = vmatprep.mubr.bf16.mxu0 0
        %2228 = vmatmul.mubr.bf16.gmra.mrb[0].mxu0 %v2184
        %v2229 = vpop.f32.mrb[0].mxu0
        %v2230 = vadd.f32 %v2171, %v2229
        %v2231 = vpop.f32.mrb[0].mxu0
        %v2232 = vpop.f32.mrb[0].mxu0
        %v2233 = vadd.f32 %v2172, %v2232
        %v2234 = vpop.f32.mrb[0].mxu0
        %2235 = vmatprep.mubr.bf16.mxu0 0
        %2236 = vmatmul.mubr.bf16.gmra.mrb[0].mxu0 %v2187
        %v2237 = vpop.f32.mrb[0].mxu0
        %v2238 = vadd.f32 %v2173, %v2237
        %v2239 = vpop.f32.mrb[0].mxu0
        %v2240 = vpop.f32.mrb[0].mxu0
        %v2241 = vadd.f32 %v2174, %v2240
        %v2242 = vpop.f32.mrb[0].mxu0
        %2243 = vdwg.mxu0
        %2244 = vrot.lane.b32.xlu0 %v1005, 104
        %v2245 = vpop.permute.xlu0 %2244
        %2246 = vrot.lane.b32.xlu0 %v1006, 104
        %v2247 = vpop.permute.xlu0 %2246
        %2248 = vrot.lane.b32.xlu0 %v1005, 72
        %v2249 = vpop.permute.xlu0 %2248
        %2250 = vrot.lane.b32.xlu0 %v1006, 72
        %v2251 = vpop.permute.xlu0 %2250
        %v2253 = vsel %vm1017, %v2245, 0
        %v2256 = vsel %vm1017, %v2247, 0
        %v2259 = vsel %vm1017, %v2249, 0
        %v2262 = vsel %vm1017, %v2251, 0
        %2264 = vmatprep.subr.bf16.mxu0 0
        %2265 = vmatpush1.bf16.xpose.msra.mxu0 %v2259
        %2266 = vmatprep.subr.bf16.mxu0 0
        %2267 = vmatpush1.bf16.xpose.msra.mxu0 %v2262
        %2268 = vmatprep.subr.bf16.mxu0 0
        %2269 = vmatpush1.bf16.xpose.msra.mxu0 0
        %2270 = vmatprep.subr.bf16.mxu0 0
        %2271 = vmatpush1.bf16.xpose.msra.mxu0 0
        %2272 = vmatprep.subr.bf16.mxu0 0
        %2273 = vmatpush1.bf16.xpose.msra.mxu0 0
        %2274 = vmatprep.subr.bf16.mxu0 0
        %2275 = vmatpush1.bf16.xpose.msra.mxu0 0
        %2276 = vmatprep.subr.bf16.mxu0 0
        %2277 = vmatpush1.bf16.xpose.msra.mxu0 0
        %2278 = vmatprep.subr.bf16.mxu0 0
        %2279 = vmatpush1.bf16.xpose.msra.mxu0 0
        %2280 = vmatprep.subr.bf16.mxu0 0
        %2281 = vmatpush1.bf16.xpose.msra.mxu0 0
        %2282 = vmatprep.subr.bf16.mxu0 0
        %2283 = vmatpush1.bf16.xpose.msra.mxu0 0
        %2284 = vmatprep.subr.bf16.mxu0 0
        %2285 = vmatpush1.bf16.xpose.msra.mxu0 0
        %2286 = vmatprep.subr.bf16.mxu0 0
        %2287 = vmatpush1.bf16.xpose.msra.mxu0 0
        %2288 = vmatprep.subr.bf16.mxu0 0
        %2289 = vmatpush1.bf16.xpose.msra.mxu0 0
        %2290 = vmatprep.subr.bf16.mxu0 0
        %2291 = vmatpush1.bf16.xpose.msra.mxu0 0
        %2292 = vmatprep.subr.bf16.mxu0 0
        %2293 = vmatpush1.bf16.xpose.msra.mxu0 0
        %2294 = vmatprep.subr.bf16.mxu0 0
        %2295 = vmatpush1.bf16.xpose.msra.mxu0 0
        %2296 = vmatprep.mubr.bf16.mxu0 0
        %2297 = vmatmul.mubr.bf16.gmra.mrb[0].mxu0 %v2253
        %v2298 = vpop.f32.mrb[0].mxu0
        %v2299 = vadd.f32 %v2171, %v2298
        %v2300 = vpop.f32.mrb[0].mxu0
        %v2301 = vpop.f32.mrb[0].mxu0
        %v2302 = vadd.f32 %v2172, %v2301
        %v2303 = vpop.f32.mrb[0].mxu0
        %2304 = vmatprep.mubr.bf16.mxu0 0
        %2305 = vmatmul.mubr.bf16.gmra.mrb[0].mxu0 %v2256
        %v2306 = vpop.f32.mrb[0].mxu0
        %v2307 = vadd.f32 %v2173, %v2306
        %v2308 = vpop.f32.mrb[0].mxu0
        %v2309 = vpop.f32.mrb[0].mxu0
        %v2310 = vadd.f32 %v2174, %v2309
        %v2311 = vpop.f32.mrb[0].mxu0
        %2312 = vdwg.mxu0
        %v2313 = vsel %vm763, %v2230, -inf
        %2314 = vmax.xlane.f32.xlu0 %v2313
        %v2315 = vpop.xlane.xlu0 %2314
        %v2316 = vsel %vm763, %v2233, -inf
        %2317 = vmax.xlane.f32.xlu0 %v2316
        %v2318 = vpop.xlane.xlu0 %2317
        %v2319 = vsel %vm763, %v2238, -inf
        %2320 = vmax.xlane.f32.xlu0 %v2319
        %v2321 = vpop.xlane.xlu0 %2320
        %v2322 = vsel %vm763, %v2241, -inf
        %2323 = vmax.xlane.f32.xlu0 %v2322
        %v2324 = vpop.xlane.xlu0 %2323
        %v2325 = vsel %vm763, %v2299, -inf
        %2326 = vmax.xlane.f32.xlu0 %v2325
        %v2327 = vpop.xlane.xlu0 %2326
        %v2328 = vsel %vm763, %v2302, -inf
        %2329 = vmax.xlane.f32.xlu0 %v2328
        %v2330 = vpop.xlane.xlu0 %2329
        %v2331 = vsel %vm763, %v2307, -inf
        %2332 = vmax.xlane.f32.xlu0 %v2331
        %v2333 = vpop.xlane.xlu0 %2332
        %v2334 = vsel %vm763, %v2310, -inf
        %2335 = vmax.xlane.f32.xlu0 %v2334
        %v2336 = vpop.xlane.xlu0 %2335
        %v2337 = vsub.f32 %v2230, %v2315
        %v2338 = vsub.f32 %v2233, %v2318
        %v2339 = vsub.f32 %v2238, %v2321
        %v2340 = vsub.f32 %v2241, %v2324
        %v2341 = vsub.f32 %v2299, %v2327
        %v2342 = vsub.f32 %v2302, %v2330
        %v2343 = vsub.f32 %v2307, %v2333
        %v2344 = vsub.f32 %v2310, %v2336
        %v2345 = vmul.f32 %v2337, 1.442695
        %v2346 = vpow.pop %v2345
        %v2347 = vmul.f32 %v2338, 1.442695
        %v2348 = vpow.pop %v2347
        %v2349 = vmul.f32 %v2339, 1.442695
        %v2350 = vpow.pop %v2349
        %v2351 = vmul.f32 %v2340, 1.442695
        %v2352 = vpow.pop %v2351
        %v2353 = vmul.f32 %v2341, 1.442695
        %v2354 = vpow.pop %v2353
        %v2355 = vmul.f32 %v2342, 1.442695
        %v2356 = vpow.pop %v2355
        %v2357 = vmul.f32 %v2343, 1.442695
        %v2358 = vpow.pop %v2357
        %v2359 = vmul.f32 %v2344, 1.442695
        %v2360 = vpow.pop %v2359
        %v2361 = vsel %vm763, %v2346, 0.0
        %2362 = vadd.xlane.f32.xlu0 %v2361
        %v2363 = vpop.xlane.xlu0 %2362
        %v2364 = vsel %vm763, %v2348, 0.0
        %2365 = vadd.xlane.f32.xlu0 %v2364
        %v2366 = vpop.xlane.xlu0 %2365
        %v2367 = vsel %vm763, %v2350, 0.0
        %2368 = vadd.xlane.f32.xlu0 %v2367
        %v2369 = vpop.xlane.xlu0 %2368
        %v2370 = vsel %vm763, %v2352, 0.0
        %2371 = vadd.xlane.f32.xlu0 %v2370
        %v2372 = vpop.xlane.xlu0 %2371
        %v2373 = vsel %vm763, %v2354, 0.0
        %2374 = vadd.xlane.f32.xlu0 %v2373
        %v2375 = vpop.xlane.xlu0 %2374
        %v2376 = vsel %vm763, %v2356, 0.0
        %2377 = vadd.xlane.f32.xlu0 %v2376
        %v2378 = vpop.xlane.xlu0 %2377
        %v2379 = vsel %vm763, %v2358, 0.0
        %2380 = vadd.xlane.f32.xlu0 %v2379
        %v2381 = vpop.xlane.xlu0 %2380
        %v2382 = vsel %vm763, %v2360, 0.0
        %2383 = vadd.xlane.f32.xlu0 %v2382
        %v2384 = vpop.xlane.xlu0 %2383
        %v2385 = vrcp.pop %v2363
        %v2386 = vrcp.pop %v2366
        %v2387 = vrcp.pop %v2369
        %v2388 = vrcp.pop %v2372
        %v2389 = vrcp.pop %v2375
        %v2390 = vrcp.pop %v2378
        %v2391 = vrcp.pop %v2381
        %v2392 = vrcp.pop %v2384
        %v2393 = vmul.f32 %v2346, %v2385
        %v2394 = vmul.f32 %v2348, %v2386
        %v2395 = vmul.f32 %v2350, %v2387
        %v2396 = vmul.f32 %v2352, %v2388
        %v2397 = vmul.f32 %v2354, %v2389
        %v2398 = vmul.f32 %v2356, %v2390
        %v2399 = vmul.f32 %v2358, %v2391
        %v2400 = vmul.f32 %v2360, %v2392
        %v2401 = vadd.f32 %v2001, %v2393
        %v2402 = vadd.f32 %v2002, %v2397
        %v2403 = vpack.c.bf16 %v2394, %v2393
        %v2404 = vpack.c.bf16 %v2396, %v2395
        %v2405 = vpack.c.bf16 %v2398, %v2397
        %v2406 = vpack.c.bf16 %v2400, %v2399
        %2407 = vrot.lane.b32.xlu0 %v1003, 40
        %v2408 = vpop.permute.xlu0 %2407
        %2409 = vrot.lane.b32.xlu0 %v1004, 40
        %v2410 = vpop.permute.xlu0 %2409
        %v2414 = vsel %vm763, %v2403, 0
        %v2417 = vsel %vm763, %v2404, 0
        %2419 = vmatprep.subr.bf16.mxu0 0
        %2420 = vmatpush1.bf16.msra.mxu0 %v2408
        %2421 = vmatprep.subr.bf16.mxu0 0
        %2422 = vmatpush1.bf16.msra.mxu0 %v2410
        %2423 = vmatprep.subr.bf16.mxu0 0
        %2424 = vmatpush1.bf16.msra.mxu0 0
        %2425 = vmatprep.subr.bf16.mxu0 0
        %2426 = vmatpush1.bf16.msra.mxu0 0
        %2427 = vmatprep.subr.bf16.mxu0 0
        %2428 = vmatpush1.bf16.msra.mxu0 0
        %2429 = vmatprep.subr.bf16.mxu0 0
        %2430 = vmatpush1.bf16.msra.mxu0 0
        %2431 = vmatprep.subr.bf16.mxu0 0
        %2432 = vmatpush1.bf16.msra.mxu0 0
        %2433 = vmatprep.subr.bf16.mxu0 0
        %2434 = vmatpush1.bf16.msra.mxu0 0
        %2435 = vmatprep.subr.bf16.mxu0 0
        %2436 = vmatpush1.bf16.msra.mxu0 0
        %2437 = vmatprep.subr.bf16.mxu0 0
        %2438 = vmatpush1.bf16.msra.mxu0 0
        %2439 = vmatprep.subr.bf16.mxu0 0
        %2440 = vmatpush1.bf16.msra.mxu0 0
        %2441 = vmatprep.subr.bf16.mxu0 0
        %2442 = vmatpush1.bf16.msra.mxu0 0
        %2443 = vmatprep.subr.bf16.mxu0 0
        %2444 = vmatpush1.bf16.msra.mxu0 0
        %2445 = vmatprep.subr.bf16.mxu0 0
        %2446 = vmatpush1.bf16.msra.mxu0 0
        %2447 = vmatprep.subr.bf16.mxu0 0
        %2448 = vmatpush1.bf16.msra.mxu0 0
        %2449 = vmatprep.subr.bf16.mxu0 0
        %2450 = vmatpush1.bf16.msra.mxu0 0
        %2451 = vmatprep.mubr.bf16.mxu0 0
        %2452 = vmatmul.mubr.bf16.gmra.mrb[0].mxu0 %v2414
        %v2453 = vpop.f32.mrb[0].mxu0
        %v2454 = vadd.f32 0.0, %v2453
        %v2455 = vpop.f32.mrb[0].mxu0
        %v2456 = vpop.f32.mrb[0].mxu0
        %v2457 = vadd.f32 0.0, %v2456
        %v2458 = vpop.f32.mrb[0].mxu0
        %2459 = vmatprep.mubr.bf16.mxu0 0
        %2460 = vmatmul.mubr.bf16.gmra.mrb[0].mxu0 %v2417
        %v2461 = vpop.f32.mrb[0].mxu0
        %v2462 = vadd.f32 0.0, %v2461
        %v2463 = vpop.f32.mrb[0].mxu0
        %v2464 = vpop.f32.mrb[0].mxu0
        %v2465 = vadd.f32 0.0, %v2464
        %v2466 = vpop.f32.mrb[0].mxu0
        %2467 = vdwg.mxu0
        %2468 = vrot.lane.b32.xlu0 %v1005, 40
        %v2469 = vpop.permute.xlu0 %2468
        %2470 = vrot.lane.b32.xlu0 %v1006, 40
        %v2471 = vpop.permute.xlu0 %2470
        %v2475 = vsel %vm763, %v2405, 0
        %v2478 = vsel %vm763, %v2406, 0
        %2480 = vmatprep.subr.bf16.mxu0 0
        %2481 = vmatpush1.bf16.msra.mxu0 %v2469
        %2482 = vmatprep.subr.bf16.mxu0 0
        %2483 = vmatpush1.bf16.msra.mxu0 %v2471
        %2484 = vmatprep.subr.bf16.mxu0 0
        %2485 = vmatpush1.bf16.msra.mxu0 0
        %2486 = vmatprep.subr.bf16.mxu0 0
        %2487 = vmatpush1.bf16.msra.mxu0 0
        %2488 = vmatprep.subr.bf16.mxu0 0
        %2489 = vmatpush1.bf16.msra.mxu0 0
        %2490 = vmatprep.subr.bf16.mxu0 0
        %2491 = vmatpush1.bf16.msra.mxu0 0
        %2492 = vmatprep.subr.bf16.mxu0 0
        %2493 = vmatpush1.bf16.msra.mxu0 0
        %2494 = vmatprep.subr.bf16.mxu0 0
        %2495 = vmatpush1.bf16.msra.mxu0 0
        %2496 = vmatprep.subr.bf16.mxu0 0
        %2497 = vmatpush1.bf16.msra.mxu0 0
        %2498 = vmatprep.subr.bf16.mxu0 0
        %2499 = vmatpush1.bf16.msra.mxu0 0
        %2500 = vmatprep.subr.bf16.mxu0 0
        %2501 = vmatpush1.bf16.msra.mxu0 0
        %2502 = vmatprep.subr.bf16.mxu0 0
        %2503 = vmatpush1.bf16.msra.mxu0 0
        %2504 = vmatprep.subr.bf16.mxu0 0
        %2505 = vmatpush1.bf16.msra.mxu0 0
        %2506 = vmatprep.subr.bf16.mxu0 0
        %2507 = vmatpush1.bf16.msra.mxu0 0
        %2508 = vmatprep.subr.bf16.mxu0 0
        %2509 = vmatpush1.bf16.msra.mxu0 0
        %2510 = vmatprep.subr.bf16.mxu0 0
        %2511 = vmatpush1.bf16.msra.mxu0 0
        %2512 = vmatprep.mubr.bf16.mxu0 0
        %2513 = vmatmul.mubr.bf16.gmra.mrb[0].mxu0 %v2475
        %v2514 = vpop.f32.mrb[0].mxu0
        %v2515 = vadd.f32 0.0, %v2514
        %v2516 = vpop.f32.mrb[0].mxu0
        %v2517 = vpop.f32.mrb[0].mxu0
        %v2518 = vadd.f32 0.0, %v2517
        %v2519 = vpop.f32.mrb[0].mxu0
        %2520 = vmatprep.mubr.bf16.mxu0 0
        %2521 = vmatmul.mubr.bf16.gmra.mrb[0].mxu0 %v2478
        %v2522 = vpop.f32.mrb[0].mxu0
        %v2523 = vadd.f32 0.0, %v2522
        %v2524 = vpop.f32.mrb[0].mxu0
        %v2525 = vpop.f32.mrb[0].mxu0
        %v2526 = vadd.f32 0.0, %v2525
        %v2527 = vpop.f32.mrb[0].mxu0
        %2528 = vdwg.mxu0
        %2537 = vrot.lane.b32.xlu0 %v2454, 24
        %v2538 = vpop.permute.xlu0 %2537
        %2539 = vrot.lane.b32.xlu0 %v2457, 24
        %v2540 = vpop.permute.xlu0 %2539
        %2541 = vrot.lane.b32.xlu0 %v2462, 24
        %v2542 = vpop.permute.xlu0 %2541
        %2543 = vrot.lane.b32.xlu0 %v2465, 24
        %v2544 = vpop.permute.xlu0 %2543
        %2545 = vrot.lane.b32.xlu0 %v2515, 24
        %v2546 = vpop.permute.xlu0 %2545
        %2547 = vrot.lane.b32.xlu0 %v2518, 24
        %v2548 = vpop.permute.xlu0 %2547
        %2549 = vrot.lane.b32.xlu0 %v2523, 24
        %v2550 = vpop.permute.xlu0 %2549
        %2551 = vrot.lane.b32.xlu0 %v2526, 24
        %v2552 = vpop.permute.xlu0 %2551
        %vm2561 = vcmask 261312
        %2562 = vst.msk [vmem:[#allocation2] sm:$0xff] %vm2561, %v2538
        %2563 = vst.msk [vmem:[#allocation2 + $0x8] sm:$0xff] %vm2561, %v2540
        %2564 = vst.msk [vmem:[#allocation2 + $0x10] sm:$0xff] %vm2561, %v2542
        %2565 = vst.msk [vmem:[#allocation2 + $0x18] sm:$0xff] %vm2561, %v2544
        %2566 = vst.msk [vmem:[#allocation2 + $0x20] sm:$0xff] %vm2561, %v2546
        %2567 = vst.msk [vmem:[#allocation2 + $0x28] sm:$0xff] %vm2561, %v2548
        %2568 = vst.msk [vmem:[#allocation2 + $0x30] sm:$0xff] %vm2561, %v2550
        %2569 = vst.msk [vmem:[#allocation2 + $0x38] sm:$0xff] %vm2561, %v2552
        %v2570 = vld [vmem:[#allocation2] sm:$0xff]
        %v2571 = vld [vmem:[#allocation2 + $0x8] sm:$0xff]
        %v2572 = vld [vmem:[#allocation2 + $0x10] sm:$0xff]
        %v2573 = vld [vmem:[#allocation2 + $0x18] sm:$0xff]
        %v2574 = vld [vmem:[#allocation2 + $0x20] sm:$0xff]
        %v2575 = vld [vmem:[#allocation2 + $0x28] sm:$0xff]
        %v2576 = vld [vmem:[#allocation2 + $0x30] sm:$0xff]
        %v2577 = vld [vmem:[#allocation2 + $0x38] sm:$0xff]
        %v2578 = vpack.c.bf16 %v2571, %v2570
        %v2579 = vpack.c.bf16 %v2573, %v2572
        %v2580 = vpack.c.bf16 %v2575, %v2574
        %v2581 = vpack.c.bf16 %v2577, %v2576
        %v2582 = vld [vmem:[#allocation12] sm:$0xf]
        %v2583 = vld [vmem:[#allocation12 + $0x4] sm:$0xf]
        %v2584 = vld [vmem:[#allocation12 + $0x8] sm:$0xf]
        %v2585 = vld [vmem:[#allocation12 + $0xc] sm:$0xf]
        %v2586 = vld [vmem:[#allocation13] sm:$0x1]
        %v2588 = vlaneseq
        %v2589 = vshrl.u32 %v2588, 7
        %v2590 = vsub.s32 0, %v2589
        %v2591 = vrot.slane %v2586, %v2590
        %v2597 = vunpack.c.l.b16 %v2582
        %v2598 = vunpack.c.l.b16 %v2583
        %v2599 = vunpack.c.l.b16 %v2584
        %v2600 = vunpack.c.l.b16 %v2585
        %v2601 = vpack.c.b16 %v2598, %v2597
        %v2602 = vpack.c.b16 %v2600, %v2599
        %v2606 = vsel %vm763, %v2578, 0
        %v2609 = vsel %vm763, %v2579, 0
        %v2612 = vsel %vm763, %v2580, 0
        %v2615 = vsel %vm763, %v2581, 0
        %2617 = vmatprep.subr.bf16.mxu0 0
        %2618 = vmatpush1.bf16.msra.mxu0 %v2601
        %2619 = vmatprep.subr.bf16.mxu0 0
        %2620 = vmatpush1.bf16.msra.mxu0 %v2602
        %2621 = vmatprep.subr.bf16.mxu0 0
        %2622 = vmatpush1.bf16.msra.mxu0 0
        %2623 = vmatprep.subr.bf16.mxu0 0
        %2624 = vmatpush1.bf16.msra.mxu0 0
        %2625 = vmatprep.subr.bf16.mxu0 0
        %2626 = vmatpush1.bf16.msra.mxu0 0
        %2627 = vmatprep.subr.bf16.mxu0 0
        %2628 = vmatpush1.bf16.msra.mxu0 0
        %2629 = vmatprep.subr.bf16.mxu0 0
        %2630 = vmatpush1.bf16.msra.mxu0 0
        %2631 = vmatprep.subr.bf16.mxu0 0
        %2632 = vmatpush1.bf16.msra.mxu0 0
        %2633 = vmatprep.subr.bf16.mxu0 0
        %2634 = vmatpush1.bf16.msra.mxu0 0
        %2635 = vmatprep.subr.bf16.mxu0 0
        %2636 = vmatpush1.bf16.msra.mxu0 0
        %2637 = vmatprep.subr.bf16.mxu0 0
        %2638 = vmatpush1.bf16.msra.mxu0 0
        %2639 = vmatprep.subr.bf16.mxu0 0
        %2640 = vmatpush1.bf16.msra.mxu0 0
        %2641 = vmatprep.subr.bf16.mxu0 0
        %2642 = vmatpush1.bf16.msra.mxu0 0
        %2643 = vmatprep.subr.bf16.mxu0 0
        %2644 = vmatpush1.bf16.msra.mxu0 0
        %2645 = vmatprep.subr.bf16.mxu0 0
        %2646 = vmatpush1.bf16.msra.mxu0 0
        %2647 = vmatprep.subr.bf16.mxu0 0
        %2648 = vmatpush1.bf16.msra.mxu0 0
        %2649 = vmatprep.mubr.bf16.mxu0 0
        %2650 = vmatmul.mubr.bf16.gmra.mrb[0].mxu0 %v2606
        %v2651 = vpop.f32.mrb[0].mxu0
        %v2652 = vadd.f32 %v2591, %v2651
        %v2653 = vpop.f32.mrb[0].mxu0
        %v2654 = vpop.f32.mrb[0].mxu0
        %v2655 = vadd.f32 %v2591, %v2654
        %v2656 = vpop.f32.mrb[0].mxu0
        %2657 = vmatprep.mubr.bf16.mxu0 0
        %2658 = vmatmul.mubr.bf16.gmra.mrb[0].mxu0 %v2609
        %v2659 = vpop.f32.mrb[0].mxu0
        %v2660 = vadd.f32 %v2591, %v2659
        %v2661 = vpop.f32.mrb[0].mxu0
        %v2662 = vpop.f32.mrb[0].mxu0
        %v2663 = vadd.f32 %v2591, %v2662
        %v2664 = vpop.f32.mrb[0].mxu0
        %2665 = vmatprep.mubr.bf16.mxu0 0
        %2666 = vmatmul.mubr.bf16.gmra.mrb[0].mxu0 %v2612
        %v2667 = vpop.f32.mrb[0].mxu0
        %v2668 = vadd.f32 %v2591, %v2667
        %v2669 = vpop.f32.mrb[0].mxu0
        %v2670 = vpop.f32.mrb[0].mxu0
        %v2671 = vadd.f32 %v2591, %v2670
        %v2672 = vpop.f32.mrb[0].mxu0
        %2673 = vmatprep.mubr.bf16.mxu0 0
        %2674 = vmatmul.mubr.bf16.gmra.mrb[0].mxu0 %v2615
        %v2675 = vpop.f32.mrb[0].mxu0
        %v2676 = vadd.f32 %v2591, %v2675
        %v2677 = vpop.f32.mrb[0].mxu0
        %v2678 = vpop.f32.mrb[0].mxu0
        %v2679 = vadd.f32 %v2591, %v2678
        %v2680 = vpop.f32.mrb[0].mxu0
        %2681 = vdwg.mxu0
        %v2682 = vadd.f32 %v755, %v2652
        %v2683 = vadd.f32 %v756, %v2655
        %v2684 = vadd.f32 %v757, %v2660
        %v2685 = vadd.f32 %v758, %v2663
        %v2686 = vadd.f32 %v759, %v2668
        %v2687 = vadd.f32 %v760, %v2671
        %v2688 = vadd.f32 %v761, %v2676
        %v2689 = vadd.f32 %v762, %v2679
        %v2690 = vsel %vm763, %v2682, 0.0
        %2691 = vadd.xlane.f32.xlu0 %v2690
        %v2692 = vpop.xlane.xlu0 %2691
        %v2693 = vsel %vm763, %v2683, 0.0
        %2694 = vadd.xlane.f32.xlu0 %v2693
        %v2695 = vpop.xlane.xlu0 %2694
        %v2696 = vsel %vm763, %v2684, 0.0
        %2697 = vadd.xlane.f32.xlu0 %v2696
        %v2698 = vpop.xlane.xlu0 %2697
        %v2699 = vsel %vm763, %v2685, 0.0
        %2700 = vadd.xlane.f32.xlu0 %v2699
        %v2701 = vpop.xlane.xlu0 %2700
        %v2702 = vsel %vm763, %v2686, 0.0
        %2703 = vadd.xlane.f32.xlu0 %v2702
        %v2704 = vpop.xlane.xlu0 %2703
        %v2705 = vsel %vm763, %v2687, 0.0
        %2706 = vadd.xlane.f32.xlu0 %v2705
        %v2707 = vpop.xlane.xlu0 %2706
        %v2708 = vsel %vm763, %v2688, 0.0
        %2709 = vadd.xlane.f32.xlu0 %v2708
        %v2710 = vpop.xlane.xlu0 %2709
        %v2711 = vsel %vm763, %v2689, 0.0
        %2712 = vadd.xlane.f32.xlu0 %v2711
        %v2713 = vpop.xlane.xlu0 %2712
        %v2714 = vmul.f32 %v2692, %v788
        %v2715 = vmul.f32 %v2695, %v788
        %v2716 = vmul.f32 %v2698, %v788
        %v2717 = vmul.f32 %v2701, %v788
        %v2718 = vmul.f32 %v2704, %v788
        %v2719 = vmul.f32 %v2707, %v788
        %v2720 = vmul.f32 %v2710, %v788
        %v2721 = vmul.f32 %v2713, %v788
        %v2722 = vsub.f32 %v2682, %v2714
        %v2723 = vsub.f32 %v2683, %v2715
        %v2724 = vsub.f32 %v2684, %v2716
        %v2725 = vsub.f32 %v2685, %v2717
        %v2726 = vsub.f32 %v2686, %v2718
        %v2727 = vsub.f32 %v2687, %v2719
        %v2728 = vsub.f32 %v2688, %v2720
        %v2729 = vsub.f32 %v2689, %v2721
        %v2730 = vmul.f32 %v2722, %v2722
        %v2731 = vmul.f32 %v2723, %v2723
        %v2732 = vmul.f32 %v2724, %v2724
        %v2733 = vmul.f32 %v2725, %v2725
        %v2734 = vmul.f32 %v2726, %v2726
        %v2735 = vmul.f32 %v2727, %v2727
        %v2736 = vmul.f32 %v2728, %v2728
        %v2737 = vmul.f32 %v2729, %v2729
        %v2738 = vsel %vm763, %v2730, 0.0
        %2739 = vadd.xlane.f32.xlu0 %v2738
        %v2740 = vpop.xlane.xlu0 %2739
        %v2741 = vsel %vm763, %v2731, 0.0
        %2742 = vadd.xlane.f32.xlu0 %v2741
        %v2743 = vpop.xlane.xlu0 %2742
        %v2744 = vsel %vm763, %v2732, 0.0
        %2745 = vadd.xlane.f32.xlu0 %v2744
        %v2746 = vpop.xlane.xlu0 %2745
        %v2747 = vsel %vm763, %v2733, 0.0
        %2748 = vadd.xlane.f32.xlu0 %v2747
        %v2749 = vpop.xlane.xlu0 %2748
        %v2750 = vsel %vm763, %v2734, 0.0
        %2751 = vadd.xlane.f32.xlu0 %v2750
        %v2752 = vpop.xlane.xlu0 %2751
        %v2753 = vsel %vm763, %v2735, 0.0
        %2754 = vadd.xlane.f32.xlu0 %v2753
        %v2755 = vpop.xlane.xlu0 %2754
        %v2756 = vsel %vm763, %v2736, 0.0
        %2757 = vadd.xlane.f32.xlu0 %v2756
        %v2758 = vpop.xlane.xlu0 %2757
        %v2759 = vsel %vm763, %v2737, 0.0
        %2760 = vadd.xlane.f32.xlu0 %v2759
        %v2761 = vpop.xlane.xlu0 %2760
        %v2762 = vmul.f32 %v2740, %v788
        %v2763 = vmul.f32 %v2743, %v788
        %v2764 = vmul.f32 %v2746, %v788
        %v2765 = vmul.f32 %v2749, %v788
        %v2766 = vmul.f32 %v2752, %v788
        %v2767 = vmul.f32 %v2755, %v788
        %v2768 = vmul.f32 %v2758, %v788
        %v2769 = vmul.f32 %v2761, %v788
        %v2770 = vadd.f32 %v2762, 1e-05
        %v2771 = vadd.f32 %v2763, 1e-05
        %v2772 = vadd.f32 %v2764, 1e-05
        %v2773 = vadd.f32 %v2765, 1e-05
        %v2774 = vadd.f32 %v2766, 1e-05
        %v2775 = vadd.f32 %v2767, 1e-05
        %v2776 = vadd.f32 %v2768, 1e-05
        %v2777 = vadd.f32 %v2769, 1e-05
        %v2778 = vrsqrt.pop %v2770
        %v2779 = vrsqrt.pop %v2771
        %v2780 = vrsqrt.pop %v2772
        %v2781 = vrsqrt.pop %v2773
        %v2782 = vrsqrt.pop %v2774
        %v2783 = vrsqrt.pop %v2775
        %v2784 = vrsqrt.pop %v2776
        %v2785 = vrsqrt.pop %v2777
        %v2786 = vmul.f32 %v2722, %v2778
        %v2787 = vmul.f32 %v2723, %v2779
        %v2788 = vmul.f32 %v2724, %v2780
        %v2789 = vmul.f32 %v2725, %v2781
        %v2790 = vmul.f32 %v2726, %v2782
        %v2791 = vmul.f32 %v2727, %v2783
        %v2792 = vmul.f32 %v2728, %v2784
        %v2793 = vmul.f32 %v2729, %v2785
        %v2794 = vld [vmem:[%s10] sm:$0x1]
        %v2796 = vlaneseq
        %v2797 = vshrl.u32 %v2796, 7
        %v2798 = vsub.s32 0, %v2797
        %v2799 = vrot.slane %v2794, %v2798
        %v2801 = vmul.f32 %v2786, %v2799
        %v2802 = vmul.f32 %v2787, %v2799
        %v2803 = vmul.f32 %v2788, %v2799
        %v2804 = vmul.f32 %v2789, %v2799
        %v2805 = vmul.f32 %v2790, %v2799
        %v2806 = vmul.f32 %v2791, %v2799
        %v2807 = vmul.f32 %v2792, %v2799
        %v2808 = vmul.f32 %v2793, %v2799
        %v2809 = vld [vmem:[%s11] sm:$0x1]
        %v2811 = vlaneseq
        %v2812 = vshrl.u32 %v2811, 7
        %v2813 = vsub.s32 0, %v2812
        %v2814 = vrot.slane %v2809, %v2813
        %v2816 = vadd.f32 %v2801, %v2814
        %v2817 = vadd.f32 %v2802, %v2814
        %v2818 = vadd.f32 %v2803, %v2814
        %v2819 = vadd.f32 %v2804, %v2814
        %v2820 = vadd.f32 %v2805, %v2814
        %v2821 = vadd.f32 %v2806, %v2814
        %v2822 = vadd.f32 %v2807, %v2814
        %v2823 = vadd.f32 %v2808, %v2814
        %v2824 = vpack.c.bf16 %v2817, %v2816
        %v2825 = vpack.c.bf16 %v2819, %v2818
        %v2826 = vpack.c.bf16 %v2821, %v2820
        %v2827 = vpack.c.bf16 %v2823, %v2822
        %v2828 = vld [vmem:[#allocation16] sm:$0xf]
        %v2829 = vld [vmem:[#allocation16 + $0x4] sm:$0xf]
        %v2830 = vld [vmem:[#allocation16 + $0x8] sm:$0xf]
        %v2831 = vld [vmem:[#allocation16 + $0xc] sm:$0xf]
        %v2832 = vld [vmem:[%s13] sm:$0x1]
        %v2834 = vlaneseq
        %v2835 = vshrl.u32 %v2834, 7
        %v2836 = vsub.s32 0, %v2835
        %v2837 = vrot.slane %v2832, %v2836
        %v2843 = vunpack.c.l.b16 %v2828
        %v2844 = vunpack.c.l.b16 %v2829
        %v2845 = vunpack.c.l.b16 %v2830
        %v2846 = vunpack.c.l.b16 %v2831
        %v2847 = vpack.c.b16 %v2844, %v2843
        %v2848 = vpack.c.b16 %v2846, %v2845
        %v2852 = vsel %vm763, %v2824, 0
        %v2855 = vsel %vm763, %v2825, 0
        %v2858 = vsel %vm763, %v2826, 0
        %v2861 = vsel %vm763, %v2827, 0
        %2863 = vmatprep.subr.bf16.mxu0 0
        %2864 = vmatpush1.bf16.msra.mxu0 %v2847
        %2865 = vmatprep.subr.bf16.mxu0 0
        %2866 = vmatpush1.bf16.msra.mxu0 %v2848
        %2867 = vmatprep.subr.bf16.mxu0 0
        %2868 = vmatpush1.bf16.msra.mxu0 0
        %2869 = vmatprep.subr.bf16.mxu0 0
        %2870 = vmatpush1.bf16.msra.mxu0 0
        %2871 = vmatprep.subr.bf16.mxu0 0
        %2872 = vmatpush1.bf16.msra.mxu0 0
        %2873 = vmatprep.subr.bf16.mxu0 0
        %2874 = vmatpush1.bf16.msra.mxu0 0
        %2875 = vmatprep.subr.bf16.mxu0 0
        %2876 = vmatpush1.bf16.msra.mxu0 0
        %2877 = vmatprep.subr.bf16.mxu0 0
        %2878 = vmatpush1.bf16.msra.mxu0 0
        %2879 = vmatprep.subr.bf16.mxu0 0
        %2880 = vmatpush1.bf16.msra.mxu0 0
        %2881 = vmatprep.subr.bf16.mxu0 0
        %2882 = vmatpush1.bf16.msra.mxu0 0
        %2883 = vmatprep.subr.bf16.mxu0 0
        %2884 = vmatpush1.bf16.msra.mxu0 0
        %2885 = vmatprep.subr.bf16.mxu0 0
        %2886 = vmatpush1.bf16.msra.mxu0 0
        %2887 = vmatprep.subr.bf16.mxu0 0
        %2888 = vmatpush1.bf16.msra.mxu0 0
        %2889 = vmatprep.subr.bf16.mxu0 0
        %2890 = vmatpush1.bf16.msra.mxu0 0
        %2891 = vmatprep.subr.bf16.mxu0 0
        %2892 = vmatpush1.bf16.msra.mxu0 0
        %2893 = vmatprep.subr.bf16.mxu0 0
        %2894 = vmatpush1.bf16.msra.mxu0 0
        %2895 = vmatprep.mubr.bf16.mxu0 0
        %2896 = vmatmul.mubr.bf16.gmra.mrb[0].mxu0 %v2852
        %v2897 = vpop.f32.mrb[0].mxu0
        %v2898 = vadd.f32 %v2837, %v2897
        %v2899 = vpop.f32.mrb[0].mxu0
        %v2900 = vpop.f32.mrb[0].mxu0
        %v2901 = vadd.f32 %v2837, %v2900
        %v2902 = vpop.f32.mrb[0].mxu0
        %2903 = vmatprep.mubr.bf16.mxu0 0
        %2904 = vmatmul.mubr.bf16.gmra.mrb[0].mxu0 %v2855
        %v2905 = vpop.f32.mrb[0].mxu0
        %v2906 = vadd.f32 %v2837, %v2905
        %v2907 = vpop.f32.mrb[0].mxu0
        %v2908 = vpop.f32.mrb[0].mxu0
        %v2909 = vadd.f32 %v2837, %v2908
        %v2910 = vpop.f32.mrb[0].mxu0
        %2911 = vmatprep.mubr.bf16.mxu0 0
        %2912 = vmatmul.mubr.bf16.gmra.mrb[0].mxu0 %v2858
        %v2913 = vpop.f32.mrb[0].mxu0
        %v2914 = vadd.f32 %v2837, %v2913
        %v2915 = vpop.f32.mrb[0].mxu0
        %v2916 = vpop.f32.mrb[0].mxu0
        %v2917 = vadd.f32 %v2837, %v2916
        %v2918 = vpop.f32.mrb[0].mxu0
        %2919 = vmatprep.mubr.bf16.mxu0 0
        %2920 = vmatmul.mubr.bf16.gmra.mrb[0].mxu0 %v2861
        %v2921 = vpop.f32.mrb[0].mxu0
        %v2922 = vadd.f32 %v2837, %v2921
        %v2923 = vpop.f32.mrb[0].mxu0
        %v2924 = vpop.f32.mrb[0].mxu0
        %v2925 = vadd.f32 %v2837, %v2924
        %v2926 = vpop.f32.mrb[0].mxu0
        %2927 = vdwg.mxu0
        %v2928 = vmul.f32 %v2898, 0.5
        %v2929 = vmul.f32 %v2901, 0.5
        %v2930 = vmul.f32 %v2906, 0.5
        %v2931 = vmul.f32 %v2909, 0.5
        %v2932 = vmul.f32 %v2914, 0.5
        %v2933 = vmul.f32 %v2917, 0.5
        %v2934 = vmul.f32 %v2922, 0.5
        %v2935 = vmul.f32 %v2925, 0.5
        %v2936 = vmul.f32 %v2898, 0.044715
        %v2937 = vmul.f32 %v2901, 0.044715
        %v2938 = vmul.f32 %v2906, 0.044715
        %v2939 = vmul.f32 %v2909, 0.044715
        %v2940 = vmul.f32 %v2914, 0.044715
        %v2941 = vmul.f32 %v2917, 0.044715
        %v2942 = vmul.f32 %v2922, 0.044715
        %v2943 = vmul.f32 %v2925, 0.044715
        %v2944 = vmul.f32 %v2936, %v2898
        %v2945 = vmul.f32 %v2937, %v2901
        %v2946 = vmul.f32 %v2938, %v2906
        %v2947 = vmul.f32 %v2939, %v2909
        %v2948 = vmul.f32 %v2940, %v2914
        %v2949 = vmul.f32 %v2941, %v2917
        %v2950 = vmul.f32 %v2942, %v2922
        %v2951 = vmul.f32 %v2943, %v2925
        %v2952 = vmul.f32 %v2944, %v2898
        %v2953 = vmul.f32 %v2945, %v2901
        %v2954 = vmul.f32 %v2946, %v2906
        %v2955 = vmul.f32 %v2947, %v2909
        %v2956 = vmul.f32 %v2948, %v2914
        %v2957 = vmul.f32 %v2949, %v2917
        %v2958 = vmul.f32 %v2950, %v2922
        %v2959 = vmul.f32 %v2951, %v2925
        %v2960 = vadd.f32 %v2898, %v2952
        %v2961 = vadd.f32 %v2901, %v2953
        %v2962 = vadd.f32 %v2906, %v2954
        %v2963 = vadd.f32 %v2909, %v2955
        %v2964 = vadd.f32 %v2914, %v2956
        %v2965 = vadd.f32 %v2917, %v2957
        %v2966 = vadd.f32 %v2922, %v2958
        %v2967 = vadd.f32 %v2925, %v2959
        %v2968 = vmul.f32 %v2960, 0.7978846
        %v2969 = vmul.f32 %v2961, 0.7978846
        %v2970 = vmul.f32 %v2962, 0.7978846
        %v2971 = vmul.f32 %v2963, 0.7978846
        %v2972 = vmul.f32 %v2964, 0.7978846
        %v2973 = vmul.f32 %v2965, 0.7978846
        %v2974 = vmul.f32 %v2966, 0.7978846
        %v2975 = vmul.f32 %v2967, 0.7978846
        %v2976 = vtanh.pop %v2968
        %v2977 = vtanh.pop %v2969
        %v2978 = vtanh.pop %v2970
        %v2979 = vtanh.pop %v2971
        %v2980 = vtanh.pop %v2972
        %v2981 = vtanh.pop %v2973
        %v2982 = vtanh.pop %v2974
        %v2983 = vtanh.pop %v2975
        %v2984 = vadd.f32 %v2976, 1.0
        %v2985 = vadd.f32 %v2977, 1.0
        %v2986 = vadd.f32 %v2978, 1.0
        %v2987 = vadd.f32 %v2979, 1.0
        %v2988 = vadd.f32 %v2980, 1.0
        %v2989 = vadd.f32 %v2981, 1.0
        %v2990 = vadd.f32 %v2982, 1.0
        %v2991 = vadd.f32 %v2983, 1.0
        %v2992 = vmul.f32 %v2928, %v2984
        %v2993 = vmul.f32 %v2929, %v2985
        %v2994 = vmul.f32 %v2930, %v2986
        %v2995 = vmul.f32 %v2931, %v2987
        %v2996 = vmul.f32 %v2932, %v2988
        %v2997 = vmul.f32 %v2933, %v2989
        %v2998 = vmul.f32 %v2934, %v2990
        %v2999 = vmul.f32 %v2935, %v2991
        %v3000 = vpack.c.bf16 %v2993, %v2992
        %v3001 = vpack.c.bf16 %v2995, %v2994
        %v3002 = vpack.c.bf16 %v2997, %v2996
        %v3003 = vpack.c.bf16 %v2999, %v2998
        %v3004 = vld [vmem:[%s14] sm:$0xf]
        %v3005 = vld [vmem:[%s14 + $0x4] sm:$0xf]
        %v3006 = vld [vmem:[%s14 + $0x8] sm:$0xf]
        %v3007 = vld [vmem:[%s14 + $0xc] sm:$0xf]
        %v3008 = vld [vmem:[%s14 + $0x10] sm:$0xf]
        %v3009 = vld [vmem:[%s14 + $0x14] sm:$0xf]
        %v3010 = vld [vmem:[%s14 + $0x18] sm:$0xf]
        %v3011 = vld [vmem:[%s14 + $0x1c] sm:$0xf]
        %v3012 = vld [vmem:[%s14 + $0x20] sm:$0xf]
        %v3013 = vld [vmem:[%s14 + $0x24] sm:$0xf]
        %v3014 = vld [vmem:[%s14 + $0x28] sm:$0xf]
        %v3015 = vld [vmem:[%s14 + $0x2c] sm:$0xf]
        %v3016 = vld [vmem:[%s14 + $0x30] sm:$0xf]
        %v3017 = vld [vmem:[%s14 + $0x34] sm:$0xf]
        %v3018 = vld [vmem:[%s14 + $0x38] sm:$0xf]
        %v3019 = vld [vmem:[%s14 + $0x3c] sm:$0xf]
        %v3020 = vld [vmem:[%s15] sm:$0x1]
        %v3022 = vlaneseq
        %v3023 = vshrl.u32 %v3022, 7
        %v3024 = vsub.s32 0, %v3023
        %v3025 = vrot.slane %v3020, %v3024
        %v3043 = vunpack.c.l.b16 %v3004
        %v3044 = vunpack.c.l.b16 %v3005
        %v3045 = vunpack.c.l.b16 %v3006
        %v3046 = vunpack.c.l.b16 %v3007
        %v3047 = vunpack.c.l.b16 %v3008
        %v3048 = vunpack.c.l.b16 %v3009
        %v3049 = vunpack.c.l.b16 %v3010
        %v3050 = vunpack.c.l.b16 %v3011
        %v3051 = vunpack.c.l.b16 %v3012
        %v3052 = vunpack.c.l.b16 %v3013
        %v3053 = vunpack.c.l.b16 %v3014
        %v3054 = vunpack.c.l.b16 %v3015
        %v3055 = vunpack.c.l.b16 %v3016
        %v3056 = vunpack.c.l.b16 %v3017
        %v3057 = vunpack.c.l.b16 %v3018
        %v3058 = vunpack.c.l.b16 %v3019
        %v3059 = vpack.c.b16 %v3044, %v3043
        %v3060 = vpack.c.b16 %v3046, %v3045
        %v3061 = vpack.c.b16 %v3048, %v3047
        %v3062 = vpack.c.b16 %v3050, %v3049
        %v3063 = vpack.c.b16 %v3052, %v3051
        %v3064 = vpack.c.b16 %v3054, %v3053
        %v3065 = vpack.c.b16 %v3056, %v3055
        %v3066 = vpack.c.b16 %v3058, %v3057
        %3075 = vmatprep.subr.bf16.mxu0 0
        %3076 = vmatpush1.bf16.msra.mxu0 %v3059
        %3077 = vmatprep.subr.bf16.mxu0 0
        %3078 = vmatpush1.bf16.msra.mxu0 %v3060
        %3079 = vmatprep.subr.bf16.mxu0 0
        %3080 = vmatpush1.bf16.msra.mxu0 %v3061
        %3081 = vmatprep.subr.bf16.mxu0 0
        %3082 = vmatpush1.bf16.msra.mxu0 %v3062
        %3083 = vmatprep.subr.bf16.mxu0 0
        %3084 = vmatpush1.bf16.msra.mxu0 %v3063
        %3085 = vmatprep.subr.bf16.mxu0 0
        %3086 = vmatpush1.bf16.msra.mxu0 %v3064
        %3087 = vmatprep.subr.bf16.mxu0 0
        %3088 = vmatpush1.bf16.msra.mxu0 %v3065
        %3089 = vmatprep.subr.bf16.mxu0 0
        %3090 = vmatpush1.bf16.msra.mxu0 %v3066
        %3091 = vmatprep.subr.bf16.mxu0 0
        %3092 = vmatpush1.bf16.msra.mxu0 0
        %3093 = vmatprep.subr.bf16.mxu0 0
        %3094 = vmatpush1.bf16.msra.mxu0 0
        %3095 = vmatprep.subr.bf16.mxu0 0
        %3096 = vmatpush1.bf16.msra.mxu0 0
        %3097 = vmatprep.subr.bf16.mxu0 0
        %3098 = vmatpush1.bf16.msra.mxu0 0
        %3099 = vmatprep.subr.bf16.mxu0 0
        %3100 = vmatpush1.bf16.msra.mxu0 0
        %3101 = vmatprep.subr.bf16.mxu0 0
        %3102 = vmatpush1.bf16.msra.mxu0 0
        %3103 = vmatprep.subr.bf16.mxu0 0
        %3104 = vmatpush1.bf16.msra.mxu0 0
        %3105 = vmatprep.subr.bf16.mxu0 0
        %3106 = vmatpush1.bf16.msra.mxu0 0
        %3107 = vmatprep.mubr.bf16.mxu0 0
        %3108 = vmatmul.mubr.bf16.gmra.mrb[0].mxu0 %v3000
        %v3109 = vpop.f32.mrb[0].mxu0
        %v3110 = vadd.f32 %v3025, %v3109
        %v3111 = vpop.f32.mrb[0].mxu0
        %v3112 = vpop.f32.mrb[0].mxu0
        %v3113 = vadd.f32 %v3025, %v3112
        %v3114 = vpop.f32.mrb[0].mxu0
        %3115 = vmatprep.mubr.bf16.mxu0 0
        %3116 = vmatmul.mubr.bf16.gmra.mrb[0].mxu0 %v3001
        %v3117 = vpop.f32.mrb[0].mxu0
        %v3118 = vadd.f32 %v3025, %v3117
        %v3119 = vpop.f32.mrb[0].mxu0
        %v3120 = vpop.f32.mrb[0].mxu0
        %v3121 = vadd.f32 %v3025, %v3120
        %v3122 = vpop.f32.mrb[0].mxu0
        %3123 = vmatprep.mubr.bf16.mxu0 0
        %3124 = vmatmul.mubr.bf16.gmra.mrb[0].mxu0 %v3002
        %v3125 = vpop.f32.mrb[0].mxu0
        %v3126 = vadd.f32 %v3025, %v3125
        %v3127 = vpop.f32.mrb[0].mxu0
        %v3128 = vpop.f32.mrb[0].mxu0
        %v3129 = vadd.f32 %v3025, %v3128
        %v3130 = vpop.f32.mrb[0].mxu0
        %3131 = vmatprep.mubr.bf16.mxu0 0
        %3132 = vmatmul.mubr.bf16.gmra.mrb[0].mxu0 %v3003
        %v3133 = vpop.f32.mrb[0].mxu0
        %v3134 = vadd.f32 %v3025, %v3133
        %v3135 = vpop.f32.mrb[0].mxu0
        %v3136 = vpop.f32.mrb[0].mxu0
        %v3137 = vadd.f32 %v3025, %v3136
        %v3138 = vpop.f32.mrb[0].mxu0
        %3139 = vdwg.mxu0
        %v3140 = vadd.f32 %v2682, %v3110
        %v3141 = vadd.f32 %v2683, %v3113
        %v3142 = vadd.f32 %v2684, %v3118
        %v3143 = vadd.f32 %v2685, %v3121
        %v3144 = vadd.f32 %v2686, %v3126
        %v3145 = vadd.f32 %v2687, %v3129
        %v3146 = vadd.f32 %v2688, %v3134
        %v3147 = vadd.f32 %v2689, %v3137
        %3148 = vst.msk [vmem:[%s743] sm:$0xff] %vm763, %v3140
        %3149 = vst.msk [vmem:[%s743 + $0x8] sm:$0xff] %vm763, %v3141
        %3150 = vst.msk [vmem:[%s743 + $0x10] sm:$0xff] %vm763, %v3142
        %3151 = vst.msk [vmem:[%s743 + $0x18] sm:$0xff] %vm763, %v3143
        %3152 = vst.msk [vmem:[%s743 + $0x20] sm:$0xff] %vm763, %v3144
        %3153 = vst.msk [vmem:[%s743 + $0x28] sm:$0xff] %vm763, %v3145
        %3154 = vst.msk [vmem:[%s743 + $0x30] sm:$0xff] %vm763, %v3146
        %3155 = vst.msk [vmem:[%s743 + $0x38] sm:$0xff] %vm763, %v3147
        %v3156 = vld [vmem:[%s8] sm:$0x3]
        %v3158 = vsel %vm1017, %v3156, 0
        %3160 = vmatprep.subr.mxu0 0.0
        %3161 = vmatpush1.msra.mxu0 %v2401
        %3162 = vmatprep.subr.mxu0 0.0
        %3163 = vmatpush1.msra.mxu0 0.0
        %3164 = vmatprep.subr.mxu0 0.0
        %3165 = vmatpush1.msra.mxu0 0.0
        %3166 = vmatprep.subr.mxu0 0.0
        %3167 = vmatpush1.msra.mxu0 0.0
        %3168 = vmatprep.subr.mxu0 0.0
        %3169 = vmatpush1.msra.mxu0 0.0
        %3170 = vmatprep.subr.mxu0 0.0
        %3171 = vmatpush1.msra.mxu0 0.0
        %3172 = vmatprep.subr.mxu0 0.0
        %3173 = vmatpush1.msra.mxu0 0.0
        %3174 = vmatprep.subr.mxu0 0.0
        %3175 = vmatpush1.msra.mxu0 0.0
        %3176 = vmatprep.subr.mxu0 0.0
        %3177 = vmatpush1.msra.mxu0 0.0
        %3178 = vmatprep.subr.mxu0 0.0
        %3179 = vmatpush1.msra.mxu0 0.0
        %3180 = vmatprep.subr.mxu0 0.0
        %3181 = vmatpush1.msra.mxu0 0.0
        %3182 = vmatprep.subr.mxu0 0.0
        %3183 = vmatpush1.msra.mxu0 0.0
        %3184 = vmatprep.subr.mxu0 0.0
        %3185 = vmatpush1.msra.mxu0 0.0
        %3186 = vmatprep.subr.mxu0 0.0
        %3187 = vmatpush1.msra.mxu0 0.0
        %3188 = vmatprep.subr.mxu0 0.0
        %3189 = vmatpush1.msra.mxu0 0.0
        %3190 = vmatprep.subr.mxu0 0.0
        %3191 = vmatpush1.msra.mxu0 0.0
        %3192 = vmatprep.subr.mxu0 0.0
        %3193 = vmatpush1.msra.mxu0 0.0
        %3194 = vmatprep.subr.mxu0 0.0
        %3195 = vmatpush1.msra.mxu0 0.0
        %3196 = vmatprep.subr.mxu0 0.0
        %3197 = vmatpush1.msra.mxu0 0.0
        %3198 = vmatprep.subr.mxu0 0.0
        %3199 = vmatpush1.msra.mxu0 0.0
        %3200 = vmatprep.subr.mxu0 0.0
        %3201 = vmatpush1.msra.mxu0 0.0
        %3202 = vmatprep.subr.mxu0 0.0
        %3203 = vmatpush1.msra.mxu0 0.0
        %3204 = vmatprep.subr.mxu0 0.0
        %3205 = vmatpush1.msra.mxu0 0.0
        %3206 = vmatprep.subr.mxu0 0.0
        %3207 = vmatpush1.msra.mxu0 0.0
        %3208 = vmatprep.subr.mxu0 0.0
        %3209 = vmatpush1.msra.mxu0 0.0
        %3210 = vmatprep.subr.mxu0 0.0
        %3211 = vmatpush1.msra.mxu0 0.0
        %3212 = vmatprep.subr.mxu0 0.0
        %3213 = vmatpush1.msra.mxu0 0.0
        %3214 = vmatprep.subr.mxu0 0.0
        %3215 = vmatpush1.msra.mxu0 0.0
        %3216 = vmatprep.subr.mxu0 0.0
        %3217 = vmatpush1.msra.mxu0 0.0
        %3218 = vmatprep.subr.mxu0 0.0
        %3219 = vmatpush1.msra.mxu0 0.0
        %3220 = vmatprep.subr.mxu0 0.0
        %3221 = vmatpush1.msra.mxu0 0.0
        %3222 = vmatprep.subr.mxu0 0.0
        %3223 = vmatpush1.msra.mxu0 0.0
        %3224 = vmatprep.mubr.f32.mxu0 0.0
        %3225 = vmatmul.mubr.f32.gmra.mrb[0].mxu0 %v3158
        %v3226 = vpop.f32.mrb[0].mxu0
        %v3227 = vadd.f32 0.0, %v3226
        %v3228 = vpop.f32.mrb[0].mxu0
        %3229 = vdwg.mxu0
        %3230 = vmatprep.subr.mxu0 0.0
        %3231 = vmatpush1.msra.mxu0 %v2402
        %3232 = vmatprep.subr.mxu0 0.0
        %3233 = vmatpush1.msra.mxu0 0.0
        %3234 = vmatprep.subr.mxu0 0.0
        %3235 = vmatpush1.msra.mxu0 0.0
        %3236 = vmatprep.subr.mxu0 0.0
        %3237 = vmatpush1.msra.mxu0 0.0
        %3238 = vmatprep.subr.mxu0 0.0
        %3239 = vmatpush1.msra.mxu0 0.0
        %3240 = vmatprep.subr.mxu0 0.0
        %3241 = vmatpush1.msra.mxu0 0.0
        %3242 = vmatprep.subr.mxu0 0.0
        %3243 = vmatpush1.msra.mxu0 0.0
        %3244 = vmatprep.subr.mxu0 0.0
        %3245 = vmatpush1.msra.mxu0 0.0
        %3246 = vmatprep.subr.mxu0 0.0
        %3247 = vmatpush1.msra.mxu0 0.0
        %3248 = vmatprep.subr.mxu0 0.0
        %3249 = vmatpush1.msra.mxu0 0.0
        %3250 = vmatprep.subr.mxu0 0.0
        %3251 = vmatpush1.msra.mxu0 0.0
        %3252 = vmatprep.subr.mxu0 0.0
        %3253 = vmatpush1.msra.mxu0 0.0
        %3254 = vmatprep.subr.mxu0 0.0
        %3255 = vmatpush1.msra.mxu0 0.0
        %3256 = vmatprep.subr.mxu0 0.0
        %3257 = vmatpush1.msra.mxu0 0.0
        %3258 = vmatprep.subr.mxu0 0.0
        %3259 = vmatpush1.msra.mxu0 0.0
        %3260 = vmatprep.subr.mxu0 0.0
        %3261 = vmatpush1.msra.mxu0 0.0
        %3262 = vmatprep.subr.mxu0 0.0
        %3263 = vmatpush1.msra.mxu0 0.0
        %3264 = vmatprep.subr.mxu0 0.0
        %3265 = vmatpush1.msra.mxu0 0.0
        %3266 = vmatprep.subr.mxu0 0.0
        %3267 = vmatpush1.msra.mxu0 0.0
        %3268 = vmatprep.subr.mxu0 0.0
        %3269 = vmatpush1.msra.mxu0 0.0
        %3270 = vmatprep.subr.mxu0 0.0
        %3271 = vmatpush1.msra.mxu0 0.0
        %3272 = vmatprep.subr.mxu0 0.0
        %3273 = vmatpush1.msra.mxu0 0.0
        %3274 = vmatprep.subr.mxu0 0.0
        %3275 = vmatpush1.msra.mxu0 0.0
        %3276 = vmatprep.subr.mxu0 0.0
        %3277 = vmatpush1.msra.mxu0 0.0
        %3278 = vmatprep.subr.mxu0 0.0
        %3279 = vmatpush1.msra.mxu0 0.0
        %3280 = vmatprep.subr.mxu0 0.0
        %3281 = vmatpush1.msra.mxu0 0.0
        %3282 = vmatprep.subr.mxu0 0.0
        %3283 = vmatpush1.msra.mxu0 0.0
        %3284 = vmatprep.subr.mxu0 0.0
        %3285 = vmatpush1.msra.mxu0 0.0
        %3286 = vmatprep.subr.mxu0 0.0
        %3287 = vmatpush1.msra.mxu0 0.0
        %3288 = vmatprep.subr.mxu0 0.0
        %3289 = vmatpush1.msra.mxu0 0.0
        %3290 = vmatprep.subr.mxu0 0.0
        %3291 = vmatpush1.msra.mxu0 0.0
        %3292 = vmatprep.subr.mxu0 0.0
        %3293 = vmatpush1.msra.mxu0 0.0
        %3294 = vmatprep.mubr.f32.mxu0 0.0
        %3295 = vmatmul.mubr.f32.gmra.mrb[0].mxu0 %v3158
        %v3296 = vpop.f32.mrb[0].mxu0
        %v3297 = vadd.f32 0.0, %v3296
        %v3298 = vpop.f32.mrb[0].mxu0
        %3299 = vdwg.mxu0
        %v3300 = vld [vmem:[%s9] sm:$0xff]
        %v3301 = vld [vmem:[%s9 + $0x8] sm:$0xff]
        %v3302 = vld [vmem:[%s9 + $0x10] sm:$0xff]
        %v3303 = vld [vmem:[%s9 + $0x18] sm:$0xff]
        %v3305 = vsel %vm763, %v3227, 0
        %3307 = vmatprep.subr.mxu0 0.0
        %3308 = vmatpush1.msra.mxu0 %v3300
        %3309 = vmatprep.subr.mxu0 0.0
        %3310 = vmatpush1.msra.mxu0 %v3301
        %3311 = vmatprep.subr.mxu0 0.0
        %3312 = vmatpush1.msra.mxu0 %v3302
        %3313 = vmatprep.subr.mxu0 0.0
        %3314 = vmatpush1.msra.mxu0 %v3303
        %3315 = vmatprep.subr.mxu0 0.0
        %3316 = vmatpush1.msra.mxu0 0.0
        %3317 = vmatprep.subr.mxu0 0.0
        %3318 = vmatpush1.msra.mxu0 0.0
        %3319 = vmatprep.subr.mxu0 0.0
        %3320 = vmatpush1.msra.mxu0 0.0
        %3321 = vmatprep.subr.mxu0 0.0
        %3322 = vmatpush1.msra.mxu0 0.0
        %3323 = vmatprep.subr.mxu0 0.0
        %3324 = vmatpush1.msra.mxu0 0.0
        %3325 = vmatprep.subr.mxu0 0.0
        %3326 = vmatpush1.msra.mxu0 0.0
        %3327 = vmatprep.subr.mxu0 0.0
        %3328 = vmatpush1.msra.mxu0 0.0
        %3329 = vmatprep.subr.mxu0 0.0
        %3330 = vmatpush1.msra.mxu0 0.0
        %3331 = vmatprep.subr.mxu0 0.0
        %3332 = vmatpush1.msra.mxu0 0.0
        %3333 = vmatprep.subr.mxu0 0.0
        %3334 = vmatpush1.msra.mxu0 0.0
        %3335 = vmatprep.subr.mxu0 0.0
        %3336 = vmatpush1.msra.mxu0 0.0
        %3337 = vmatprep.subr.mxu0 0.0
        %3338 = vmatpush1.msra.mxu0 0.0
        %3339 = vmatprep.subr.mxu0 0.0
        %3340 = vmatpush1.msra.mxu0 0.0
        %3341 = vmatprep.subr.mxu0 0.0
        %3342 = vmatpush1.msra.mxu0 0.0
        %3343 = vmatprep.subr.mxu0 0.0
        %3344 = vmatpush1.msra.mxu0 0.0
        %3345 = vmatprep.subr.mxu0 0.0
        %3346 = vmatpush1.msra.mxu0 0.0
        %3347 = vmatprep.subr.mxu0 0.0
        %3348 = vmatpush1.msra.mxu0 0.0
        %3349 = vmatprep.subr.mxu0 0.0
        %3350 = vmatpush1.msra.mxu0 0.0
        %3351 = vmatprep.subr.mxu0 0.0
        %3352 = vmatpush1.msra.mxu0 0.0
        %3353 = vmatprep.subr.mxu0 0.0
        %3354 = vmatpush1.msra.mxu0 0.0
        %3355 = vmatprep.subr.mxu0 0.0
        %3356 = vmatpush1.msra.mxu0 0.0
        %3357 = vmatprep.subr.mxu0 0.0
        %3358 = vmatpush1.msra.mxu0 0.0
        %3359 = vmatprep.subr.mxu0 0.0
        %3360 = vmatpush1.msra.mxu0 0.0
        %3361 = vmatprep.subr.mxu0 0.0
        %3362 = vmatpush1.msra.mxu0 0.0
        %3363 = vmatprep.subr.mxu0 0.0
        %3364 = vmatpush1.msra.mxu0 0.0
        %3365 = vmatprep.subr.mxu0 0.0
        %3366 = vmatpush1.msra.mxu0 0.0
        %3367 = vmatprep.subr.mxu0 0.0
        %3368 = vmatpush1.msra.mxu0 0.0
        %3369 = vmatprep.subr.mxu0 0.0
        %3370 = vmatpush1.msra.mxu0 0.0
        %3371 = vmatprep.mubr.f32.mxu0 0.0
        %3372 = vmatmul.mubr.f32.gmra.mrb[0].mxu0 %v3305
        %v3373 = vpop.f32.mrb[0].mxu0
        %v3374 = vadd.f32 0.0, %v3373
        %v3375 = vpop.f32.mrb[0].mxu0
        %3376 = vdwg.mxu0
        %v3378 = vsel %vm763, %v3297, 0
        %3380 = vmatprep.subr.mxu0 0.0
        %3381 = vmatpush1.msra.mxu0 %v3300
        %3382 = vmatprep.subr.mxu0 0.0
        %3383 = vmatpush1.msra.mxu0 %v3301
        %3384 = vmatprep.subr.mxu0 0.0
        %3385 = vmatpush1.msra.mxu0 %v3302
        %3386 = vmatprep.subr.mxu0 0.0
        %3387 = vmatpush1.msra.mxu0 %v3303
        %3388 = vmatprep.subr.mxu0 0.0
        %3389 = vmatpush1.msra.mxu0 0.0
        %3390 = vmatprep.subr.mxu0 0.0
        %3391 = vmatpush1.msra.mxu0 0.0
        %3392 = vmatprep.subr.mxu0 0.0
        %3393 = vmatpush1.msra.mxu0 0.0
        %3394 = vmatprep.subr.mxu0 0.0
        %3395 = vmatpush1.msra.mxu0 0.0
        %3396 = vmatprep.subr.mxu0 0.0
        %3397 = vmatpush1.msra.mxu0 0.0
        %3398 = vmatprep.subr.mxu0 0.0
        %3399 = vmatpush1.msra.mxu0 0.0
        %3400 = vmatprep.subr.mxu0 0.0
        %3401 = vmatpush1.msra.mxu0 0.0
        %3402 = vmatprep.subr.mxu0 0.0
        %3403 = vmatpush1.msra.mxu0 0.0
        %3404 = vmatprep.subr.mxu0 0.0
        %3405 = vmatpush1.msra.mxu0 0.0
        %3406 = vmatprep.subr.mxu0 0.0
        %3407 = vmatpush1.msra.mxu0 0.0
        %3408 = vmatprep.subr.mxu0 0.0
        %3409 = vmatpush1.msra.mxu0 0.0
        %3410 = vmatprep.subr.mxu0 0.0
        %3411 = vmatpush1.msra.mxu0 0.0
        %3412 = vmatprep.subr.mxu0 0.0
        %3413 = vmatpush1.msra.mxu0 0.0
        %3414 = vmatprep.subr.mxu0 0.0
        %3415 = vmatpush1.msra.mxu0 0.0
        %3416 = vmatprep.subr.mxu0 0.0
        %3417 = vmatpush1.msra.mxu0 0.0
        %3418 = vmatprep.subr.mxu0 0.0
        %3419 = vmatpush1.msra.mxu0 0.0
        %3420 = vmatprep.subr.mxu0 0.0
        %3421 = vmatpush1.msra.mxu0 0.0
        %3422 = vmatprep.subr.mxu0 0.0
        %3423 = vmatpush1.msra.mxu0 0.0
        %3424 = vmatprep.subr.mxu0 0.0
        %3425 = vmatpush1.msra.mxu0 0.0
        %3426 = vmatprep.subr.mxu0 0.0
        %3427 = vmatpush1.msra.mxu0 0.0
        %3428 = vmatprep.subr.mxu0 0.0
        %3429 = vmatpush1.msra.mxu0 0.0
        %3430 = vmatprep.subr.mxu0 0.0
        %3431 = vmatpush1.msra.mxu0 0.0
        %3432 = vmatprep.subr.mxu0 0.0
        %3433 = vmatpush1.msra.mxu0 0.0
        %3434 = vmatprep.subr.mxu0 0.0
        %3435 = vmatpush1.msra.mxu0 0.0
        %3436 = vmatprep.subr.mxu0 0.0
        %3437 = vmatpush1.msra.mxu0 0.0
        %3438 = vmatprep.subr.mxu0 0.0
        %3439 = vmatpush1.msra.mxu0 0.0
        %3440 = vmatprep.subr.mxu0 0.0
        %3441 = vmatpush1.msra.mxu0 0.0
        %3442 = vmatprep.subr.mxu0 0.0
        %3443 = vmatpush1.msra.mxu0 0.0
        %3444 = vmatprep.mubr.f32.mxu0 0.0
        %3445 = vmatmul.mubr.f32.gmra.mrb[0].mxu0 %v3378
        %v3446 = vpop.f32.mrb[0].mxu0
        %v3447 = vadd.f32 0.0, %v3446
        %v3448 = vpop.f32.mrb[0].mxu0
        %3449 = vdwg.mxu0
        %v3450 = vmul.f32 %v3374, 0.25
        %v3451 = vmul.f32 %v3447, 0.25
        %vm3452 = vcmask 123904
        %3453 = vst.msk [vmem:[%s750] sm:$0x3] %vm3452, %v3450
        %3454 = vst.msk [vmem:[%s750 + $0x2] sm:$0x3] %vm3452, %v3451
        %s3455 = sand.u32 %s405, 1
        %s3456 = scalar_lea.sflag [#allocation6], %s3455
        %s3457 = sand.u32 %s405, 1
        %s3458 = smul.addr %s3457, 64
        %s3459 = scalar_lea.vmem [#allocation18], %s3458
        %s3460 = sand.u32 %s433, 1
        %s3461 = scalar_lea.sflag [#allocation20], %s3460
        %s3462 = sand.u32 %s433, 1
        %s3463 = smul.addr %s3462, 4
        %s3464 = scalar_lea.vmem [#allocation19], %s3463
        // Predicated region
        $region155: #{tpu_custom_call.1} parent=117 // pred_check
          %p3465 = pneg %p415
        $region156: #{tpu_custom_call.1} parent=117 // pred_check_branch
          %3467 = sbr.rel (%p3465) target = $region158
        $region157: #{tpu_custom_call.1} parent=117 // pred_region
          #allocation22 [shape = 'u32[6]{0}', space=smem, size = 0x18, scoped, tag = 'DMA stride descriptor']
          %s3468 = smul.u32 2, %s45
          %s3470 = ssub.s32 1024, 1024
          %3471 = vsyncadd %s3456, %s3470
          %s3472 = smul.addr %s44, 4
          %s3473 = smul.addr %s3468, 8
          %s3474 = sadd.s32 %s3472, %s3473
          %s3475 = smul.addr %s3474, 128
          %s3476 = scalar_lea.hbm %s16, %s3475
          %s3478 = sshll.u32 1, 14
          %s3479 = sxor.u32 4294967295, %s3478
          %s3482 = sshll.u32 7, 18
          %s3483 = sxor.u32 4294967295, %s3482
          %s3484 = sand.u32 0, %s3483
          %s3486 = sor.u32 %s3484, 0
          %s3488 = sshll.u32 3, 24
          %s3489 = sxor.u32 4294967295, %s3488
          %s3490 = sand.u32 %s3486, %s3489
          %s3492 = sor.u32 %s3490, 0
          %s3493 = sshll.u32 %s3459, 4
          %s3494 = int_to_ptr.vmem [resolvable:$true] %s3493
          %3500 = sst [smem:[#allocation22]] 512
          %s3501 = scalar_lea.smem [#allocation22], 1
          %3502 = sst [smem:[%s3501]] 1024
          %s3503 = scalar_lea.smem [#allocation22], 2
          %3504 = sst [smem:[%s3503]] 4
          %s3505 = scalar_lea.smem [#allocation22], 3
          %3506 = sst [smem:[%s3505]] 128
          %s3507 = scalar_lea.smem [#allocation22], 4
          %3508 = sst [smem:[%s3507]] 128
          %s3509 = scalar_lea.smem [#allocation22], 5
          %3510 = sst [smem:[%s3509]] 8
          %3512 = dma.general %s3494, 1024, %s3476, %s3456, [#allocation21], [#allocation22], %s3492, 0
        $region158: #{tpu_custom_call.1} parent=117 // pred_fallthru
          _
        // Predicated region
        $region159: #{tpu_custom_call.1} parent=117 // pred_check
          %p3513 = pneg %p443
        $region160: #{tpu_custom_call.1} parent=117 // pred_check_branch
          %3515 = sbr.rel (%p3513) target = $region162
        $region161: #{tpu_custom_call.1} parent=117 // pred_region
          %s3516 = smul.u32 2, %s45
          %s3518 = ssub.s32 64, 64
          %3519 = vsyncadd %s3461, %s3518
          %s3520 = smul.addr %s3516, 2
          %s3521 = sadd.s32 %s44, %s3520
          %s3522 = smul.addr %s3521, 32
          %s3523 = scalar_lea.hbm %s17, %s3522
          %s3524 = sshll.u32 %s3464, 4
          %s3525 = int_to_ptr.vmem [resolvable:$true] %s3524
          %3530 = dma.vmem_to_hbm [thread:$0]  %s3525, 64, %s3523, %s3461, 32, 64, 2
        $region162: #{tpu_custom_call.1} parent=117 // pred_fallthru
          _
      $region118: #{tpu_custom_call.1} parent=5 // pred_fallthru
        _
      %p3531 = scmp.le.s32.totalorder 2, %s35
      // Predicated region
      $region163: #{tpu_custom_call.1} parent=5 // pred_check
        %p3532 = pneg %p3531
      $region164: #{tpu_custom_call.1} parent=5 // pred_check_branch
        %3534 = sbr.rel (%p3532) target = $region166
      $region165: #{tpu_custom_call.1} parent=5 // pred_region
        %s3535 = ssub.s32 %s35, 2
        // Predicated region
        $region167: #{tpu_custom_call.1} parent=165 // pred_check
          %p3536 = pneg %p421
        $region168: #{tpu_custom_call.1} parent=165 // pred_check_branch
          %3538 = sbr.rel (%p3536) target = $region170
        $region169: #{tpu_custom_call.1} parent=165 // pred_region
          %s3539 = sand.u32 %s406, 1
          %s3540 = scalar_lea.sflag [#allocation6], %s3539
          %s3541 = sand.u32 %s406, 1
          %s3542 = smul.addr %s3541, 64
          %s3543 = scalar_lea.vmem [#allocation18], %s3542
          %3544 = dma.done %s3540, 1024
        $region170: #{tpu_custom_call.1} parent=165 // pred_fallthru
          _
        // Predicated region
        $region171: #{tpu_custom_call.1} parent=165 // pred_check
          %p3545 = pneg %p449
        $region172: #{tpu_custom_call.1} parent=165 // pred_check_branch
          %3547 = sbr.rel (%p3545) target = $region174
        $region173: #{tpu_custom_call.1} parent=165 // pred_region
          %s3548 = sand.u32 %s434, 1
          %s3549 = scalar_lea.sflag [#allocation20], %s3548
          %s3550 = sand.u32 %s434, 1
          %s3551 = smul.addr %s3550, 4
          %s3552 = scalar_lea.vmem [#allocation19], %s3551
          %3553 = dma.done %s3549, 64
        $region174: #{tpu_custom_call.1} parent=165 // pred_fallthru
          _
      $region166: #{tpu_custom_call.1} parent=5 // pred_fallthru
        _
    $region6: #{tpu_custom_call.1} parent=1 // loop_footer
      %s39 = sadd.s32 1, %s35
    $region7: #{tpu_custom_call.1} parent=1 // loop_footer_branch
      %34 = sbr.rel target = $region3
    $region8: #{tpu_custom_call.1} parent=1 // loop_exit
      _
    %3554 = vsyncpa [#allocation5], 1
    %s3555 = scalar_lea.sflag [#allocation5], 1
    %3556 = vsyncpa %s3555, 1
    %3557 = vsyncpa [#allocation8], 1
    %3558 = vsyncpa [#allocation11], 1
    %3559 = vsyncpa [#allocation14], 1
    %3560 = vsyncpa [#allocation17], 1
    %3561 = vsyncpa [#allocation6], 1
    %s3562 = scalar_lea.sflag [#allocation6], 1
    %3563 = vsyncpa %s3562, 1
    %3564 = vsyncpa [#allocation20], 1
    %s3565 = scalar_lea.sflag [#allocation20], 1
    %3566 = vsyncpa %s3565, 1

</llo_original>
